<compile_context>
chip_gen: v6e
topology: v6e:2x2x1
jax: 0.10.0
libtpu: 0.0.40
codegen_flags: <defaults>
</compile_context>

<pallas_src>
import jax
import jax.numpy as jnp
from jax import lax
from jax.experimental import pallas as pl
from jax.experimental.pallas import tpu as pltpu


LANE = 128

# Set to jnp.bfloat16 on v6e/v7x to halve matmul-operand VMEM pressure / use the
# bf16-native MXU; kept float32 here for numerical parity with the torch module.
MATMUL_DTYPE = jnp.float32


def _round_up(x, m):
    return (x + m - 1) // m * m


# ----------------------------- small math glue -----------------------------

def gelu_exact(x):
    # matches torch.nn.functional.gelu (default, erf-based)
    return 0.5 * x * (1.0 + lax.erf(x / jnp.sqrt(2.0).astype(x.dtype)))


def swish(x):
    return x * jax.nn.sigmoid(x)


def linear(x, w, b):
    # PyTorch nn.Linear: y = x @ W.T + b, W has shape (out, in)
    return x @ w.T + b


def params_embedding(x, p, act):
    return linear(act(linear(x, p["w1"], p["b1"])), p["w2"], p["b2"])


# ------------------------------ tiling helpers ------------------------------

def _spatial_tile(S, C, vmem_budget=8 * 2**20, max_tile=2048):
    """Lane-dense S tile: x, x1, out tiles double-buffered must fit budget."""
    cap = max(LANE, (vmem_budget // max(1, C * 4 * 3 * 2)) // LANE * LANE)
    tile = int(min(max_tile, cap, _round_up(S, LANE)))
    return tile, _round_up(S, tile)


def _spectral_mtile(ci, co, four_m, vmem_budget=6 * 2**20):
    """Mode tile: 3 weight tiles (wr, wi-wr, wr+wi), f32, double-buffered.
    Budget is conservative so the same tiling fits v7x's smaller (64 MiB) VMEM."""
    per_lane = max(1, ci * co * 4 * 3 * 2)
    cap = max(LANE, (vmem_budget // per_lane) // LANE * LANE)
    return int(min(cap, _round_up(four_m, LANE)))


# ------------------------------ Pallas kernels ------------------------------

def _lift_kernel(x_ref, g_ref, w_ref, b_ref, o_ref):
    # Fused grid-concat + 1x1 lifting conv (Ci = 4) as 4 VPU broadcast FMAs:
    # a (width x 4) @ (4 x S) matmul would use <1% of the MXU and the
    # concatenated (B, 4, S) tensor would round-trip HBM.
    # x_ref: (1, St), g_ref: (3, St), w_ref: (Co, 4), b_ref: (Co, 1), o: (Co, St)
    w = w_ref[...]
    y = w[:, 0:1] * x_ref[...]
    y = y + w[:, 1:2] * g_ref[0:1, :]
    y = y + w[:, 2:3] * g_ref[1:2, :]
    y = y + w[:, 3:4] * g_ref[2:3, :]
    o_ref[...] = y + b_ref[...]


def lift_with_grid(x_flat, grid_flat, w, b, st):
    """x_flat (B, 1, Sp), grid_flat (3, Sp) -> (B, Co, Sp); Sp % st == 0."""
    B, _, Sp = x_flat.shape
    Co = w.shape[0]
    n_s = Sp // st
    return pl.pallas_call(
        _lift_kernel,
        out_shape=jax.ShapeDtypeStruct((B, Co, Sp), jnp.float32),
        grid=(B, n_s),
        in_specs=[
            pl.BlockSpec((None, 1, st), lambda b_, s: (b_, 0, s)),
            pl.BlockSpec((3, st), lambda b_, s: (0, s)),
            pl.BlockSpec((Co, 4), lambda b_, s: (0, 0)),
            pl.BlockSpec((Co, 1), lambda b_, s: (0, 0)),
        ],
        out_specs=pl.BlockSpec((None, Co, st), lambda b_, s: (b_, 0, s)),
        compiler_params=pltpu.CompilerParams(
            dimension_semantics=("parallel", "parallel")),
    )(x_flat, grid_flat, w, b.reshape(Co, 1))


def _pw_conv_kernel(x_ref, w_ref, b_ref, o_ref):
    # x_ref: (Ci, St), w_ref: (Co, Ci), b_ref: (Co, 1), o_ref: (Co, St)
    x = x_ref[...].astype(MATMUL_DTYPE)
    w = w_ref[...].astype(MATMUL_DTYPE)
    y = jnp.dot(w, x, preferred_element_type=jnp.float32)
    o_ref[...] = y + b_ref[...]


def pointwise_conv(x, w, b, st):
    """1x1x1 Conv3d on flattened, lane-padded spatial: (B, Ci, Sp) -> (B, Co, Sp)."""
    B, Ci, Sp = x.shape
    Co = w.shape[0]
    n_s = Sp // st
    return pl.pallas_call(
        _pw_conv_kernel,
        out_shape=jax.ShapeDtypeStruct((B, Co, Sp), jnp.float32),
        grid=(B, n_s),
        in_specs=[
            pl.BlockSpec((None, Ci, st), lambda b_, s: (b_, 0, s)),
            pl.BlockSpec((Co, Ci), lambda b_, s: (0, 0)),
            pl.BlockSpec((Co, 1), lambda b_, s: (0, 0)),
        ],
        out_specs=pl.BlockSpec((None, Co, st), lambda b_, s: (b_, 0, s)),
        compiler_params=pltpu.CompilerParams(
            dimension_semantics=("parallel", "parallel")),
    )(x, w, b.reshape(Co, 1))


def _fno_mix_kernel(x_ref, x1_ref, w_ref, s_ref, o_ref):
    # x/x1: (C, St), w: (C, C), s: (C, 1), o: (C, St)
    x = x_ref[...].astype(MATMUL_DTYPE)
    w = w_ref[...].astype(MATMUL_DTYPE)
    y = jnp.dot(w, x, preferred_element_type=jnp.float32)
    y = y + s_ref[...]                 # conv bias + theta/time embedding shift
    o_ref[...] = gelu_exact(x1_ref[...] + y)


def fused_mlp_add_gelu(x, x1, w, shift, st):
    """gelu(x1 + (W @ x + shift)) per batch element, S-tiled & lane-dense."""
    B, C, Sp = x.shape
    n_s = Sp // st
    return pl.pallas_call(
        _fno_mix_kernel,
        out_shape=jax.ShapeDtypeStruct((B, C, Sp), jnp.float32),
        grid=(B, n_s),
        in_specs=[
            pl.BlockSpec((None, C, st), lambda b_, s: (b_, 0, s)),
            pl.BlockSpec((None, C, st), lambda b_, s: (b_, 0, s)),
            pl.BlockSpec((C, C), lambda b_, s: (0, 0)),
            pl.BlockSpec((None, C, 1), lambda b_, s: (b_, 0, 0)),
        ],
        out_specs=pl.BlockSpec((None, C, st), lambda b_, s: (b_, 0, s)),
        compiler_params=pltpu.CompilerParams(
            dimension_semantics=("parallel", "parallel")),
    )(x, x1, w, shift.reshape(B, C, 1))


def _spectral_mul_kernel(xr_ref, xi_ref, wr_ref, wsub_ref, wadd_ref,
                         or_ref, oi_ref):
    # Karatsuba 3-multiply complex channel mixing, accumulated over Ci with an
    # unrolled loop: only three (Co, Mt) accumulators stay live (no (Ci,Co,Mt)
    # broadcast temporaries), and multiplies drop 4 -> 3 per input channel.
    # xr/xi: (Ci, Mt); wr/wsub/wadd: (Ci, Co, Mt); outputs: (Co, Mt)
    ci = xr_ref.shape[0]

    def body(i, carry):
        k1, k2, k3 = carry
        xr_i = xr_ref[pl.ds(i, 1), :]          # (1, Mt)
        xi_i = xi_ref[pl.ds(i, 1), :]
        k1 = k1 + wr_ref[i] * (xr_i + xi_i)    # wr * (xr + xi)
        k2 = k2 + wsub_ref[i] * xr_i           # (wi - wr) * xr
        k3 = k3 + wadd_ref[i] * xi_i           # (wr + wi) * xi
        return k1, k2, k3

    zero = jnp.zeros(or_ref.shape, jnp.float32)
    k1, k2, k3 = lax.fori_loop(0, ci, body, (zero, zero, zero), unroll=True)
    or_ref[...] = k1 - k3
    oi_ref[...] = k1 + k2


def spectral_mode_mul(xr, xi, wr, wsub, wadd, mt):
    """Complex einsum 'bixyz,ioxyz->boxyz' with the 4 Fourier corners folded
    into a single lane-dense 4*M axis (padded to a multiple of mt)."""
    B, Ci, Mp = xr.shape
    Co = wr.shape[1]
    n_m = Mp // mt
    return pl.pallas_call(
        _spectral_mul_kernel,
        out_shape=(
            jax.ShapeDtypeStruct((B, Co, Mp), jnp.float32),
            jax.ShapeDtypeStruct((B, Co, Mp), jnp.float32),
        ),
        # mode-tile outer / batch inner: the 3 weight tiles stay VMEM-resident
        # across all batch elements instead of being re-fetched per corner.
        grid=(n_m, B),
        in_specs=[
            pl.BlockSpec((None, Ci, mt), lambda m, b_: (b_, 0, m)),
            pl.BlockSpec((None, Ci, mt), lambda m, b_: (b_, 0, m)),
            pl.BlockSpec((Ci, Co, mt), lambda m, b_: (0, 0, m)),
            pl.BlockSpec((Ci, Co, mt), lambda m, b_: (0, 0, m)),
            pl.BlockSpec((Ci, Co, mt), lambda m, b_: (0, 0, m)),
        ],
        out_specs=(
            pl.BlockSpec((None, Co, mt), lambda m, b_: (b_, 0, m)),
            pl.BlockSpec((None, Co, mt), lambda m, b_: (b_, 0, m)),
        ),
        compiler_params=pltpu.CompilerParams(
            dimension_semantics=("parallel", "parallel")),
    )(xr, xi, wr, wsub, wadd)


# ------------------------------ model forward -------------------------------

def _grid_flat(D, H, W):
    gx = jnp.broadcast_to(jnp.linspace(0.0, 1.0, D).reshape(D, 1, 1), (D, H, W))
    gy = jnp.broadcast_to(jnp.linspace(0.0, 1.0, H).reshape(1, H, 1), (D, H, W))
    gz = jnp.broadcast_to(jnp.linspace(0.0, 1.0, W).reshape(1, 1, W), (D, H, W))
    return jnp.stack([gx, gy, gz], axis=0).reshape(3, D * H * W).astype(jnp.float32)


def fno_block(x, theta_e, t_e, p, m1, m2, m3):
    B, C, D, H, W = x.shape

    # ---- SpectralConv3d: rfftn -> Pallas corner-folded mode mixing -> irfftn ----
    # TODO(synk): FFT/IFFT have no Pallas equivalent; they stay in jnp.fft glue.
    x_ft = jnp.fft.rfftn(x, axes=(-3, -2, -1))
    Wf = x_ft.shape[-1]
    corners = jnp.stack([
        x_ft[:, :, :m1, :m2, :m3],
        x_ft[:, :, -m1:, :m2, :m3],
        x_ft[:, :, :m1, -m2:, :m3],
        x_ft[:, :, -m1:, -m2:, :m3],
    ], axis=2)                                             # (B, C, 4, m1, m2, m3)
    M = m1 * m2 * m3
    xc = corners.reshape(B, C, 4 * M)
    xr = jnp.real(xc).astype(jnp.float32)
    xi = jnp.imag(xc).astype(jnp.float32)

    mt = _spectral_mtile(C, C, 4 * M)
    Mp = p["spec_wr"].shape[-1]                            # padded to multiple of mt
    pad_m = Mp - 4 * M
    if pad_m:
        xr = jnp.pad(xr, ((0, 0), (0, 0), (0, pad_m)))
        xi = jnp.pad(xi, ((0, 0), (0, 0), (0, pad_m)))

    or_, oi_ = spectral_mode_mul(xr, xi, p["spec_wr"], p["spec_wsub"],
                                 p["spec_wadd"], mt)
    out_c = (or_[:, :, :4 * M] + 1j * oi_[:, :, :4 * M]).astype(jnp.complex64)
    out_c = out_c.reshape(B, C, 4, m1, m2, m3)
    out_ft = jnp.zeros((B, C, D, H, Wf), dtype=jnp.complex64)
    out_ft = out_ft.at[:, :, :m1, :m2, :m3].set(out_c[:, :, 0])
    out_ft = out_ft.at[:, :, -m1:, :m2, :m3].set(out_c[:, :, 1])
    out_ft = out_ft.at[:, :, :m1, -m2:, :m3].set(out_c[:, :, 2])
    out_ft = out_ft.at[:, :, -m1:, -m2:, :m3].set(out_c[:, :, 3])
    x1 = jnp.fft.irfftn(out_ft, s=(D, H, W), axes=(-3, -2, -1)).astype(jnp.float32)

    # ---- MLP_t_theta3d embedding shifts (tiny per-batch matmuls; jnp glue) ----
    theta_shift = linear(gelu_exact(linear(theta_e, p["te1_w"], p["te1_b"])),
                         p["te2_w"], p["te2_b"])           # (B, C)
    time_shift = linear(swish(linear(t_e, p["tm1_w"], p["tm1_b"])),
                        p["tm2_w"], p["tm2_b"])            # (B, C)
    shift = p["mlp1_b"][None, :] + theta_shift + time_shift  # (B, C)

    # ---- fused 1x1 conv + shift + residual add + gelu (Pallas, S-tiled) ----
    S = D * H * W
    st, Sp = _spatial_tile(S, C)
    xf = x.reshape(B, C, S)
    x1f = x1.reshape(B, C, S)
    if Sp != S:
        xf = jnp.pad(xf, ((0, 0), (0, 0), (0, Sp - S)))
        x1f = jnp.pad(x1f, ((0, 0), (0, 0), (0, Sp - S)))
    out = fused_mlp_add_gelu(xf, x1f, p["mlp1_w"], shift, st)
    return out[:, :, :S].reshape(B, C, D, H, W)


def fno3d_forward(x, theta, t, params, modes, width, padding=3):
    m1, m2, m3 = modes
    B = x.shape[0]
    D, H, W = x.shape[2], x.shape[3], x.shape[4]

    theta_e = params_embedding(theta, params["theta_emb"], gelu_exact)
    t_e = params_embedding(t, params["time_emb"], swish)

    # ---- fused grid-concat + lifting conv (no (B,4,S) HBM round trip) ----
    S0 = D * H * W
    st0, S0p = _spatial_tile(S0, width)
    x_flat = x.reshape(B, 1, S0)
    grid_flat = _grid_flat(D, H, W)                        # shared across batch
    if S0p != S0:
        x_flat = jnp.pad(x_flat, ((0, 0), (0, 0), (0, S0p - S0)))
        grid_flat = jnp.pad(grid_flat, ((0, 0), (0, S0p - S0)))
    x = lift_with_grid(x_flat, grid_flat, params["p_w"], params["p_b"], st0)
    x = x[:, :, :S0].reshape(B, width, D, H, W)

    x = jnp.pad(x, ((0, 0), (0, 0), (0, padding), (0, padding), (0, padding)))

    for blk in params["blocks"]:
        x = fno_block(x, theta_e, t_e, blk, m1, m2, m3)

    if padding:
        x = x[..., :-padding, :-padding, :-padding]
    Dp, Hp, Wp = x.shape[2], x.shape[3], x.shape[4]
    S2 = Dp * Hp * Wp
    st2, S2p = _spatial_tile(S2, width)
    xf = x.reshape(B, width, S2)
    if S2p != S2:
        xf = jnp.pad(xf, ((0, 0), (0, 0), (0, S2p - S2)))
    out = pointwise_conv(xf, params["q_w"], params["q_b"], st2)
    return out[:, :, :S2].reshape(B, 1, Dp, Hp, Wp)


# ------------------------------ parameter init ------------------------------

def _prep_spectral(wr4, wi4, mt):
    """(4, Ci, Co, M) re/im weights -> corner-folded, Karatsuba-prepped,
    lane-padded (Ci, Co, Mp) arrays: wr, (wi - wr), (wr + wi)."""
    Ci, Co = wr4.shape[1], wr4.shape[2]
    wr = jnp.transpose(wr4, (1, 2, 0, 3)).reshape(Ci, Co, -1)
    wi = jnp.transpose(wi4, (1, 2, 0, 3)).reshape(Ci, Co, -1)
    Mp = _round_up(wr.shape[-1], mt)
    pad = Mp - wr.shape[-1]
    if pad:
        wr = jnp.pad(wr, ((0, 0), (0, 0), (0, pad)))
        wi = jnp.pad(wi, ((0, 0), (0, 0), (0, pad)))
    return wr, wi - wr, wr + wi


def init_params(key, width, theta_channels, modes):
    m1, m2, m3 = modes
    M = m1 * m2 * m3
    theta_width = max(width, theta_channels) * 4
    twidth = width * 4
    keys = iter(jax.random.split(key, 256))

    def nrm(shape, scale=0.1):
        return scale * jax.random.normal(next(keys), shape, jnp.float32)

    def uni(shape, scale):
        return scale * jax.random.uniform(next(keys), shape, jnp.float32)

    mt = _spectral_mtile(width, width, 4 * M)

    params = {
        "theta_emb": dict(w1=nrm((theta_width, theta_channels)), b1=nrm((theta_width,)),
                          w2=nrm((theta_width, theta_width)), b2=nrm((theta_width,))),
        "time_emb": dict(w1=nrm((twidth, 1)), b1=nrm((twidth,)),
                         w2=nrm((twidth, twidth)), b2=nrm((twidth,))),
        "p_w": nrm((width, 4)), "p_b": nrm((width,)),
        "q_w": nrm((1, width)), "q_b": nrm((1,)),
    }
    spec_scale = 1.0 / (width * width)
    blocks = []
    for _ in range(4):
        wr4 = uni((4, width, width, M), spec_scale)       # (corner, in, out, modes)
        wi4 = uni((4, width, width, M), spec_scale)
        wr, wsub, wadd = _prep_spectral(wr4, wi4, mt)
        blocks.append(dict(
            spec_wr=wr, spec_wsub=wsub, spec_wadd=wadd,
            mlp1_w=nrm((width, width)), mlp1_b=nrm((width,)),
            tm1_w=nrm((width, twidth)), tm1_b=nrm((width,)),
            tm2_w=nrm((width, width)), tm2_b=nrm((width,)),
            te1_w=nrm((width, theta_width)), te1_b=nrm((width,)),
            te2_w=nrm((width, width)), te2_b=nrm((width,)),
        ))
    params["blocks"] = blocks
    return params


# ----------------------------------- main ------------------------------------

if __name__ == "__main__":
    key = jax.random.PRNGKey(0)
    B, D, H, W = 2, 8, 8, 8
    width = 8
    modes = (4, 4, 4)
    theta_channels = 2

    k1, k2, k3, k4 = jax.random.split(key, 4)
    x = jax.random.normal(k1, (B, 1, D, H, W), jnp.float32)
    theta = jax.random.normal(k2, (B, theta_channels), jnp.float32)
    t = jax.random.normal(k3, (B, 1), jnp.float32)
    params = init_params(k4, width, theta_channels, modes)

    fwd = jax.jit(lambda xx, th, tt: fno3d_forward(xx, th, tt, params, modes, width))
    out = fwd(x, theta, t)
    jax.block_until_ready(out)
    assert out.shape == (B, 1, D, H, W), out.shape
    assert out.dtype == jnp.float32
    print("KERNEL_OK")
</pallas_src>

<mosaic_0001>
module attributes {stable_mosaic.version = 11 : i64} {
  func.func @_lift_kernel(%arg0: i32, %arg1: i32, %arg2: memref<1x1x512xf32, #tpu.memory_space<vmem>>, %arg3: memref<3x512xf32, #tpu.memory_space<vmem>>, %arg4: memref<8x4xf32, #tpu.memory_space<vmem>>, %arg5: memref<8x1xf32, #tpu.memory_space<vmem>>, %arg6: memref<1x8x512xf32, #tpu.memory_space<vmem>>) attributes {dimension_semantics = [#tpu.dimension_semantics<parallel>, #tpu.dimension_semantics<parallel>], iteration_bounds = array<i64: 2, 1>, scalar_prefetch = 0 : i64, scratch_operands = 0 : i64, tpu.core_type = #tpu.core_type<tc>, window_params = [{transform_indices = @transform_0, window_bounds = array<i64: 1, 1, 512>}, {transform_indices = @transform_1, window_bounds = array<i64: 3, 512>}, {pipeline_mode = #tpu.pipeline_mode<synchronous>, transform_indices = @transform_2, window_bounds = array<i64: 8, 4>}, {pipeline_mode = #tpu.pipeline_mode<synchronous>, transform_indices = @transform_3, window_bounds = array<i64: 8, 1>}, {transform_indices = @transform_4, window_bounds = array<i64: 1, 8, 512>}]} {
    %c0 = arith.constant 0 : index
    %c0_0 = arith.constant 0 : index
    %0 = vector.load %arg4[%c0, %c0_0] : memref<8x4xf32, #tpu.memory_space<vmem>>, vector<8x4xf32>
    %1 = vector.extract_strided_slice %0 {offsets = [0, 0], sizes = [8, 1], strides = [1, 1]} : vector<8x4xf32> to vector<8x1xf32>
    %c0_1 = arith.constant 0 : index
    %c0_2 = arith.constant 0 : index
    %c0_3 = arith.constant 0 : index
    %2 = vector.load %arg2[%c0_1, %c0_2, %c0_3] : memref<1x1x512xf32, #tpu.memory_space<vmem>>, vector<1x1x512xf32>
    %3 = vector.shape_cast %2 : vector<1x1x512xf32> to vector<1x512xf32>
    %4 = vector.broadcast %1 : vector<8x1xf32> to vector<8x512xf32>
    %5 = vector.broadcast %3 : vector<1x512xf32> to vector<8x512xf32>
    %6 = arith.mulf %4, %5 : vector<8x512xf32>
    %7 = vector.extract_strided_slice %0 {offsets = [0, 1], sizes = [8, 1], strides = [1, 1]} : vector<8x4xf32> to vector<8x1xf32>
    %c0_4 = arith.constant 0 : index
    %c0_5 = arith.constant 0 : index
    %8 = vector.load %arg3[%c0_4, %c0_5] : memref<3x512xf32, #tpu.memory_space<vmem>>, vector<1x512xf32>
    %9 = vector.broadcast %7 : vector<8x1xf32> to vector<8x512xf32>
    %10 = vector.broadcast %8 : vector<1x512xf32> to vector<8x512xf32>
    %11 = arith.mulf %9, %10 : vector<8x512xf32>
    %12 = arith.addf %6, %11 : vector<8x512xf32>
    %13 = vector.extract_strided_slice %0 {offsets = [0, 2], sizes = [8, 1], strides = [1, 1]} : vector<8x4xf32> to vector<8x1xf32>
    %c1 = arith.constant 1 : index
    %c0_6 = arith.constant 0 : index
    %14 = vector.load %arg3[%c1, %c0_6] : memref<3x512xf32, #tpu.memory_space<vmem>>, vector<1x512xf32>
    %15 = vector.broadcast %13 : vector<8x1xf32> to vector<8x512xf32>
    %16 = vector.broadcast %14 : vector<1x512xf32> to vector<8x512xf32>
    %17 = arith.mulf %15, %16 : vector<8x512xf32>
    %18 = arith.addf %12, %17 : vector<8x512xf32>
    %19 = vector.extract_strided_slice %0 {offsets = [0, 3], sizes = [8, 1], strides = [1, 1]} : vector<8x4xf32> to vector<8x1xf32>
    %c2 = arith.constant 2 : index
    %c0_7 = arith.constant 0 : index
    %20 = vector.load %arg3[%c2, %c0_7] : memref<3x512xf32, #tpu.memory_space<vmem>>, vector<1x512xf32>
    %21 = vector.broadcast %19 : vector<8x1xf32> to vector<8x512xf32>
    %22 = vector.broadcast %20 : vector<1x512xf32> to vector<8x512xf32>
    %23 = arith.mulf %21, %22 : vector<8x512xf32>
    %24 = arith.addf %18, %23 : vector<8x512xf32>
    %c0_8 = arith.constant 0 : index
    %c0_9 = arith.constant 0 : index
    %25 = vector.load %arg5[%c0_8, %c0_9] : memref<8x1xf32, #tpu.memory_space<vmem>>, vector<8x1xf32>
    %26 = vector.broadcast %25 : vector<8x1xf32> to vector<8x512xf32>
    %27 = arith.addf %24, %26 : vector<8x512xf32>
    %c0_10 = arith.constant 0 : index
    %c0_11 = arith.constant 0 : index
    %c0_12 = arith.constant 0 : index
    %28 = vector.load %arg6[%c0_10, %c0_11, %c0_12] : memref<1x8x512xf32, #tpu.memory_space<vmem>>, vector<1x8x512xf32>
    %29 = vector.shape_cast %28 : vector<1x8x512xf32> to vector<8x512xf32>
    %30 = vector.shape_cast %27 : vector<8x512xf32> to vector<1x8x512xf32>
    tpu.vector_store %arg6[%c0_10, %c0_11, %c0_12], %30 {strides = array<i32>} : memref<1x8x512xf32, #tpu.memory_space<vmem>>, vector<1x8x512xf32>,
    return
  }
  func.func @transform_0(%arg0: i32, %arg1: i32) -> (i32, i32, i32) {
    %c0_i32 = arith.constant 0 : i32
    %c0_i32_0 = arith.constant 0 : i32
    return %arg0, %c0_i32, %arg1 : i32, i32, i32
  }
  func.func @transform_1(%arg0: i32, %arg1: i32) -> (i32, i32) {
    %c0_i32 = arith.constant 0 : i32
    %c0_i32_0 = arith.constant 0 : i32
    return %c0_i32, %arg1 : i32, i32
  }
  func.func @transform_2(%arg0: i32, %arg1: i32) -> (i32, i32) {
    %c0_i32 = arith.constant 0 : i32
    %c0_i32_0 = arith.constant 0 : i32
    %c0_i32_1 = arith.constant 0 : i32
    return %c0_i32, %c0_i32_0 : i32, i32
  }
  func.func @transform_3(%arg0: i32, %arg1: i32) -> (i32, i32) {
    %c0_i32 = arith.constant 0 : i32
    %c0_i32_0 = arith.constant 0 : i32
    %c0_i32_1 = arith.constant 0 : i32
    return %c0_i32, %c0_i32_0 : i32, i32
  }
  func.func @transform_4(%arg0: i32, %arg1: i32) -> (i32, i32, i32) {
    %c0_i32 = arith.constant 0 : i32
    %c0_i32_0 = arith.constant 0 : i32
    return %arg0, %c0_i32, %arg1 : i32, i32, i32
  }
}

module attributes {stable_mosaic.version = 11 : i64} {
  func.func @_spectral_mul_kernel(%arg0: i32, %arg1: i32, %arg2: memref<1x8x256xf32, #tpu.memory_space<vmem>>, %arg3: memref<1x8x256xf32, #tpu.memory_space<vmem>>, %arg4: memref<8x8x256xf32, #tpu.memory_space<vmem>>, %arg5: memref<8x8x256xf32, #tpu.memory_space<vmem>>, %arg6: memref<8x8x256xf32, #tpu.memory_space<vmem>>, %arg7: memref<1x8x256xf32, #tpu.memory_space<vmem>>, %arg8: memref<1x8x256xf32, #tpu.memory_space<vmem>>) attributes {dimension_semantics = [#tpu.dimension_semantics<parallel>, #tpu.dimension_semantics<parallel>], iteration_bounds = array<i64: 1, 2>, scalar_prefetch = 0 : i64, scratch_operands = 0 : i64, tpu.core_type = #tpu.core_type<tc>, window_params = [{transform_indices = @transform_0, window_bounds = array<i64: 1, 8, 256>}, {transform_indices = @transform_1, window_bounds = array<i64: 1, 8, 256>}, {transform_indices = @transform_2, window_bounds = array<i64: 8, 8, 256>}, {transform_indices = @transform_3, window_bounds = array<i64: 8, 8, 256>}, {transform_indices = @transform_4, window_bounds = array<i64: 8, 8, 256>}, {transform_indices = @transform_5, window_bounds = array<i64: 1, 8, 256>}, {transform_indices = @transform_6, window_bounds = array<i64: 1, 8, 256>}]} {
    %cst = arith.constant 0.000000e+00 : f32
    %0 = vector.broadcast %cst : f32 to vector<8x256xf32>
    %c0_i32 = arith.constant 0 : i32
    %c0 = arith.constant 0 : index
    %1 = arith.index_cast %c0_i32 : i32 to index
    %c0_0 = arith.constant 0 : index
    %2 = vector.load %arg2[%c0, %1, %c0_0] : memref<1x8x256xf32, #tpu.memory_space<vmem>>, vector<1x1x256xf32>
    %3 = vector.shape_cast %2 : vector<1x1x256xf32> to vector<1x256xf32>
    %c0_1 = arith.constant 0 : index
    %4 = arith.index_cast %c0_i32 : i32 to index
    %c0_2 = arith.constant 0 : index
    %5 = vector.load %arg3[%c0_1, %4, %c0_2] : memref<1x8x256xf32, #tpu.memory_space<vmem>>, vector<1x1x256xf32>
    %6 = vector.shape_cast %5 : vector<1x1x256xf32> to vector<1x256xf32>
    %7 = arith.index_cast %c0_i32 : i32 to index
    %c0_3 = arith.constant 0 : index
    %c0_4 = arith.constant 0 : index
    %8 = vector.load %arg4[%7, %c0_3, %c0_4] : memref<8x8x256xf32, #tpu.memory_space<vmem>>, vector<1x8x256xf32>
    %9 = vector.shape_cast %8 : vector<1x8x256xf32> to vector<8x256xf32>
    %10 = arith.addf %3, %6 : vector<1x256xf32>
    %11 = vector.broadcast %10 : vector<1x256xf32> to vector<8x256xf32>
    %12 = arith.mulf %9, %11 : vector<8x256xf32>
    %13 = arith.addf %0, %12 : vector<8x256xf32>
    %14 = arith.index_cast %c0_i32 : i32 to index
    %c0_5 = arith.constant 0 : index
    %c0_6 = arith.constant 0 : index
    %15 = vector.load %arg5[%14, %c0_5, %c0_6] : memref<8x8x256xf32, #tpu.memory_space<vmem>>, vector<1x8x256xf32>
    %16 = vector.shape_cast %15 : vector<1x8x256xf32> to vector<8x256xf32>
    %17 = vector.broadcast %3 : vector<1x256xf32> to vector<8x256xf32>
    %18 = arith.mulf %16, %17 : vector<8x256xf32>
    %19 = arith.addf %0, %18 : vector<8x256xf32>
    %20 = arith.index_cast %c0_i32 : i32 to index
    %c0_7 = arith.constant 0 : index
    %c0_8 = arith.constant 0 : index
    %21 = vector.load %arg6[%20, %c0_7, %c0_8] : memref<8x8x256xf32, #tpu.memory_space<vmem>>, vector<1x8x256xf32>
    %22 = vector.shape_cast %21 : vector<1x8x256xf32> to vector<8x256xf32>
    %23 = vector.broadcast %6 : vector<1x256xf32> to vector<8x256xf32>
    %24 = arith.mulf %22, %23 : vector<8x256xf32>
    %25 = arith.addf %0, %24 : vector<8x256xf32>
    %c1_i32 = arith.constant 1 : i32
    %c0_9 = arith.constant 0 : index
    %26 = arith.index_cast %c1_i32 : i32 to index
    %c0_10 = arith.constant 0 : index
    %27 = vector.load %arg2[%c0_9, %26, %c0_10] : memref<1x8x256xf32, #tpu.memory_space<vmem>>, vector<1x1x256xf32>
    %28 = vector.shape_cast %27 : vector<1x1x256xf32> to vector<1x256xf32>
    %c0_11 = arith.constant 0 : index
    %29 = arith.index_cast %c1_i32 : i32 to index
    %c0_12 = arith.constant 0 : index
    %30 = vector.load %arg3[%c0_11, %29, %c0_12] : memref<1x8x256xf32, #tpu.memory_space<vmem>>, vector<1x1x256xf32>
    %31 = vector.shape_cast %30 : vector<1x1x256xf32> to vector<1x256xf32>
    %32 = arith.index_cast %c1_i32 : i32 to index
    %c0_13 = arith.constant 0 : index
    %c0_14 = arith.constant 0 : index
    %33 = vector.load %arg4[%32, %c0_13, %c0_14] : memref<8x8x256xf32, #tpu.memory_space<vmem>>, vector<1x8x256xf32>
    %34 = vector.shape_cast %33 : vector<1x8x256xf32> to vector<8x256xf32>
    %35 = arith.addf %28, %31 : vector<1x256xf32>
    %36 = vector.broadcast %35 : vector<1x256xf32> to vector<8x256xf32>
    %37 = arith.mulf %34, %36 : vector<8x256xf32>
    %38 = arith.addf %13, %37 : vector<8x256xf32>
    %39 = arith.index_cast %c1_i32 : i32 to index
    %c0_15 = arith.constant 0 : index
    %c0_16 = arith.constant 0 : index
    %40 = vector.load %arg5[%39, %c0_15, %c0_16] : memref<8x8x256xf32, #tpu.memory_space<vmem>>, vector<1x8x256xf32>
    %41 = vector.shape_cast %40 : vector<1x8x256xf32> to vector<8x256xf32>
    %42 = vector.broadcast %28 : vector<1x256xf32> to vector<8x256xf32>
    %43 = arith.mulf %41, %42 : vector<8x256xf32>
    %44 = arith.addf %19, %43 : vector<8x256xf32>
    %45 = arith.index_cast %c1_i32 : i32 to index
    %c0_17 = arith.constant 0 : index
    %c0_18 = arith.constant 0 : index
    %46 = vector.load %arg6[%45, %c0_17, %c0_18] : memref<8x8x256xf32, #tpu.memory_space<vmem>>, vector<1x8x256xf32>
    %47 = vector.shape_cast %46 : vector<1x8x256xf32> to vector<8x256xf32>
    %48 = vector.broadcast %31 : vector<1x256xf32> to vector<8x256xf32>
    %49 = arith.mulf %47, %48 : vector<8x256xf32>
    %50 = arith.addf %25, %49 : vector<8x256xf32>
    %c2_i32 = arith.constant 2 : i32
    %c0_19 = arith.constant 0 : index
    %51 = arith.index_cast %c2_i32 : i32 to index
    %c0_20 = arith.constant 0 : index
    %52 = vector.load %arg2[%c0_19, %51, %c0_20] : memref<1x8x256xf32, #tpu.memory_space<vmem>>, vector<1x1x256xf32>
    %53 = vector.shape_cast %52 : vector<1x1x256xf32> to vector<1x256xf32>
    %c0_21 = arith.constant 0 : index
    %54 = arith.index_cast %c2_i32 : i32 to index
    %c0_22 = arith.constant 0 : index
    %55 = vector.load %arg3[%c0_21, %54, %c0_22] : memref<1x8x256xf32, #tpu.memory_space<vmem>>, vector<1x1x256xf32>
    %56 = vector.shape_cast %55 : vector<1x1x256xf32> to vector<1x256xf32>
    %57 = arith.index_cast %c2_i32 : i32 to index
    %c0_23 = arith.constant 0 : index
    %c0_24 = arith.constant 0 : index
    %58 = vector.load %arg4[%57, %c0_23, %c0_24] : memref<8x8x256xf32, #tpu.memory_space<vmem>>, vector<1x8x256xf32>
    %59 = vector.shape_cast %58 : vector<1x8x256xf32> to vector<8x256xf32>
    %60 = arith.addf %53, %56 : vector<1x256xf32>
    %61 = vector.broadcast %60 : vector<1x256xf32> to vector<8x256xf32>
    %62 = arith.mulf %59, %61 : vector<8x256xf32>
    %63 = arith.addf %38, %62 : vector<8x256xf32>
    %64 = arith.index_cast %c2_i32 : i32 to index
    %c0_25 = arith.constant 0 : index
    %c0_26 = arith.constant 0 : index
    %65 = vector.load %arg5[%64, %c0_25, %c0_26] : memref<8x8x256xf32, #tpu.memory_space<vmem>>, vector<1x8x256xf32>
    %66 = vector.shape_cast %65 : vector<1x8x256xf32> to vector<8x256xf32>
    %67 = vector.broadcast %53 : vector<1x256xf32> to vector<8x256xf32>
    %68 = arith.mulf %66, %67 : vector<8x256xf32>
    %69 = arith.addf %44, %68 : vector<8x256xf32>
    %70 = arith.index_cast %c2_i32 : i32 to index
    %c0_27 = arith.constant 0 : index
    %c0_28 = arith.constant 0 : index
    %71 = vector.load %arg6[%70, %c0_27, %c0_28] : memref<8x8x256xf32, #tpu.memory_space<vmem>>, vector<1x8x256xf32>
    %72 = vector.shape_cast %71 : vector<1x8x256xf32> to vector<8x256xf32>
    %73 = vector.broadcast %56 : vector<1x256xf32> to vector<8x256xf32>
    %74 = arith.mulf %72, %73 : vector<8x256xf32>
    %75 = arith.addf %50, %74 : vector<8x256xf32>
    %c3_i32 = arith.constant 3 : i32
    %c0_29 = arith.constant 0 : index
    %76 = arith.index_cast %c3_i32 : i32 to index
    %c0_30 = arith.constant 0 : index
    %77 = vector.load %arg2[%c0_29, %76, %c0_30] : memref<1x8x256xf32, #tpu.memory_space<vmem>>, vector<1x1x256xf32>
    %78 = vector.shape_cast %77 : vector<1x1x256xf32> to vector<1x256xf32>
    %c0_31 = arith.constant 0 : index
    %79 = arith.index_cast %c3_i32 : i32 to index
    %c0_32 = arith.constant 0 : index
    %80 = vector.load %arg3[%c0_31, %79, %c0_32] : memref<1x8x256xf32, #tpu.memory_space<vmem>>, vector<1x1x256xf32>
    %81 = vector.shape_cast %80 : vector<1x1x256xf32> to vector<1x256xf32>
    %82 = arith.index_cast %c3_i32 : i32 to index
    %c0_33 = arith.constant 0 : index
    %c0_34 = arith.constant 0 : index
    %83 = vector.load %arg4[%82, %c0_33, %c0_34] : memref<8x8x256xf32, #tpu.memory_space<vmem>>, vector<1x8x256xf32>
    %84 = vector.shape_cast %83 : vector<1x8x256xf32> to vector<8x256xf32>
    %85 = arith.addf %78, %81 : vector<1x256xf32>
    %86 = vector.broadcast %85 : vector<1x256xf32> to vector<8x256xf32>
    %87 = arith.mulf %84, %86 : vector<8x256xf32>
    %88 = arith.addf %63, %87 : vector<8x256xf32>
    %89 = arith.index_cast %c3_i32 : i32 to index
    %c0_35 = arith.constant 0 : index
    %c0_36 = arith.constant 0 : index
    %90 = vector.load %arg5[%89, %c0_35, %c0_36] : memref<8x8x256xf32, #tpu.memory_space<vmem>>, vector<1x8x256xf32>
    %91 = vector.shape_cast %90 : vector<1x8x256xf32> to vector<8x256xf32>
    %92 = vector.broadcast %78 : vector<1x256xf32> to vector<8x256xf32>
    %93 = arith.mulf %91, %92 : vector<8x256xf32>
    %94 = arith.addf %69, %93 : vector<8x256xf32>
    %95 = arith.index_cast %c3_i32 : i32 to index
    %c0_37 = arith.constant 0 : index
    %c0_38 = arith.constant 0 : index
    %96 = vector.load %arg6[%95, %c0_37, %c0_38] : memref<8x8x256xf32, #tpu.memory_space<vmem>>, vector<1x8x256xf32>
    %97 = vector.shape_cast %96 : vector<1x8x256xf32> to vector<8x256xf32>
    %98 = vector.broadcast %81 : vector<1x256xf32> to vector<8x256xf32>
    %99 = arith.mulf %97, %98 : vector<8x256xf32>
    %100 = arith.addf %75, %99 : vector<8x256xf32>
    %c4_i32 = arith.constant 4 : i32
    %c0_39 = arith.constant 0 : index
    %101 = arith.index_cast %c4_i32 : i32 to index
    %c0_40 = arith.constant 0 : index
    %102 = vector.load %arg2[%c0_39, %101, %c0_40] : memref<1x8x256xf32, #tpu.memory_space<vmem>>, vector<1x1x256xf32>
    %103 = vector.shape_cast %102 : vector<1x1x256xf32> to vector<1x256xf32>
    %c0_41 = arith.constant 0 : index
    %104 = arith.index_cast %c4_i32 : i32 to index
    %c0_42 = arith.constant 0 : index
    %105 = vector.load %arg3[%c0_41, %104, %c0_42] : memref<1x8x256xf32, #tpu.memory_space<vmem>>, vector<1x1x256xf32>
    %106 = vector.shape_cast %105 : vector<1x1x256xf32> to vector<1x256xf32>
    %107 = arith.index_cast %c4_i32 : i32 to index
    %c0_43 = arith.constant 0 : index
    %c0_44 = arith.constant 0 : index
    %108 = vector.load %arg4[%107, %c0_43, %c0_44] : memref<8x8x256xf32, #tpu.memory_space<vmem>>, vector<1x8x256xf32>
    %109 = vector.shape_cast %108 : vector<1x8x256xf32> to vector<8x256xf32>
    %110 = arith.addf %103, %106 : vector<1x256xf32>
    %111 = vector.broadcast %110 : vector<1x256xf32> to vector<8x256xf32>
    %112 = arith.mulf %109, %111 : vector<8x256xf32>
    %113 = arith.addf %88, %112 : vector<8x256xf32>
    %114 = arith.index_cast %c4_i32 : i32 to index
    %c0_45 = arith.constant 0 : index
    %c0_46 = arith.constant 0 : index
    %115 = vector.load %arg5[%114, %c0_45, %c0_46] : memref<8x8x256xf32, #tpu.memory_space<vmem>>, vector<1x8x256xf32>
    %116 = vector.shape_cast %115 : vector<1x8x256xf32> to vector<8x256xf32>
    %117 = vector.broadcast %103 : vector<1x256xf32> to vector<8x256xf32>
    %118 = arith.mulf %116, %117 : vector<8x256xf32>
    %119 = arith.addf %94, %118 : vector<8x256xf32>
    %120 = arith.index_cast %c4_i32 : i32 to index
    %c0_47 = arith.constant 0 : index
    %c0_48 = arith.constant 0 : index
    %121 = vector.load %arg6[%120, %c0_47, %c0_48] : memref<8x8x256xf32, #tpu.memory_space<vmem>>, vector<1x8x256xf32>
    %122 = vector.shape_cast %121 : vector<1x8x256xf32> to vector<8x256xf32>
    %123 = vector.broadcast %106 : vector<1x256xf32> to vector<8x256xf32>
    %124 = arith.mulf %122, %123 : vector<8x256xf32>
    %125 = arith.addf %100, %124 : vector<8x256xf32>
    %c5_i32 = arith.constant 5 : i32
    %c0_49 = arith.constant 0 : index
    %126 = arith.index_cast %c5_i32 : i32 to index
    %c0_50 = arith.constant 0 : index
    %127 = vector.load %arg2[%c0_49, %126, %c0_50] : memref<1x8x256xf32, #tpu.memory_space<vmem>>, vector<1x1x256xf32>
    %128 = vector.shape_cast %127 : vector<1x1x256xf32> to vector<1x256xf32>
    %c0_51 = arith.constant 0 : index
    %129 = arith.index_cast %c5_i32 : i32 to index
    %c0_52 = arith.constant 0 : index
    %130 = vector.load %arg3[%c0_51, %129, %c0_52] : memref<1x8x256xf32, #tpu.memory_space<vmem>>, vector<1x1x256xf32>
    %131 = vector.shape_cast %130 : vector<1x1x256xf32> to vector<1x256xf32>
    %132 = arith.index_cast %c5_i32 : i32 to index
    %c0_53 = arith.constant 0 : index
    %c0_54 = arith.constant 0 : index
    %133 = vector.load %arg4[%132, %c0_53, %c0_54] : memref<8x8x256xf32, #tpu.memory_space<vmem>>, vector<1x8x256xf32>
    %134 = vector.shape_cast %133 : vector<1x8x256xf32> to vector<8x256xf32>
    %135 = arith.addf %128, %131 : vector<1x256xf32>
    %136 = vector.broadcast %135 : vector<1x256xf32> to vector<8x256xf32>
    %137 = arith.mulf %134, %136 : vector<8x256xf32>
    %138 = arith.addf %113, %137 : vector<8x256xf32>
    %139 = arith.index_cast %c5_i32 : i32 to index
    %c0_55 = arith.constant 0 : index
    %c0_56 = arith.constant 0 : index
    %140 = vector.load %arg5[%139, %c0_55, %c0_56] : memref<8x8x256xf32, #tpu.memory_space<vmem>>, vector<1x8x256xf32>
    %141 = vector.shape_cast %140 : vector<1x8x256xf32> to vector<8x256xf32>
    %142 = vector.broadcast %128 : vector<1x256xf32> to vector<8x256xf32>
    %143 = arith.mulf %141, %142 : vector<8x256xf32>
    %144 = arith.addf %119, %143 : vector<8x256xf32>
    %145 = arith.index_cast %c5_i32 : i32 to index
    %c0_57 = arith.constant 0 : index
    %c0_58 = arith.constant 0 : index
    %146 = vector.load %arg6[%145, %c0_57, %c0_58] : memref<8x8x256xf32, #tpu.memory_space<vmem>>, vector<1x8x256xf32>
    %147 = vector.shape_cast %146 : vector<1x8x256xf32> to vector<8x256xf32>
    %148 = vector.broadcast %131 : vector<1x256xf32> to vector<8x256xf32>
    %149 = arith.mulf %147, %148 : vector<8x256xf32>
    %150 = arith.addf %125, %149 : vector<8x256xf32>
    %c6_i32 = arith.constant 6 : i32
    %c0_59 = arith.constant 0 : index
    %151 = arith.index_cast %c6_i32 : i32 to index
    %c0_60 = arith.constant 0 : index
    %152 = vector.load %arg2[%c0_59, %151, %c0_60] : memref<1x8x256xf32, #tpu.memory_space<vmem>>, vector<1x1x256xf32>
    %153 = vector.shape_cast %152 : vector<1x1x256xf32> to vector<1x256xf32>
    %c0_61 = arith.constant 0 : index
    %154 = arith.index_cast %c6_i32 : i32 to index
    %c0_62 = arith.constant 0 : index
    %155 = vector.load %arg3[%c0_61, %154, %c0_62] : memref<1x8x256xf32, #tpu.memory_space<vmem>>, vector<1x1x256xf32>
    %156 = vector.shape_cast %155 : vector<1x1x256xf32> to vector<1x256xf32>
    %157 = arith.index_cast %c6_i32 : i32 to index
    %c0_63 = arith.constant 0 : index
    %c0_64 = arith.constant 0 : index
    %158 = vector.load %arg4[%157, %c0_63, %c0_64] : memref<8x8x256xf32, #tpu.memory_space<vmem>>, vector<1x8x256xf32>
    %159 = vector.shape_cast %158 : vector<1x8x256xf32> to vector<8x256xf32>
    %160 = arith.addf %153, %156 : vector<1x256xf32>
    %161 = vector.broadcast %160 : vector<1x256xf32> to vector<8x256xf32>
    %162 = arith.mulf %159, %161 : vector<8x256xf32>
    %163 = arith.addf %138, %162 : vector<8x256xf32>
    %164 = arith.index_cast %c6_i32 : i32 to index
    %c0_65 = arith.constant 0 : index
    %c0_66 = arith.constant 0 : index
    %165 = vector.load %arg5[%164, %c0_65, %c0_66] : memref<8x8x256xf32, #tpu.memory_space<vmem>>, vector<1x8x256xf32>
    %166 = vector.shape_cast %165 : vector<1x8x256xf32> to vector<8x256xf32>
    %167 = vector.broadcast %153 : vector<1x256xf32> to vector<8x256xf32>
    %168 = arith.mulf %166, %167 : vector<8x256xf32>
    %169 = arith.addf %144, %168 : vector<8x256xf32>
    %170 = arith.index_cast %c6_i32 : i32 to index
    %c0_67 = arith.constant 0 : index
    %c0_68 = arith.constant 0 : index
    %171 = vector.load %arg6[%170, %c0_67, %c0_68] : memref<8x8x256xf32, #tpu.memory_space<vmem>>, vector<1x8x256xf32>
    %172 = vector.shape_cast %171 : vector<1x8x256xf32> to vector<8x256xf32>
    %173 = vector.broadcast %156 : vector<1x256xf32> to vector<8x256xf32>
    %174 = arith.mulf %172, %173 : vector<8x256xf32>
    %175 = arith.addf %150, %174 : vector<8x256xf32>
    %c7_i32 = arith.constant 7 : i32
    %c0_69 = arith.constant 0 : index
    %176 = arith.index_cast %c7_i32 : i32 to index
    %c0_70 = arith.constant 0 : index
    %177 = vector.load %arg2[%c0_69, %176, %c0_70] : memref<1x8x256xf32, #tpu.memory_space<vmem>>, vector<1x1x256xf32>
    %178 = vector.shape_cast %177 : vector<1x1x256xf32> to vector<1x256xf32>
    %c0_71 = arith.constant 0 : index
    %179 = arith.index_cast %c7_i32 : i32 to index
    %c0_72 = arith.constant 0 : index
    %180 = vector.load %arg3[%c0_71, %179, %c0_72] : memref<1x8x256xf32, #tpu.memory_space<vmem>>, vector<1x1x256xf32>
    %181 = vector.shape_cast %180 : vector<1x1x256xf32> to vector<1x256xf32>
    %182 = arith.index_cast %c7_i32 : i32 to index
    %c0_73 = arith.constant 0 : index
    %c0_74 = arith.constant 0 : index
    %183 = vector.load %arg4[%182, %c0_73, %c0_74] : memref<8x8x256xf32, #tpu.memory_space<vmem>>, vector<1x8x256xf32>
    %184 = vector.shape_cast %183 : vector<1x8x256xf32> to vector<8x256xf32>
    %185 = arith.addf %178, %181 : vector<1x256xf32>
    %186 = vector.broadcast %185 : vector<1x256xf32> to vector<8x256xf32>
    %187 = arith.mulf %184, %186 : vector<8x256xf32>
    %188 = arith.addf %163, %187 : vector<8x256xf32>
    %189 = arith.index_cast %c7_i32 : i32 to index
    %c0_75 = arith.constant 0 : index
    %c0_76 = arith.constant 0 : index
    %190 = vector.load %arg5[%189, %c0_75, %c0_76] : memref<8x8x256xf32, #tpu.memory_space<vmem>>, vector<1x8x256xf32>
    %191 = vector.shape_cast %190 : vector<1x8x256xf32> to vector<8x256xf32>
    %192 = vector.broadcast %178 : vector<1x256xf32> to vector<8x256xf32>
    %193 = arith.mulf %191, %192 : vector<8x256xf32>
    %194 = arith.addf %169, %193 : vector<8x256xf32>
    %195 = arith.index_cast %c7_i32 : i32 to index
    %c0_77 = arith.constant 0 : index
    %c0_78 = arith.constant 0 : index
    %196 = vector.load %arg6[%195, %c0_77, %c0_78] : memref<8x8x256xf32, #tpu.memory_space<vmem>>, vector<1x8x256xf32>
    %197 = vector.shape_cast %196 : vector<1x8x256xf32> to vector<8x256xf32>
    %198 = vector.broadcast %181 : vector<1x256xf32> to vector<8x256xf32>
    %199 = arith.mulf %197, %198 : vector<8x256xf32>
    %200 = arith.addf %175, %199 : vector<8x256xf32>
    %c8_i32 = arith.constant 8 : i32
    %201 = arith.subf %188, %200 : vector<8x256xf32>
    %c0_79 = arith.constant 0 : index
    %c0_80 = arith.constant 0 : index
    %c0_81 = arith.constant 0 : index
    %202 = vector.load %arg7[%c0_79, %c0_80, %c0_81] : memref<1x8x256xf32, #tpu.memory_space<vmem>>, vector<1x8x256xf32>
    %203 = vector.shape_cast %202 : vector<1x8x256xf32> to vector<8x256xf32>
    %204 = vector.shape_cast %201 : vector<8x256xf32> to vector<1x8x256xf32>
    tpu.vector_store %arg7[%c0_79, %c0_80, %c0_81], %204 {strides = array<i32>} : memref<1x8x256xf32, #tpu.memory_space<vmem>>, vector<1x8x256xf32>,
    %205 = arith.addf %188, %194 : vector<8x256xf32>
    %c0_82 = arith.constant 0 : index
    %c0_83 = arith.constant 0 : index
    %c0_84 = arith.constant 0 : index
    %206 = vector.load %arg8[%c0_82, %c0_83, %c0_84] : memref<1x8x256xf32, #tpu.memory_space<vmem>>, vector<1x8x256xf32>
    %207 = vector.shape_cast %206 : vector<1x8x256xf32> to vector<8x256xf32>
    %208 = vector.shape_cast %205 : vector<8x256xf32> to vector<1x8x256xf32>
    tpu.vector_store %arg8[%c0_82, %c0_83, %c0_84], %208 {strides = array<i32>} : memref<1x8x256xf32, #tpu.memory_space<vmem>>, vector<1x8x256xf32>,
    return
  }
  func.func @transform_0(%arg0: i32, %arg1: i32) -> (i32, i32, i32) {
    %c0_i32 = arith.constant 0 : i32
    %c0_i32_0 = arith.constant 0 : i32
    return %arg1, %c0_i32, %arg0 : i32, i32, i32
  }
  func.func @transform_1(%arg0: i32, %arg1: i32) -> (i32, i32, i32) {
    %c0_i32 = arith.constant 0 : i32
    %c0_i32_0 = arith.constant 0 : i32
    return %arg1, %c0_i32, %arg0 : i32, i32, i32
  }
  func.func @transform_2(%arg0: i32, %arg1: i32) -> (i32, i32, i32) {
    %c0_i32 = arith.constant 0 : i32
    %c0_i32_0 = arith.constant 0 : i32
    %c0_i32_1 = arith.constant 0 : i32
    return %c0_i32, %c0_i32_0, %arg0 : i32, i32, i32
  }
  func.func @transform_3(%arg0: i32, %arg1: i32) -> (i32, i32, i32) {
    %c0_i32 = arith.constant 0 : i32
    %c0_i32_0 = arith.constant 0 : i32
    %c0_i32_1 = arith.constant 0 : i32
    return %c0_i32, %c0_i32_0, %arg0 : i32, i32, i32
  }
  func.func @transform_4(%arg0: i32, %arg1: i32) -> (i32, i32, i32) {
    %c0_i32 = arith.constant 0 : i32
    %c0_i32_0 = arith.constant 0 : i32
    %c0_i32_1 = arith.constant 0 : i32
    return %c0_i32, %c0_i32_0, %arg0 : i32, i32, i32
  }
  func.func @transform_5(%arg0: i32, %arg1: i32) -> (i32, i32, i32) {
    %c0_i32 = arith.constant 0 : i32
    %c0_i32_0 = arith.constant 0 : i32
    return %arg1, %c0_i32, %arg0 : i32, i32, i32
  }
  func.func @transform_6(%arg0: i32, %arg1: i32) -> (i32, i32, i32) {
    %c0_i32 = arith.constant 0 : i32
    %c0_i32_0 = arith.constant 0 : i32
    return %arg1, %c0_i32, %arg0 : i32, i32, i32
  }
}

module attributes {stable_mosaic.version = 11 : i64} {
  func.func @_fno_mix_kernel(%arg0: i32, %arg1: i32, %arg2: memref<1x8x1408xf32, #tpu.memory_space<vmem>>, %arg3: memref<1x8x1408xf32, #tpu.memory_space<vmem>>, %arg4: memref<8x8xf32, #tpu.memory_space<vmem>>, %arg5: memref<1x8x1xf32, #tpu.memory_space<vmem>>, %arg6: memref<1x8x1408xf32, #tpu.memory_space<vmem>>) attributes {dimension_semantics = [#tpu.dimension_semantics<parallel>, #tpu.dimension_semantics<parallel>], iteration_bounds = array<i64: 2, 1>, scalar_prefetch = 0 : i64, scratch_operands = 0 : i64, tpu.core_type = #tpu.core_type<tc>, window_params = [{transform_indices = @transform_0, window_bounds = array<i64: 1, 8, 1408>}, {transform_indices = @transform_1, window_bounds = array<i64: 1, 8, 1408>}, {pipeline_mode = #tpu.pipeline_mode<synchronous>, transform_indices = @transform_2, window_bounds = array<i64: 8, 8>}, {transform_indices = @transform_3, window_bounds = array<i64: 1, 8, 1>}, {transform_indices = @transform_4, window_bounds = array<i64: 1, 8, 1408>}]} {
    %c0 = arith.constant 0 : index
    %c0_0 = arith.constant 0 : index
    %c0_1 = arith.constant 0 : index
    %0 = vector.load %arg2[%c0, %c0_0, %c0_1] : memref<1x8x1408xf32, #tpu.memory_space<vmem>>, vector<1x8x1408xf32>
    %1 = vector.shape_cast %0 : vector<1x8x1408xf32> to vector<8x1408xf32>
    %c0_2 = arith.constant 0 : index
    %c0_3 = arith.constant 0 : index
    %2 = vector.load %arg4[%c0_2, %c0_3] : memref<8x8xf32, #tpu.memory_space<vmem>>, vector<8x8xf32>
    %cst = arith.constant dense<0.000000e+00> : vector<8x1408xf32>
    %3 = tpu.matmul %2, %1, %cst {dimension_numbers = #tpu.dot_dimension_numbers<[1], [0], [0], [1], [0, 0, 1, 1], [], []>} : vector<8x8xf32>, vector<8x1408xf32>, vector<8x1408xf32> -> vector<8x1408xf32>
    %c0_4 = arith.constant 0 : index
    %c0_5 = arith.constant 0 : index
    %c0_6 = arith.constant 0 : index
    %4 = vector.load %arg5[%c0_4, %c0_5, %c0_6] : memref<1x8x1xf32, #tpu.memory_space<vmem>>, vector<1x8x1xf32>
    %5 = vector.shape_cast %4 : vector<1x8x1xf32> to vector<8x1xf32>
    %6 = vector.broadcast %5 : vector<8x1xf32> to vector<8x1408xf32>
    %7 = arith.addf %3, %6 : vector<8x1408xf32>
    %c0_7 = arith.constant 0 : index
    %c0_8 = arith.constant 0 : index
    %c0_9 = arith.constant 0 : index
    %8 = vector.load %arg3[%c0_7, %c0_8, %c0_9] : memref<1x8x1408xf32, #tpu.memory_space<vmem>>, vector<1x8x1408xf32>
    %9 = vector.shape_cast %8 : vector<1x8x1408xf32> to vector<8x1408xf32>
    %10 = arith.addf %9, %7 : vector<8x1408xf32>
    %cst_10 = arith.constant 5.000000e-01 : f32
    %11 = vector.broadcast %cst_10 : f32 to vector<8x1408xf32>
    %12 = arith.mulf %11, %10 : vector<8x1408xf32>
    %cst_11 = arith.constant 2.000000e+00 : f32
    %13 = math.sqrt %cst_11 : f32
    %14 = vector.broadcast %13 : f32 to vector<8x1408xf32>
    %15 = arith.divf %10, %14 : vector<8x1408xf32>
    %16 = math.erf %15 : vector<8x1408xf32>
    %cst_12 = arith.constant 1.000000e+00 : f32
    %17 = vector.broadcast %cst_12 : f32 to vector<8x1408xf32>
    %18 = arith.addf %17, %16 : vector<8x1408xf32>
    %19 = arith.mulf %12, %18 : vector<8x1408xf32>
    %c0_13 = arith.constant 0 : index
    %c0_14 = arith.constant 0 : index
    %c0_15 = arith.constant 0 : index
    %20 = vector.load %arg6[%c0_13, %c0_14, %c0_15] : memref<1x8x1408xf32, #tpu.memory_space<vmem>>, vector<1x8x1408xf32>
    %21 = vector.shape_cast %20 : vector<1x8x1408xf32> to vector<8x1408xf32>
    %22 = vector.shape_cast %19 : vector<8x1408xf32> to vector<1x8x1408xf32>
    tpu.vector_store %arg6[%c0_13, %c0_14, %c0_15], %22 {strides = array<i32>} : memref<1x8x1408xf32, #tpu.memory_space<vmem>>, vector<1x8x1408xf32>,
    return
  }
  func.func @transform_0(%arg0: i32, %arg1: i32) -> (i32, i32, i32) {
    %c0_i32 = arith.constant 0 : i32
    %c0_i32_0 = arith.constant 0 : i32
    return %arg0, %c0_i32, %arg1 : i32, i32, i32
  }
  func.func @transform_1(%arg0: i32, %arg1: i32) -> (i32, i32, i32) {
    %c0_i32 = arith.constant 0 : i32
    %c0_i32_0 = arith.constant 0 : i32
    return %arg0, %c0_i32, %arg1 : i32, i32, i32
  }
  func.func @transform_2(%arg0: i32, %arg1: i32) -> (i32, i32) {
    %c0_i32 = arith.constant 0 : i32
    %c0_i32_0 = arith.constant 0 : i32
    %c0_i32_1 = arith.constant 0 : i32
    return %c0_i32, %c0_i32_0 : i32, i32
  }
  func.func @transform_3(%arg0: i32, %arg1: i32) -> (i32, i32, i32) {
    %c0_i32 = arith.constant 0 : i32
    %c0_i32_0 = arith.constant 0 : i32
    %c0_i32_1 = arith.constant 0 : i32
    return %arg0, %c0_i32, %c0_i32_0 : i32, i32, i32
  }
  func.func @transform_4(%arg0: i32, %arg1: i32) -> (i32, i32, i32) {
    %c0_i32 = arith.constant 0 : i32
    %c0_i32_0 = arith.constant 0 : i32
    return %arg0, %c0_i32, %arg1 : i32, i32, i32
  }
}

module attributes {stable_mosaic.version = 11 : i64} {
  func.func @_pw_conv_kernel(%arg0: i32, %arg1: i32, %arg2: memref<1x8x512xf32, #tpu.memory_space<vmem>>, %arg3: memref<1x8xf32, #tpu.memory_space<vmem>>, %arg4: memref<1x1xf32, #tpu.memory_space<vmem>>, %arg5: memref<1x1x512xf32, #tpu.memory_space<vmem>>) attributes {dimension_semantics = [#tpu.dimension_semantics<parallel>, #tpu.dimension_semantics<parallel>], iteration_bounds = array<i64: 2, 1>, scalar_prefetch = 0 : i64, scratch_operands = 0 : i64, tpu.core_type = #tpu.core_type<tc>, window_params = [{transform_indices = @transform_0, window_bounds = array<i64: 1, 8, 512>}, {pipeline_mode = #tpu.pipeline_mode<synchronous>, transform_indices = @transform_1, window_bounds = array<i64: 1, 8>}, {pipeline_mode = #tpu.pipeline_mode<synchronous>, transform_indices = @transform_2, window_bounds = array<i64: 1, 1>}, {transform_indices = @transform_3, window_bounds = array<i64: 1, 1, 512>}]} {
    %c0 = arith.constant 0 : index
    %c0_0 = arith.constant 0 : index
    %c0_1 = arith.constant 0 : index
    %0 = vector.load %arg2[%c0, %c0_0, %c0_1] : memref<1x8x512xf32, #tpu.memory_space<vmem>>, vector<1x8x512xf32>
    %1 = vector.shape_cast %0 : vector<1x8x512xf32> to vector<8x512xf32>
    %c0_2 = arith.constant 0 : index
    %c0_3 = arith.constant 0 : index
    %2 = vector.load %arg3[%c0_2, %c0_3] : memref<1x8xf32, #tpu.memory_space<vmem>>, vector<1x8xf32>
    %cst = arith.constant dense<0.000000e+00> : vector<1x512xf32>
    %3 = tpu.matmul %2, %1, %cst {dimension_numbers = #tpu.dot_dimension_numbers<[1], [0], [0], [1], [0, 0, 1, 1], [], []>} : vector<1x8xf32>, vector<8x512xf32>, vector<1x512xf32> -> vector<1x512xf32>
    %c0_4 = arith.constant 0 : index
    %c0_5 = arith.constant 0 : index
    %4 = vector.load %arg4[%c0_4, %c0_5] : memref<1x1xf32, #tpu.memory_space<vmem>>, vector<1x1xf32>
    %5 = vector.broadcast %4 : vector<1x1xf32> to vector<1x512xf32>
    %6 = arith.addf %3, %5 : vector<1x512xf32>
    %c0_6 = arith.constant 0 : index
    %c0_7 = arith.constant 0 : index
    %c0_8 = arith.constant 0 : index
    %7 = vector.load %arg5[%c0_6, %c0_7, %c0_8] : memref<1x1x512xf32, #tpu.memory_space<vmem>>, vector<1x1x512xf32>
    %8 = vector.shape_cast %7 : vector<1x1x512xf32> to vector<1x512xf32>
    %9 = vector.shape_cast %6 : vector<1x512xf32> to vector<1x1x512xf32>
    tpu.vector_store %arg5[%c0_6, %c0_7, %c0_8], %9 {strides = array<i32>} : memref<1x1x512xf32, #tpu.memory_space<vmem>>, vector<1x1x512xf32>,
    return
  }
  func.func @transform_0(%arg0: i32, %arg1: i32) -> (i32, i32, i32) {
    %c0_i32 = arith.constant 0 : i32
    %c0_i32_0 = arith.constant 0 : i32
    return %arg0, %c0_i32, %arg1 : i32, i32, i32
  }
  func.func @transform_1(%arg0: i32, %arg1: i32) -> (i32, i32) {
    %c0_i32 = arith.constant 0 : i32
    %c0_i32_0 = arith.constant 0 : i32
    %c0_i32_1 = arith.constant 0 : i32
    return %c0_i32, %c0_i32_0 : i32, i32
  }
  func.func @transform_2(%arg0: i32, %arg1: i32) -> (i32, i32) {
    %c0_i32 = arith.constant 0 : i32
    %c0_i32_0 = arith.constant 0 : i32
    %c0_i32_1 = arith.constant 0 : i32
    return %c0_i32, %c0_i32_0 : i32, i32
  }
  func.func @transform_3(%arg0: i32, %arg1: i32) -> (i32, i32, i32) {
    %c0_i32 = arith.constant 0 : i32
    %c0_i32_0 = arith.constant 0 : i32
    return %arg0, %c0_i32, %arg1 : i32, i32, i32
  }
}

</mosaic_0001>

<llo_original>
// kernel: _lambda_.10
$region0: #{_lambda_.10}
  #allocation0 [shape = 'u32[]', space=smem, size = 0x4, offset = 0x4, fixed_abs, tag = 'smem constant byte address 0x4 - core index']
  #allocation1 [shape = 'u32[144,128]{1,0:T(1,128)}', space=vmem, size = 0x12000, scoped, tag = 'internal scratch']
  %s0 = inlined_call_operand.vmem [shape: f32[2,1,512], index: 0, kind: input, shape index: {}]
  %s1 = inlined_call_operand.vmem [shape: f32[3,512], index: 1, kind: input, shape index: {}]
  %s2 = inlined_call_operand.hbm [shape: f32[8,4], index: 2, kind: input, shape index: {}]
  %s3 = inlined_call_operand.hbm [shape: f32[8,1], index: 3, kind: input, shape index: {}]
  %s4 = inlined_call_operand.vmem [shape: f32[2,8,512], index: 4, kind: output, shape index: {}]
  %s5 = sld [smem:[#allocation0]]
  $region57: #{_lambda_.10} parent=0
    _
  %s7 = ssub.s32 1, %s5
  %s8 = scalar_select 0, %s7, %s5
  $region1: #{_lambda_.10} parent=0
    #allocation2 [shape = 'u8[4096]{0}', space=vmem, size = 0x1000, scoped, tag = 'input window, operand 2, single buffered']
    #allocation3 [shape = 's32[2]{0}', space=sflag, size = 0x8, scoped, tag = 'scoped memory for _lambda_.10']
    #allocation4 [shape = 'u8[4096]{0}', space=vmem, size = 0x1000, scoped, tag = 'input window, operand 3, single buffered']
    #allocation5 [shape = 's32[1]{0}', space=sflag, size = 0x4, scoped, tag = 'scoped memory for _lambda_.10']
    %9 = vsyncpa [#allocation3], 0
    %10 = vsyncpa [#allocation5], 0
    loop: start=0, step=1, limit=4
    $region2: #{_lambda_.10} parent=1 // loop_pre_header
      _
    $region3: #{_lambda_.10} parent=1 // loop_header
      %s12 = sphi 0, %s16
      %p13 = scmp.ge.s32.totalorder %s12, 4
      %s19 = sphi 0, %s31
      %s20 = sphi 0, %s27
      %s21 = sphi 0, %s19
      %s22 = sphi 0, %s20
      %s23 = sphi 0, %s21
      %s24 = sphi 0, %s22
      %s36 = sphi 0, %s38
      %s39 = sphi 0, %s36
      %s40 = sphi 0, %s39
      %s56 = sphi 0, %s40
      %s62 = sphi 0, %s64
      %s65 = sphi 0, %s62
      %s66 = sphi 0, %s65
      %s82 = sphi 0, %s66
      %s86 = sphi 0, %s86
      %s88 = sphi 0, %s86
      %s89 = sphi 0, %s88
      %s103 = sphi 0, %s89
      %s107 = sphi 0, %s107
      %s109 = sphi 0, %s107
      %s110 = sphi 0, %s109
      %s124 = sphi 0, %s110
      %s132 = sphi 0, %s134
      %s135 = sphi 0, %s132
      %s136 = sphi 0, %s135
      %s152 = sphi 0, %s136
    $region4: #{_lambda_.10} parent=1 // loop_header_branch
      %15 = sbr.rel (%p13) target = $region8
    $region5: #{_lambda_.10} parent=1 // loop_body
      %s17 = ssub.s32 %s12, 1
      %s18 = ssub.s32 %s12, 2
      %s25 = sadd.s32 1, %s20
      %p26 = scmp.ge.s32.totalorder %s25, 1
      %s27 = scalar_select %p26, 0, %s25
      %s28 = sadd.s32 1, %s19
      %s29 = scalar_select %p26, %s28, %s19
      %p30 = scmp.ge.s32.totalorder %s29, 2
      %s31 = scalar_select %p30, 0, %s29
      %s32 = ssub.s32 %s19, %s31
      %s33 = ssub.s32 %s20, %s27
      %s34 = sor.u32 %s32, %s33
      %p35 = scmp.eq.s32.totalorder %s34, 0
      %s37 = sadd.s32 %s36, 1
      %s38 = scalar_select %p35, %s36, %s37
      %p41 = pneg %p35
      %p42 = scmp.eq.s32.totalorder %s12, 1
      %p43 = por %p41, %p42
      %p44 = scmp.ne.s32.totalorder %s36, %s39
      %p45 = scmp.eq.s32.totalorder %s12, 0
      %p46 = por %p44, %p45
      %p47 = scmp.ne.s32.totalorder %s36, %s39
      %p48 = scmp.eq.s32.totalorder %s17, 1
      %p49 = por %p47, %p48
      %p50 = scmp.ne.s32.totalorder %s39, %s40
      %p51 = scmp.eq.s32.totalorder %s17, 0
      %p52 = por %p50, %p51
      %p53 = scmp.ne.s32.totalorder %s39, %s40
      %p54 = scmp.eq.s32.totalorder %s18, 1
      %p55 = por %p53, %p54
      %p57 = scmp.ne.s32.totalorder %s40, %s56
      %p58 = scmp.eq.s32.totalorder %s18, 0
      %p59 = por %p57, %p58
      %s60 = ssub.s32 %s20, %s27
      %p61 = scmp.eq.s32.totalorder %s60, 0
      %s63 = sadd.s32 %s62, 1
      %s64 = scalar_select %p61, %s62, %s63
      %p67 = pneg %p61
      %p68 = scmp.eq.s32.totalorder %s12, 1
      %p69 = por %p67, %p68
      %p70 = scmp.ne.s32.totalorder %s62, %s65
      %p71 = scmp.eq.s32.totalorder %s12, 0
      %p72 = por %p70, %p71
      %p73 = scmp.ne.s32.totalorder %s62, %s65
      %p74 = scmp.eq.s32.totalorder %s17, 1
      %p75 = por %p73, %p74
      %p76 = scmp.ne.s32.totalorder %s65, %s66
      %p77 = scmp.eq.s32.totalorder %s17, 0
      %p78 = por %p76, %p77
      %p79 = scmp.ne.s32.totalorder %s65, %s66
      %p80 = scmp.eq.s32.totalorder %s18, 1
      %p81 = por %p79, %p80
      %p83 = scmp.ne.s32.totalorder %s66, %s82
      %p84 = scmp.eq.s32.totalorder %s18, 0
      %p85 = por %p83, %p84
      %s87 = sadd.s32 %s86, 1
      %p90 = scmp.eq.s32.totalorder %s12, 1
      %p91 = scmp.ne.s32.totalorder %s86, %s88
      %p92 = scmp.eq.s32.totalorder %s12, 0
      %p93 = por %p91, %p92
      %p94 = scmp.ne.s32.totalorder %s86, %s88
      %p95 = scmp.eq.s32.totalorder %s17, 1
      %p96 = por %p94, %p95
      %p97 = scmp.ne.s32.totalorder %s88, %s89
      %p98 = scmp.eq.s32.totalorder %s17, 0
      %p99 = por %p97, %p98
      %p100 = scmp.ne.s32.totalorder %s88, %s89
      %p101 = scmp.eq.s32.totalorder %s18, 1
      %p102 = por %p100, %p101
      %p104 = scmp.ne.s32.totalorder %s89, %s103
      %p105 = scmp.eq.s32.totalorder %s18, 0
      %p106 = por %p104, %p105
      %s108 = sadd.s32 %s107, 1
      %p111 = scmp.eq.s32.totalorder %s12, 1
      %p112 = scmp.ne.s32.totalorder %s107, %s109
      %p113 = scmp.eq.s32.totalorder %s12, 0
      %p114 = por %p112, %p113
      %p115 = scmp.ne.s32.totalorder %s107, %s109
      %p116 = scmp.eq.s32.totalorder %s17, 1
      %p117 = por %p115, %p116
      %p118 = scmp.ne.s32.totalorder %s109, %s110
      %p119 = scmp.eq.s32.totalorder %s17, 0
      %p120 = por %p118, %p119
      %p121 = scmp.ne.s32.totalorder %s109, %s110
      %p122 = scmp.eq.s32.totalorder %s18, 1
      %p123 = por %p121, %p122
      %p125 = scmp.ne.s32.totalorder %s110, %s124
      %p126 = scmp.eq.s32.totalorder %s18, 0
      %p127 = por %p125, %p126
      %s128 = ssub.s32 %s19, %s31
      %s129 = ssub.s32 %s20, %s27
      %s130 = sor.u32 %s128, %s129
      %p131 = scmp.eq.s32.totalorder %s130, 0
      %s133 = sadd.s32 %s132, 1
      %s134 = scalar_select %p131, %s132, %s133
      %p137 = pneg %p131
      %p138 = scmp.eq.s32.totalorder %s12, 1
      %p139 = por %p137, %p138
      %p140 = scmp.ne.s32.totalorder %s132, %s135
      %p141 = scmp.eq.s32.totalorder %s12, 0
      %p142 = por %p140, %p141
      %p143 = scmp.ne.s32.totalorder %s132, %s135
      %p144 = scmp.eq.s32.totalorder %s17, 1
      %p145 = por %p143, %p144
      %p146 = scmp.ne.s32.totalorder %s135, %s136
      %p147 = scmp.eq.s32.totalorder %s17, 0
      %p148 = por %p146, %p147
      %p149 = scmp.ne.s32.totalorder %s135, %s136
      %p150 = scmp.eq.s32.totalorder %s18, 1
      %p151 = por %p149, %p150
      %p153 = scmp.ne.s32.totalorder %s136, %s152
      %p154 = scmp.eq.s32.totalorder %s18, 0
      %p155 = por %p153, %p154
      %p156 = scmp.le.s32.totalorder 1, %s12
      %p157 = scmp.lt.s32.totalorder %s12, 3
      %p158 = pnand %p156, %p157
      %p159 = pneg %p158
      // Predicated region
      $region9: #{_lambda_.10} parent=5 // pred_check
        _
      $region10: #{_lambda_.10} parent=5 // pred_check_branch
        %161 = sbr.rel (%p158) target = $region12
      $region11: #{_lambda_.10} parent=5 // pred_region
        %s162 = ssub.s32 %s12, 1
        // Predicated region
        $region13: #{_lambda_.10} parent=11 // pred_check
          %p163 = pneg %p78
        $region14: #{_lambda_.10} parent=11 // pred_check_branch
          %165 = sbr.rel (%p163) target = $region16
        $region15: #{_lambda_.10} parent=11 // pred_region
          %s166 = smul.u32 4, %s22
          %p167 = scmp.lt.s32.totalorder %s166, 3
          %s168 = scalar_select %p167, %s166, 3
          %s169 = smul.addr %s168, 4
          %s170 = scalar_lea.vmem %s1, %s169
          %s171 = smul.u32 4, %s22
        $region16: #{_lambda_.10} parent=11 // pred_fallthru
          _
        // Predicated region
        $region17: #{_lambda_.10} parent=11 // pred_check
          %p172 = pneg %p99
        $region18: #{_lambda_.10} parent=11 // pred_check_branch
          %174 = sbr.rel (%p172) target = $region20
        $region19: #{_lambda_.10} parent=11 // pred_region
          %s176 = ssub.s32 128, 128
          %177 = vsyncadd [#allocation3], %s176
          %s179 = sshll.u32 [#allocation2], 4
          %s180 = int_to_ptr.vmem [resolvable:$true] %s179
          %182 = dma.hbm_to_vmem [thread:$0]  %s2, 128, %s180, [#allocation3]
        $region20: #{_lambda_.10} parent=11 // pred_fallthru
          _
        // Predicated region
        $region21: #{_lambda_.10} parent=11 // pred_check
          %p183 = pneg %p120
        $region22: #{_lambda_.10} parent=11 // pred_check_branch
          %185 = sbr.rel (%p183) target = $region24
        $region23: #{_lambda_.10} parent=11 // pred_region
          %s187 = ssub.s32 128, 128
          %188 = vsyncadd [#allocation5], %s187
          %s190 = sshll.u32 [#allocation4], 4
          %s191 = int_to_ptr.vmem [resolvable:$true] %s190
          %193 = dma.hbm_to_vmem [thread:$0]  %s3, 128, %s191, [#allocation5]
        $region24: #{_lambda_.10} parent=11 // pred_fallthru
          _
      $region12: #{_lambda_.10} parent=5 // pred_fallthru
        _
      %p194 = scmp.lt.s32.totalorder %s12, 2
      // Predicated region
      $region25: #{_lambda_.10} parent=5 // pred_check
        %p195 = pneg %p194
      $region26: #{_lambda_.10} parent=5 // pred_check_branch
        %197 = sbr.rel (%p195) target = $region28
      $region27: #{_lambda_.10} parent=5 // pred_region
        // Predicated region
        $region29: #{_lambda_.10} parent=27 // pred_check
          %p198 = pneg %p46
        $region30: #{_lambda_.10} parent=27 // pred_check_branch
          %200 = sbr.rel (%p198) target = $region32
        $region31: #{_lambda_.10} parent=27 // pred_region
          %s201 = smul.u32 4, %s20
          %p202 = scmp.lt.s32.totalorder %s19, 1
          %s203 = scalar_select %p202, %s19, 1
          %p204 = scmp.lt.s32.totalorder %s201, 3
          %s205 = scalar_select %p204, %s201, 3
          %s206 = smul.addr %s203, 4
          %s207 = sadd.s32 %s205, %s206
          %s208 = scalar_lea.vmem %s0, %s207
          %s209 = smul.u32 4, %s20
        $region32: #{_lambda_.10} parent=27 // pred_fallthru
          _
      $region28: #{_lambda_.10} parent=5 // pred_fallthru
        _
      %p210 = scmp.le.s32.totalorder 1, %s12
      %p211 = scmp.lt.s32.totalorder %s12, 3
      %p212 = pnand %p210, %p211
      %p213 = pneg %p212
      // Predicated region
      $region33: #{_lambda_.10} parent=5 // pred_check
        _
      $region34: #{_lambda_.10} parent=5 // pred_check_branch
        %215 = sbr.rel (%p212) target = $region36
      $region35: #{_lambda_.10} parent=5 // pred_region
        %s216 = ssub.s32 %s12, 1
        // Predicated region
        $region37: #{_lambda_.10} parent=35 // pred_check
          %p217 = pneg %p99
        $region38: #{_lambda_.10} parent=35 // pred_check_branch
          %219 = sbr.rel (%p217) target = $region40
        $region39: #{_lambda_.10} parent=35 // pred_region
          %220 = dma.done [#allocation3], 128
        $region40: #{_lambda_.10} parent=35 // pred_fallthru
          _
        // Predicated region
        $region41: #{_lambda_.10} parent=35 // pred_check
          %p221 = pneg %p120
        $region42: #{_lambda_.10} parent=35 // pred_check_branch
          %223 = sbr.rel (%p221) target = $region44
        $region43: #{_lambda_.10} parent=35 // pred_region
          %224 = dma.done [#allocation5], 128
        $region44: #{_lambda_.10} parent=35 // pred_fallthru
          _
        %s225 = smul.u32 4, %s22
        %p226 = scmp.lt.s32.totalorder %s21, 1
        %s227 = scalar_select %p226, %s21, 1
        %p228 = scmp.lt.s32.totalorder %s225, 3
        %s229 = scalar_select %p228, %s225, 3
        %s230 = smul.addr %s227, 4
        %s231 = sadd.s32 %s229, %s230
        %s232 = scalar_lea.vmem %s0, %s231
        %p233 = pneg %p52
        %p234 = pneg %p49
        %s235 = smul.u32 4, %s22
        %p236 = scmp.lt.s32.totalorder %s235, 3
        %s237 = scalar_select %p236, %s235, 3
        %s238 = smul.addr %s237, 4
        %s239 = scalar_lea.vmem %s1, %s238
        %p240 = pneg %p78
        %p241 = pneg %p75
        %p242 = pneg %p99
        %p243 = pneg %p96
        %p244 = pneg %p120
        %p245 = pneg %p117
        %p246 = pneg %p148
        %p247 = pneg %p145
        %s248 = smul.u32 4, %s22
        %p249 = scmp.lt.s32.totalorder %s21, 1
        %s250 = scalar_select %p249, %s21, 1
        %p251 = scmp.lt.s32.totalorder %s248, 3
        %s252 = scalar_select %p251, %s248, 3
        %s253 = smul.addr %s250, 4
        %s254 = sadd.s32 %s252, %s253
        %s255 = smul.addr %s254, 8
        %s256 = scalar_lea.vmem %s4, %s255
        %s257 = smul.u32 4, %s22
        %p258 = scmp.lt.s32.totalorder %s21, 1
        %s259 = scalar_select %p258, %s21, 1
        %p260 = scmp.lt.s32.totalorder %s257, 3
        %s261 = scalar_select %p260, %s257, 3
        %s262 = smul.addr %s259, 4
        %s263 = sadd.s32 %s261, %s262
        %s264 = scalar_lea.vmem %s0, %s263
        %s265 = smul.u32 4, %s22
        %s266 = smul.u32 4, %s22
        %p267 = scmp.lt.s32.totalorder %s266, 3
        %s268 = scalar_select %p267, %s266, 3
        %s269 = smul.addr %s268, 4
        %s270 = scalar_lea.vmem %s1, %s269
        %s271 = smul.u32 4, %s22
        %s272 = smul.u32 4, %s22
        %p273 = scmp.lt.s32.totalorder %s21, 1
        %s274 = scalar_select %p273, %s21, 1
        %p275 = scmp.lt.s32.totalorder %s272, 3
        %s276 = scalar_select %p275, %s272, 3
        %s277 = smul.addr %s274, 4
        %s278 = sadd.s32 %s276, %s277
        %s279 = smul.addr %s278, 8
        %s280 = scalar_lea.vmem %s4, %s279
        %s281 = smul.u32 4, %s22
        %v282 = vld [vmem:[#allocation2] sm:$0xff]
        %v283 = vld [vmem:[%s264] sm:$0xf]
        %285 = vset.pattern.permute.xlu0 0
        %286 = vperm.xlu0 %285, %v282
        %v287 = vpop.permute.xlu0 %286
        %v290 = vlaneseq
        %v291 = vshrl.u32 %v290, 7
        %v292 = vsub.s32 0, %v291
        %v293 = vrot.slane %v283, %v292
        %v294 = vlaneseq
        %v295 = vshrl.u32 %v294, 7
        %v296 = vsub.s32 1, %v295
        %v297 = vrot.slane %v283, %v296
        %v298 = vlaneseq
        %v299 = vshrl.u32 %v298, 7
        %v300 = vsub.s32 2, %v299
        %v301 = vrot.slane %v283, %v300
        %v302 = vlaneseq
        %v303 = vshrl.u32 %v302, 7
        %v304 = vsub.s32 3, %v303
        %v305 = vrot.slane %v283, %v304
        %v310 = vmul.f32 %v287, %v293
        %v311 = vmul.f32 %v287, %v297
        %v312 = vmul.f32 %v287, %v301
        %v313 = vmul.f32 %v287, %v305
        %v314 = vld [vmem:[%s270] ss:$4 sm:$0xf]
        %315 = vset.pattern.permute.xlu0 1
        %316 = vperm.xlu0 %315, %v282
        %v317 = vpop.permute.xlu0 %316
        %v320 = vlaneseq
        %v321 = vshrl.u32 %v320, 7
        %v322 = vsub.s32 0, %v321
        %v323 = vrot.slane %v314, %v322
        %v324 = vlaneseq
        %v325 = vshrl.u32 %v324, 7
        %v326 = vsub.s32 1, %v325
        %v327 = vrot.slane %v314, %v326
        %v328 = vlaneseq
        %v329 = vshrl.u32 %v328, 7
        %v330 = vsub.s32 2, %v329
        %v331 = vrot.slane %v314, %v330
        %v332 = vlaneseq
        %v333 = vshrl.u32 %v332, 7
        %v334 = vsub.s32 3, %v333
        %v335 = vrot.slane %v314, %v334
        %v340 = vmul.f32 %v317, %v323
        %v341 = vmul.f32 %v317, %v327
        %v342 = vmul.f32 %v317, %v331
        %v343 = vmul.f32 %v317, %v335
        %v344 = vadd.f32 %v310, %v340
        %v345 = vadd.f32 %v311, %v341
        %v346 = vadd.f32 %v312, %v342
        %v347 = vadd.f32 %v313, %v343
        %s348 = scalar_lea.vmem %s270, 1
        %v349 = vld [vmem:[%s348] ss:$4 sm:$0xf]
        %350 = vset.pattern.permute.xlu0 2
        %351 = vperm.xlu0 %350, %v282
        %v352 = vpop.permute.xlu0 %351
        %v355 = vlaneseq
        %v356 = vshrl.u32 %v355, 7
        %v357 = vsub.s32 0, %v356
        %v358 = vrot.slane %v349, %v357
        %v359 = vlaneseq
        %v360 = vshrl.u32 %v359, 7
        %v361 = vsub.s32 1, %v360
        %v362 = vrot.slane %v349, %v361
        %v363 = vlaneseq
        %v364 = vshrl.u32 %v363, 7
        %v365 = vsub.s32 2, %v364
        %v366 = vrot.slane %v349, %v365
        %v367 = vlaneseq
        %v368 = vshrl.u32 %v367, 7
        %v369 = vsub.s32 3, %v368
        %v370 = vrot.slane %v349, %v369
        %v375 = vmul.f32 %v352, %v358
        %v376 = vmul.f32 %v352, %v362
        %v377 = vmul.f32 %v352, %v366
        %v378 = vmul.f32 %v352, %v370
        %v379 = vadd.f32 %v344, %v375
        %v380 = vadd.f32 %v345, %v376
        %v381 = vadd.f32 %v346, %v377
        %v382 = vadd.f32 %v347, %v378
        %s383 = scalar_lea.vmem %s270, 2
        %v384 = vld [vmem:[%s383] ss:$4 sm:$0xf]
        %385 = vset.pattern.permute.xlu0 3
        %386 = vperm.xlu0 %385, %v282
        %v387 = vpop.permute.xlu0 %386
        %v390 = vlaneseq
        %v391 = vshrl.u32 %v390, 7
        %v392 = vsub.s32 0, %v391
        %v393 = vrot.slane %v384, %v392
        %v394 = vlaneseq
        %v395 = vshrl.u32 %v394, 7
        %v396 = vsub.s32 1, %v395
        %v397 = vrot.slane %v384, %v396
        %v398 = vlaneseq
        %v399 = vshrl.u32 %v398, 7
        %v400 = vsub.s32 2, %v399
        %v401 = vrot.slane %v384, %v400
        %v402 = vlaneseq
        %v403 = vshrl.u32 %v402, 7
        %v404 = vsub.s32 3, %v403
        %v405 = vrot.slane %v384, %v404
        %v410 = vmul.f32 %v387, %v393
        %v411 = vmul.f32 %v387, %v397
        %v412 = vmul.f32 %v387, %v401
        %v413 = vmul.f32 %v387, %v405
        %v414 = vadd.f32 %v379, %v410
        %v415 = vadd.f32 %v380, %v411
        %v416 = vadd.f32 %v381, %v412
        %v417 = vadd.f32 %v382, %v413
        %v418 = vld [vmem:[#allocation4] sm:$0xff]
        %420 = vset.pattern.permute.xlu0 0
        %421 = vperm.xlu0 %420, %v418
        %v422 = vpop.permute.xlu0 %421
        %v424 = vadd.f32 %v414, %v422
        %v425 = vadd.f32 %v415, %v422
        %v426 = vadd.f32 %v416, %v422
        %v427 = vadd.f32 %v417, %v422
        %428 = vst [vmem:[%s280] sm:$0xff] %v424
        %429 = vst [vmem:[%s280 + $0x8] sm:$0xff] %v425
        %430 = vst [vmem:[%s280 + $0x10] sm:$0xff] %v426
        %431 = vst [vmem:[%s280 + $0x18] sm:$0xff] %v427
        %s432 = smul.u32 4, %s22
        %p433 = scmp.lt.s32.totalorder %s21, 1
        %s434 = scalar_select %p433, %s21, 1
        %p435 = scmp.lt.s32.totalorder %s432, 3
        %s436 = scalar_select %p435, %s432, 3
        %s437 = smul.addr %s434, 4
        %s438 = sadd.s32 %s436, %s437
        %s439 = smul.addr %s438, 8
        %s440 = scalar_lea.vmem %s4, %s439
        // Predicated region
        $region45: #{_lambda_.10} parent=35 // pred_check
          %p441 = pneg %p145
        $region46: #{_lambda_.10} parent=35 // pred_check_branch
          %443 = sbr.rel (%p441) target = $region48
        $region47: #{_lambda_.10} parent=35 // pred_region
          %s444 = smul.u32 4, %s22
        $region48: #{_lambda_.10} parent=35 // pred_fallthru
          _
      $region36: #{_lambda_.10} parent=5 // pred_fallthru
        _
      %p445 = scmp.le.s32.totalorder 2, %s12
      // Predicated region
      $region49: #{_lambda_.10} parent=5 // pred_check
        %p446 = pneg %p445
      $region50: #{_lambda_.10} parent=5 // pred_check_branch
        %448 = sbr.rel (%p446) target = $region52
      $region51: #{_lambda_.10} parent=5 // pred_region
        %s449 = ssub.s32 %s12, 2
        // Predicated region
        $region53: #{_lambda_.10} parent=51 // pred_check
          %p450 = pneg %p151
        $region54: #{_lambda_.10} parent=51 // pred_check_branch
          %452 = sbr.rel (%p450) target = $region56
        $region55: #{_lambda_.10} parent=51 // pred_region
          %s453 = smul.u32 4, %s24
          %p454 = scmp.lt.s32.totalorder %s23, 1
          %s455 = scalar_select %p454, %s23, 1
          %p456 = scmp.lt.s32.totalorder %s453, 3
          %s457 = scalar_select %p456, %s453, 3
          %s458 = smul.addr %s455, 4
          %s459 = sadd.s32 %s457, %s458
          %s460 = smul.addr %s459, 8
          %s461 = scalar_lea.vmem %s4, %s460
        $region56: #{_lambda_.10} parent=51 // pred_fallthru
          _
      $region52: #{_lambda_.10} parent=5 // pred_fallthru
        _
    $region6: #{_lambda_.10} parent=1 // loop_footer
      %s16 = sadd.s32 1, %s12
    $region7: #{_lambda_.10} parent=1 // loop_footer_branch
      %11 = sbr.rel target = $region3
    $region8: #{_lambda_.10} parent=1 // loop_exit
      _
    %462 = vsyncpa [#allocation3], 1
    %s463 = scalar_lea.sflag [#allocation3], 1
    %464 = vsyncpa %s463, 1
    %465 = vsyncpa [#allocation5], 1

// kernel: _lambda_.11
$region0: #{_lambda_.11}
  #allocation0 [shape = 'u32[]', space=smem, size = 0x4, offset = 0x4, fixed_abs, tag = 'smem constant byte address 0x4 - core index']
  #allocation1 [shape = 'u32[144,128]{1,0:T(1,128)}', space=vmem, size = 0x12000, scoped, tag = 'internal scratch']
  %s0 = inlined_call_operand.vmem [shape: f32[2,8,256], index: 0, kind: input, shape index: {}]
  %s1 = inlined_call_operand.vmem [shape: f32[2,8,256], index: 1, kind: input, shape index: {}]
  %s2 = inlined_call_operand.vmem [shape: f32[8,8,256], index: 2, kind: input, shape index: {}]
  %s3 = inlined_call_operand.vmem [shape: f32[8,8,256], index: 3, kind: input, shape index: {}]
  %s4 = inlined_call_operand.vmem [shape: f32[8,8,256], index: 4, kind: input, shape index: {}]
  %s5 = inlined_call_operand.vmem [shape: f32[2,8,256], index: 5, kind: output, shape index: {0}]
  %s6 = inlined_call_operand.vmem [shape: f32[2,8,256], index: 6, kind: output, shape index: {1}]
  %7 = xla_tuple %s5, %s6
  %s8 = sld [smem:[#allocation0]]
  $region61: #{_lambda_.11} parent=0
    _
  %s10 = ssub.s32 1, %s8
  %s11 = scalar_select 0, %s10, %s8
  loop: start=0, step=1, limit=4
  $region2: #{_lambda_.11} parent=0 // loop_pre_header
    _
  $region3: #{_lambda_.11} parent=0 // loop_header
    %s13 = sphi 0, %s17
    %p14 = scmp.ge.s32.totalorder %s13, 4
    %s20 = sphi 0, %s32
    %s21 = sphi 0, %s28
    %s22 = sphi 0, %s20
    %s23 = sphi 0, %s21
    %s24 = sphi 0, %s22
    %s25 = sphi 0, %s23
    %s37 = sphi 0, %s39
    %s40 = sphi 0, %s37
    %s41 = sphi 0, %s40
    %s57 = sphi 0, %s41
    %s65 = sphi 0, %s67
    %s68 = sphi 0, %s65
    %s69 = sphi 0, %s68
    %s85 = sphi 0, %s69
    %s91 = sphi 0, %s93
    %s94 = sphi 0, %s91
    %s95 = sphi 0, %s94
    %s111 = sphi 0, %s95
    %s117 = sphi 0, %s119
    %s120 = sphi 0, %s117
    %s121 = sphi 0, %s120
    %s137 = sphi 0, %s121
    %s143 = sphi 0, %s145
    %s146 = sphi 0, %s143
    %s147 = sphi 0, %s146
    %s163 = sphi 0, %s147
    %s171 = sphi 0, %s173
    %s174 = sphi 0, %s171
    %s175 = sphi 0, %s174
    %s191 = sphi 0, %s175
    %s199 = sphi 0, %s201
    %s202 = sphi 0, %s199
    %s203 = sphi 0, %s202
    %s219 = sphi 0, %s203
  $region4: #{_lambda_.11} parent=0 // loop_header_branch
    %16 = sbr.rel (%p14) target = $region8
  $region5: #{_lambda_.11} parent=0 // loop_body
    %s18 = ssub.s32 %s13, 1
    %s19 = ssub.s32 %s13, 2
    %s26 = sadd.s32 1, %s21
    %p27 = scmp.ge.s32.totalorder %s26, 2
    %s28 = scalar_select %p27, 0, %s26
    %s29 = sadd.s32 1, %s20
    %s30 = scalar_select %p27, %s29, %s20
    %p31 = scmp.ge.s32.totalorder %s30, 1
    %s32 = scalar_select %p31, 0, %s30
    %s33 = ssub.s32 %s21, %s28
    %s34 = ssub.s32 %s20, %s32
    %s35 = sor.u32 %s33, %s34
    %p36 = scmp.eq.s32.totalorder %s35, 0
    %s38 = sadd.s32 %s37, 1
    %s39 = scalar_select %p36, %s37, %s38
    %p42 = pneg %p36
    %p43 = scmp.eq.s32.totalorder %s13, 1
    %p44 = por %p42, %p43
    %p45 = scmp.ne.s32.totalorder %s37, %s40
    %p46 = scmp.eq.s32.totalorder %s13, 0
    %p47 = por %p45, %p46
    %p48 = scmp.ne.s32.totalorder %s37, %s40
    %p49 = scmp.eq.s32.totalorder %s18, 1
    %p50 = por %p48, %p49
    %p51 = scmp.ne.s32.totalorder %s40, %s41
    %p52 = scmp.eq.s32.totalorder %s18, 0
    %p53 = por %p51, %p52
    %p54 = scmp.ne.s32.totalorder %s40, %s41
    %p55 = scmp.eq.s32.totalorder %s19, 1
    %p56 = por %p54, %p55
    %p58 = scmp.ne.s32.totalorder %s41, %s57
    %p59 = scmp.eq.s32.totalorder %s19, 0
    %p60 = por %p58, %p59
    %s61 = ssub.s32 %s21, %s28
    %s62 = ssub.s32 %s20, %s32
    %s63 = sor.u32 %s61, %s62
    %p64 = scmp.eq.s32.totalorder %s63, 0
    %s66 = sadd.s32 %s65, 1
    %s67 = scalar_select %p64, %s65, %s66
    %p70 = pneg %p64
    %p71 = scmp.eq.s32.totalorder %s13, 1
    %p72 = por %p70, %p71
    %p73 = scmp.ne.s32.totalorder %s65, %s68
    %p74 = scmp.eq.s32.totalorder %s13, 0
    %p75 = por %p73, %p74
    %p76 = scmp.ne.s32.totalorder %s65, %s68
    %p77 = scmp.eq.s32.totalorder %s18, 1
    %p78 = por %p76, %p77
    %p79 = scmp.ne.s32.totalorder %s68, %s69
    %p80 = scmp.eq.s32.totalorder %s18, 0
    %p81 = por %p79, %p80
    %p82 = scmp.ne.s32.totalorder %s68, %s69
    %p83 = scmp.eq.s32.totalorder %s19, 1
    %p84 = por %p82, %p83
    %p86 = scmp.ne.s32.totalorder %s69, %s85
    %p87 = scmp.eq.s32.totalorder %s19, 0
    %p88 = por %p86, %p87
    %s89 = ssub.s32 %s20, %s32
    %p90 = scmp.eq.s32.totalorder %s89, 0
    %s92 = sadd.s32 %s91, 1
    %s93 = scalar_select %p90, %s91, %s92
    %p96 = pneg %p90
    %p97 = scmp.eq.s32.totalorder %s13, 1
    %p98 = por %p96, %p97
    %p99 = scmp.ne.s32.totalorder %s91, %s94
    %p100 = scmp.eq.s32.totalorder %s13, 0
    %p101 = por %p99, %p100
    %p102 = scmp.ne.s32.totalorder %s91, %s94
    %p103 = scmp.eq.s32.totalorder %s18, 1
    %p104 = por %p102, %p103
    %p105 = scmp.ne.s32.totalorder %s94, %s95
    %p106 = scmp.eq.s32.totalorder %s18, 0
    %p107 = por %p105, %p106
    %p108 = scmp.ne.s32.totalorder %s94, %s95
    %p109 = scmp.eq.s32.totalorder %s19, 1
    %p110 = por %p108, %p109
    %p112 = scmp.ne.s32.totalorder %s95, %s111
    %p113 = scmp.eq.s32.totalorder %s19, 0
    %p114 = por %p112, %p113
    %s115 = ssub.s32 %s20, %s32
    %p116 = scmp.eq.s32.totalorder %s115, 0
    %s118 = sadd.s32 %s117, 1
    %s119 = scalar_select %p116, %s117, %s118
    %p122 = pneg %p116
    %p123 = scmp.eq.s32.totalorder %s13, 1
    %p124 = por %p122, %p123
    %p125 = scmp.ne.s32.totalorder %s117, %s120
    %p126 = scmp.eq.s32.totalorder %s13, 0
    %p127 = por %p125, %p126
    %p128 = scmp.ne.s32.totalorder %s117, %s120
    %p129 = scmp.eq.s32.totalorder %s18, 1
    %p130 = por %p128, %p129
    %p131 = scmp.ne.s32.totalorder %s120, %s121
    %p132 = scmp.eq.s32.totalorder %s18, 0
    %p133 = por %p131, %p132
    %p134 = scmp.ne.s32.totalorder %s120, %s121
    %p135 = scmp.eq.s32.totalorder %s19, 1
    %p136 = por %p134, %p135
    %p138 = scmp.ne.s32.totalorder %s121, %s137
    %p139 = scmp.eq.s32.totalorder %s19, 0
    %p140 = por %p138, %p139
    %s141 = ssub.s32 %s20, %s32
    %p142 = scmp.eq.s32.totalorder %s141, 0
    %s144 = sadd.s32 %s143, 1
    %s145 = scalar_select %p142, %s143, %s144
    %p148 = pneg %p142
    %p149 = scmp.eq.s32.totalorder %s13, 1
    %p150 = por %p148, %p149
    %p151 = scmp.ne.s32.totalorder %s143, %s146
    %p152 = scmp.eq.s32.totalorder %s13, 0
    %p153 = por %p151, %p152
    %p154 = scmp.ne.s32.totalorder %s143, %s146
    %p155 = scmp.eq.s32.totalorder %s18, 1
    %p156 = por %p154, %p155
    %p157 = scmp.ne.s32.totalorder %s146, %s147
    %p158 = scmp.eq.s32.totalorder %s18, 0
    %p159 = por %p157, %p158
    %p160 = scmp.ne.s32.totalorder %s146, %s147
    %p161 = scmp.eq.s32.totalorder %s19, 1
    %p162 = por %p160, %p161
    %p164 = scmp.ne.s32.totalorder %s147, %s163
    %p165 = scmp.eq.s32.totalorder %s19, 0
    %p166 = por %p164, %p165
    %s167 = ssub.s32 %s21, %s28
    %s168 = ssub.s32 %s20, %s32
    %s169 = sor.u32 %s167, %s168
    %p170 = scmp.eq.s32.totalorder %s169, 0
    %s172 = sadd.s32 %s171, 1
    %s173 = scalar_select %p170, %s171, %s172
    %p176 = pneg %p170
    %p177 = scmp.eq.s32.totalorder %s13, 1
    %p178 = por %p176, %p177
    %p179 = scmp.ne.s32.totalorder %s171, %s174
    %p180 = scmp.eq.s32.totalorder %s13, 0
    %p181 = por %p179, %p180
    %p182 = scmp.ne.s32.totalorder %s171, %s174
    %p183 = scmp.eq.s32.totalorder %s18, 1
    %p184 = por %p182, %p183
    %p185 = scmp.ne.s32.totalorder %s174, %s175
    %p186 = scmp.eq.s32.totalorder %s18, 0
    %p187 = por %p185, %p186
    %p188 = scmp.ne.s32.totalorder %s174, %s175
    %p189 = scmp.eq.s32.totalorder %s19, 1
    %p190 = por %p188, %p189
    %p192 = scmp.ne.s32.totalorder %s175, %s191
    %p193 = scmp.eq.s32.totalorder %s19, 0
    %p194 = por %p192, %p193
    %s195 = ssub.s32 %s21, %s28
    %s196 = ssub.s32 %s20, %s32
    %s197 = sor.u32 %s195, %s196
    %p198 = scmp.eq.s32.totalorder %s197, 0
    %s200 = sadd.s32 %s199, 1
    %s201 = scalar_select %p198, %s199, %s200
    %p204 = pneg %p198
    %p205 = scmp.eq.s32.totalorder %s13, 1
    %p206 = por %p204, %p205
    %p207 = scmp.ne.s32.totalorder %s199, %s202
    %p208 = scmp.eq.s32.totalorder %s13, 0
    %p209 = por %p207, %p208
    %p210 = scmp.ne.s32.totalorder %s199, %s202
    %p211 = scmp.eq.s32.totalorder %s18, 1
    %p212 = por %p210, %p211
    %p213 = scmp.ne.s32.totalorder %s202, %s203
    %p214 = scmp.eq.s32.totalorder %s18, 0
    %p215 = por %p213, %p214
    %p216 = scmp.ne.s32.totalorder %s202, %s203
    %p217 = scmp.eq.s32.totalorder %s19, 1
    %p218 = por %p216, %p217
    %p220 = scmp.ne.s32.totalorder %s203, %s219
    %p221 = scmp.eq.s32.totalorder %s19, 0
    %p222 = por %p220, %p221
    %p223 = scmp.le.s32.totalorder 1, %s13
    %p224 = scmp.lt.s32.totalorder %s13, 3
    %p225 = pnand %p223, %p224
    %p226 = pneg %p225
    // Predicated region
    $region9: #{_lambda_.11} parent=5 // pred_check
      _
    $region10: #{_lambda_.11} parent=5 // pred_check_branch
      %228 = sbr.rel (%p225) target = $region12
    $region11: #{_lambda_.11} parent=5 // pred_region
      %s229 = ssub.s32 %s13, 1
      // Predicated region
      $region13: #{_lambda_.11} parent=11 // pred_check
        %p230 = pneg %p107
      $region14: #{_lambda_.11} parent=11 // pred_check_branch
        %232 = sbr.rel (%p230) target = $region16
      $region15: #{_lambda_.11} parent=11 // pred_region
        %s233 = smul.u32 2, %s22
        %p234 = scmp.lt.s32.totalorder %s233, 1
        %s235 = scalar_select %p234, %s233, 1
        %s236 = smul.addr %s235, 8
        %s237 = scalar_lea.vmem %s2, %s236
        %s238 = smul.u32 2, %s22
      $region16: #{_lambda_.11} parent=11 // pred_fallthru
        _
      // Predicated region
      $region17: #{_lambda_.11} parent=11 // pred_check
        %p239 = pneg %p133
      $region18: #{_lambda_.11} parent=11 // pred_check_branch
        %241 = sbr.rel (%p239) target = $region20
      $region19: #{_lambda_.11} parent=11 // pred_region
        %s242 = smul.u32 2, %s22
        %p243 = scmp.lt.s32.totalorder %s242, 1
        %s244 = scalar_select %p243, %s242, 1
        %s245 = smul.addr %s244, 8
        %s246 = scalar_lea.vmem %s3, %s245
        %s247 = smul.u32 2, %s22
      $region20: #{_lambda_.11} parent=11 // pred_fallthru
        _
      // Predicated region
      $region21: #{_lambda_.11} parent=11 // pred_check
        %p248 = pneg %p159
      $region22: #{_lambda_.11} parent=11 // pred_check_branch
        %250 = sbr.rel (%p248) target = $region24
      $region23: #{_lambda_.11} parent=11 // pred_region
        %s251 = smul.u32 2, %s22
        %p252 = scmp.lt.s32.totalorder %s251, 1
        %s253 = scalar_select %p252, %s251, 1
        %s254 = smul.addr %s253, 8
        %s255 = scalar_lea.vmem %s4, %s254
        %s256 = smul.u32 2, %s22
      $region24: #{_lambda_.11} parent=11 // pred_fallthru
        _
    $region12: #{_lambda_.11} parent=5 // pred_fallthru
      _
    %p257 = scmp.lt.s32.totalorder %s13, 2
    // Predicated region
    $region25: #{_lambda_.11} parent=5 // pred_check
      %p258 = pneg %p257
    $region26: #{_lambda_.11} parent=5 // pred_check_branch
      %260 = sbr.rel (%p258) target = $region28
    $region27: #{_lambda_.11} parent=5 // pred_region
      // Predicated region
      $region29: #{_lambda_.11} parent=27 // pred_check
        %p261 = pneg %p47
      $region30: #{_lambda_.11} parent=27 // pred_check_branch
        %263 = sbr.rel (%p261) target = $region32
      $region31: #{_lambda_.11} parent=27 // pred_region
        %s264 = smul.u32 2, %s20
        %p265 = scmp.lt.s32.totalorder %s21, 1
        %s266 = scalar_select %p265, %s21, 1
        %p267 = scmp.lt.s32.totalorder %s264, 1
        %s268 = scalar_select %p267, %s264, 1
        %s269 = smul.addr %s266, 2
        %s270 = sadd.s32 %s268, %s269
        %s271 = smul.addr %s270, 8
        %s272 = scalar_lea.vmem %s0, %s271
        %s273 = smul.u32 2, %s20
      $region32: #{_lambda_.11} parent=27 // pred_fallthru
        _
      // Predicated region
      $region33: #{_lambda_.11} parent=27 // pred_check
        %p274 = pneg %p75
      $region34: #{_lambda_.11} parent=27 // pred_check_branch
        %276 = sbr.rel (%p274) target = $region36
      $region35: #{_lambda_.11} parent=27 // pred_region
        %s277 = smul.u32 2, %s20
        %p278 = scmp.lt.s32.totalorder %s21, 1
        %s279 = scalar_select %p278, %s21, 1
        %p280 = scmp.lt.s32.totalorder %s277, 1
        %s281 = scalar_select %p280, %s277, 1
        %s282 = smul.addr %s279, 2
        %s283 = sadd.s32 %s281, %s282
        %s284 = smul.addr %s283, 8
        %s285 = scalar_lea.vmem %s1, %s284
        %s286 = smul.u32 2, %s20
      $region36: #{_lambda_.11} parent=27 // pred_fallthru
        _
    $region28: #{_lambda_.11} parent=5 // pred_fallthru
      _
    %p287 = scmp.le.s32.totalorder 1, %s13
    %p288 = scmp.lt.s32.totalorder %s13, 3
    %p289 = pnand %p287, %p288
    %p290 = pneg %p289
    // Predicated region
    $region37: #{_lambda_.11} parent=5 // pred_check
      _
    $region38: #{_lambda_.11} parent=5 // pred_check_branch
      %292 = sbr.rel (%p289) target = $region40
    $region39: #{_lambda_.11} parent=5 // pred_region
      %s293 = ssub.s32 %s13, 1
      %s294 = smul.u32 2, %s22
      %p295 = scmp.lt.s32.totalorder %s23, 1
      %s296 = scalar_select %p295, %s23, 1
      %p297 = scmp.lt.s32.totalorder %s294, 1
      %s298 = scalar_select %p297, %s294, 1
      %s299 = smul.addr %s296, 2
      %s300 = sadd.s32 %s298, %s299
      %s301 = smul.addr %s300, 8
      %s302 = scalar_lea.vmem %s0, %s301
      %p303 = pneg %p53
      %p304 = pneg %p50
      %s305 = smul.u32 2, %s22
      %p306 = scmp.lt.s32.totalorder %s23, 1
      %s307 = scalar_select %p306, %s23, 1
      %p308 = scmp.lt.s32.totalorder %s305, 1
      %s309 = scalar_select %p308, %s305, 1
      %s310 = smul.addr %s307, 2
      %s311 = sadd.s32 %s309, %s310
      %s312 = smul.addr %s311, 8
      %s313 = scalar_lea.vmem %s1, %s312
      %p314 = pneg %p81
      %p315 = pneg %p78
      %s316 = smul.u32 2, %s22
      %p317 = scmp.lt.s32.totalorder %s316, 1
      %s318 = scalar_select %p317, %s316, 1
      %s319 = smul.addr %s318, 8
      %s320 = scalar_lea.vmem %s2, %s319
      %p321 = pneg %p107
      %p322 = pneg %p104
      %s323 = smul.u32 2, %s22
      %p324 = scmp.lt.s32.totalorder %s323, 1
      %s325 = scalar_select %p324, %s323, 1
      %s326 = smul.addr %s325, 8
      %s327 = scalar_lea.vmem %s3, %s326
      %p328 = pneg %p133
      %p329 = pneg %p130
      %s330 = smul.u32 2, %s22
      %p331 = scmp.lt.s32.totalorder %s330, 1
      %s332 = scalar_select %p331, %s330, 1
      %s333 = smul.addr %s332, 8
      %s334 = scalar_lea.vmem %s4, %s333
      %p335 = pneg %p159
      %p336 = pneg %p156
      %p337 = pneg %p187
      %p338 = pneg %p184
      %s339 = smul.u32 2, %s22
      %p340 = scmp.lt.s32.totalorder %s23, 1
      %s341 = scalar_select %p340, %s23, 1
      %p342 = scmp.lt.s32.totalorder %s339, 1
      %s343 = scalar_select %p342, %s339, 1
      %s344 = smul.addr %s341, 2
      %s345 = sadd.s32 %s343, %s344
      %s346 = smul.addr %s345, 8
      %s347 = scalar_lea.vmem %s5, %s346
      %p348 = pneg %p215
      %p349 = pneg %p212
      %s350 = smul.u32 2, %s22
      %p351 = scmp.lt.s32.totalorder %s23, 1
      %s352 = scalar_select %p351, %s23, 1
      %p353 = scmp.lt.s32.totalorder %s350, 1
      %s354 = scalar_select %p353, %s350, 1
      %s355 = smul.addr %s352, 2
      %s356 = sadd.s32 %s354, %s355
      %s357 = smul.addr %s356, 8
      %s358 = scalar_lea.vmem %s6, %s357
      %s359 = smul.u32 2, %s22
      %p360 = scmp.lt.s32.totalorder %s23, 1
      %s361 = scalar_select %p360, %s23, 1
      %p362 = scmp.lt.s32.totalorder %s359, 1
      %s363 = scalar_select %p362, %s359, 1
      %s364 = smul.addr %s361, 2
      %s365 = sadd.s32 %s363, %s364
      %s366 = smul.addr %s365, 8
      %s367 = scalar_lea.vmem %s0, %s366
      %s368 = smul.u32 2, %s22
      %s369 = smul.u32 2, %s22
      %p370 = scmp.lt.s32.totalorder %s23, 1
      %s371 = scalar_select %p370, %s23, 1
      %p372 = scmp.lt.s32.totalorder %s369, 1
      %s373 = scalar_select %p372, %s369, 1
      %s374 = smul.addr %s371, 2
      %s375 = sadd.s32 %s373, %s374
      %s376 = smul.addr %s375, 8
      %s377 = scalar_lea.vmem %s1, %s376
      %s378 = smul.u32 2, %s22
      %s379 = smul.u32 2, %s22
      %p380 = scmp.lt.s32.totalorder %s379, 1
      %s381 = scalar_select %p380, %s379, 1
      %s382 = smul.addr %s381, 8
      %s383 = scalar_lea.vmem %s2, %s382
      %s384 = smul.u32 2, %s22
      %s385 = smul.u32 2, %s22
      %p386 = scmp.lt.s32.totalorder %s385, 1
      %s387 = scalar_select %p386, %s385, 1
      %s388 = smul.addr %s387, 8
      %s389 = scalar_lea.vmem %s3, %s388
      %s390 = smul.u32 2, %s22
      %s391 = smul.u32 2, %s22
      %p392 = scmp.lt.s32.totalorder %s391, 1
      %s393 = scalar_select %p392, %s391, 1
      %s394 = smul.addr %s393, 8
      %s395 = scalar_lea.vmem %s4, %s394
      %s396 = smul.u32 2, %s22
      %s397 = smul.u32 2, %s22
      %p398 = scmp.lt.s32.totalorder %s23, 1
      %s399 = scalar_select %p398, %s23, 1
      %p400 = scmp.lt.s32.totalorder %s397, 1
      %s401 = scalar_select %p400, %s397, 1
      %s402 = smul.addr %s399, 2
      %s403 = sadd.s32 %s401, %s402
      %s404 = smul.addr %s403, 8
      %s405 = scalar_lea.vmem %s5, %s404
      %s406 = smul.u32 2, %s22
      %s407 = smul.u32 2, %s22
      %p408 = scmp.lt.s32.totalorder %s23, 1
      %s409 = scalar_select %p408, %s23, 1
      %p410 = scmp.lt.s32.totalorder %s407, 1
      %s411 = scalar_select %p410, %s407, 1
      %s412 = smul.addr %s409, 2
      %s413 = sadd.s32 %s411, %s412
      %s414 = smul.addr %s413, 8
      %s415 = scalar_lea.vmem %s6, %s414
      %s416 = smul.u32 2, %s22
      %v417 = vld [vmem:[%s367] ss:$8 sm:$0x3]
      %v418 = vld [vmem:[%s377] ss:$8 sm:$0x3]
      %v419 = vld [vmem:[%s383] sm:$0xff]
      %v420 = vld [vmem:[%s383 + $0x8] sm:$0xff]
      %v421 = vadd.f32 %v417, %v418
      %v423 = vlaneseq
      %v424 = vshrl.u32 %v423, 7
      %v425 = vsub.s32 0, %v424
      %v426 = vrot.slane %v421, %v425
      %v427 = vlaneseq
      %v428 = vshrl.u32 %v427, 7
      %v429 = vsub.s32 1, %v428
      %v430 = vrot.slane %v421, %v429
      %v433 = vmul.f32 %v419, %v426
      %v434 = vmul.f32 %v420, %v430
      %v435 = vadd.f32 %v433, 0.0
      %v436 = vadd.f32 %v434, 0.0
      %v437 = vld [vmem:[%s389] sm:$0xff]
      %v438 = vld [vmem:[%s389 + $0x8] sm:$0xff]
      %v440 = vlaneseq
      %v441 = vshrl.u32 %v440, 7
      %v442 = vsub.s32 0, %v441
      %v443 = vrot.slane %v417, %v442
      %v444 = vlaneseq
      %v445 = vshrl.u32 %v444, 7
      %v446 = vsub.s32 1, %v445
      %v447 = vrot.slane %v417, %v446
      %v450 = vmul.f32 %v437, %v443
      %v451 = vmul.f32 %v438, %v447
      %v452 = vadd.f32 %v450, 0.0
      %v453 = vadd.f32 %v451, 0.0
      %v454 = vld [vmem:[%s395] sm:$0xff]
      %v455 = vld [vmem:[%s395 + $0x8] sm:$0xff]
      %v457 = vlaneseq
      %v458 = vshrl.u32 %v457, 7
      %v459 = vsub.s32 0, %v458
      %v460 = vrot.slane %v418, %v459
      %v461 = vlaneseq
      %v462 = vshrl.u32 %v461, 7
      %v463 = vsub.s32 1, %v462
      %v464 = vrot.slane %v418, %v463
      %v467 = vmul.f32 %v454, %v460
      %v468 = vmul.f32 %v455, %v464
      %v469 = vadd.f32 %v467, 0.0
      %v470 = vadd.f32 %v468, 0.0
      %s471 = scalar_lea.vmem %s367, 1
      %v472 = vld [vmem:[%s471] ss:$8 sm:$0x3]
      %s473 = scalar_lea.vmem %s377, 1
      %v474 = vld [vmem:[%s473] ss:$8 sm:$0x3]
      %s475 = scalar_lea.vmem %s383, 16
      %v476 = vld [vmem:[%s475] sm:$0xff]
      %v477 = vld [vmem:[%s475 + $0x8] sm:$0xff]
      %v478 = vadd.f32 %v472, %v474
      %v480 = vlaneseq
      %v481 = vshrl.u32 %v480, 7
      %v482 = vsub.s32 0, %v481
      %v483 = vrot.slane %v478, %v482
      %v484 = vlaneseq
      %v485 = vshrl.u32 %v484, 7
      %v486 = vsub.s32 1, %v485
      %v487 = vrot.slane %v478, %v486
      %v490 = vmul.f32 %v476, %v483
      %v491 = vmul.f32 %v477, %v487
      %v492 = vadd.f32 %v435, %v490
      %v493 = vadd.f32 %v436, %v491
      %s494 = scalar_lea.vmem %s389, 16
      %v495 = vld [vmem:[%s494] sm:$0xff]
      %v496 = vld [vmem:[%s494 + $0x8] sm:$0xff]
      %v498 = vlaneseq
      %v499 = vshrl.u32 %v498, 7
      %v500 = vsub.s32 0, %v499
      %v501 = vrot.slane %v472, %v500
      %v502 = vlaneseq
      %v503 = vshrl.u32 %v502, 7
      %v504 = vsub.s32 1, %v503
      %v505 = vrot.slane %v472, %v504
      %v508 = vmul.f32 %v495, %v501
      %v509 = vmul.f32 %v496, %v505
      %v510 = vadd.f32 %v452, %v508
      %v511 = vadd.f32 %v453, %v509
      %s512 = scalar_lea.vmem %s395, 16
      %v513 = vld [vmem:[%s512] sm:$0xff]
      %v514 = vld [vmem:[%s512 + $0x8] sm:$0xff]
      %v516 = vlaneseq
      %v517 = vshrl.u32 %v516, 7
      %v518 = vsub.s32 0, %v517
      %v519 = vrot.slane %v474, %v518
      %v520 = vlaneseq
      %v521 = vshrl.u32 %v520, 7
      %v522 = vsub.s32 1, %v521
      %v523 = vrot.slane %v474, %v522
      %v526 = vmul.f32 %v513, %v519
      %v527 = vmul.f32 %v514, %v523
      %v528 = vadd.f32 %v469, %v526
      %v529 = vadd.f32 %v470, %v527
      %s530 = scalar_lea.vmem %s367, 2
      %v531 = vld [vmem:[%s530] ss:$8 sm:$0x3]
      %s532 = scalar_lea.vmem %s377, 2
      %v533 = vld [vmem:[%s532] ss:$8 sm:$0x3]
      %s534 = scalar_lea.vmem %s383, 32
      %v535 = vld [vmem:[%s534] sm:$0xff]
      %v536 = vld [vmem:[%s534 + $0x8] sm:$0xff]
      %v537 = vadd.f32 %v531, %v533
      %v539 = vlaneseq
      %v540 = vshrl.u32 %v539, 7
      %v541 = vsub.s32 0, %v540
      %v542 = vrot.slane %v537, %v541
      %v543 = vlaneseq
      %v544 = vshrl.u32 %v543, 7
      %v545 = vsub.s32 1, %v544
      %v546 = vrot.slane %v537, %v545
      %v549 = vmul.f32 %v535, %v542
      %v550 = vmul.f32 %v536, %v546
      %v551 = vadd.f32 %v492, %v549
      %v552 = vadd.f32 %v493, %v550
      %s553 = scalar_lea.vmem %s389, 32
      %v554 = vld [vmem:[%s553] sm:$0xff]
      %v555 = vld [vmem:[%s553 + $0x8] sm:$0xff]
      %v557 = vlaneseq
      %v558 = vshrl.u32 %v557, 7
      %v559 = vsub.s32 0, %v558
      %v560 = vrot.slane %v531, %v559
      %v561 = vlaneseq
      %v562 = vshrl.u32 %v561, 7
      %v563 = vsub.s32 1, %v562
      %v564 = vrot.slane %v531, %v563
      %v567 = vmul.f32 %v554, %v560
      %v568 = vmul.f32 %v555, %v564
      %v569 = vadd.f32 %v510, %v567
      %v570 = vadd.f32 %v511, %v568
      %s571 = scalar_lea.vmem %s395, 32
      %v572 = vld [vmem:[%s571] sm:$0xff]
      %v573 = vld [vmem:[%s571 + $0x8] sm:$0xff]
      %v575 = vlaneseq
      %v576 = vshrl.u32 %v575, 7
      %v577 = vsub.s32 0, %v576
      %v578 = vrot.slane %v533, %v577
      %v579 = vlaneseq
      %v580 = vshrl.u32 %v579, 7
      %v581 = vsub.s32 1, %v580
      %v582 = vrot.slane %v533, %v581
      %v585 = vmul.f32 %v572, %v578
      %v586 = vmul.f32 %v573, %v582
      %v587 = vadd.f32 %v528, %v585
      %v588 = vadd.f32 %v529, %v586
      %s589 = scalar_lea.vmem %s367, 3
      %v590 = vld [vmem:[%s589] ss:$8 sm:$0x3]
      %s591 = scalar_lea.vmem %s377, 3
      %v592 = vld [vmem:[%s591] ss:$8 sm:$0x3]
      %s593 = scalar_lea.vmem %s383, 48
      %v594 = vld [vmem:[%s593] sm:$0xff]
      %v595 = vld [vmem:[%s593 + $0x8] sm:$0xff]
      %v596 = vadd.f32 %v590, %v592
      %v598 = vlaneseq
      %v599 = vshrl.u32 %v598, 7
      %v600 = vsub.s32 0, %v599
      %v601 = vrot.slane %v596, %v600
      %v602 = vlaneseq
      %v603 = vshrl.u32 %v602, 7
      %v604 = vsub.s32 1, %v603
      %v605 = vrot.slane %v596, %v604
      %v608 = vmul.f32 %v594, %v601
      %v609 = vmul.f32 %v595, %v605
      %v610 = vadd.f32 %v551, %v608
      %v611 = vadd.f32 %v552, %v609
      %s612 = scalar_lea.vmem %s389, 48
      %v613 = vld [vmem:[%s612] sm:$0xff]
      %v614 = vld [vmem:[%s612 + $0x8] sm:$0xff]
      %v616 = vlaneseq
      %v617 = vshrl.u32 %v616, 7
      %v618 = vsub.s32 0, %v617
      %v619 = vrot.slane %v590, %v618
      %v620 = vlaneseq
      %v621 = vshrl.u32 %v620, 7
      %v622 = vsub.s32 1, %v621
      %v623 = vrot.slane %v590, %v622
      %v626 = vmul.f32 %v613, %v619
      %v627 = vmul.f32 %v614, %v623
      %v628 = vadd.f32 %v569, %v626
      %v629 = vadd.f32 %v570, %v627
      %s630 = scalar_lea.vmem %s395, 48
      %v631 = vld [vmem:[%s630] sm:$0xff]
      %v632 = vld [vmem:[%s630 + $0x8] sm:$0xff]
      %v634 = vlaneseq
      %v635 = vshrl.u32 %v634, 7
      %v636 = vsub.s32 0, %v635
      %v637 = vrot.slane %v592, %v636
      %v638 = vlaneseq
      %v639 = vshrl.u32 %v638, 7
      %v640 = vsub.s32 1, %v639
      %v641 = vrot.slane %v592, %v640
      %v644 = vmul.f32 %v631, %v637
      %v645 = vmul.f32 %v632, %v641
      %v646 = vadd.f32 %v587, %v644
      %v647 = vadd.f32 %v588, %v645
      %s648 = scalar_lea.vmem %s367, 4
      %v649 = vld [vmem:[%s648] ss:$8 sm:$0x3]
      %s650 = scalar_lea.vmem %s377, 4
      %v651 = vld [vmem:[%s650] ss:$8 sm:$0x3]
      %s652 = scalar_lea.vmem %s383, 64
      %v653 = vld [vmem:[%s652] sm:$0xff]
      %v654 = vld [vmem:[%s652 + $0x8] sm:$0xff]
      %v655 = vadd.f32 %v649, %v651
      %v657 = vlaneseq
      %v658 = vshrl.u32 %v657, 7
      %v659 = vsub.s32 0, %v658
      %v660 = vrot.slane %v655, %v659
      %v661 = vlaneseq
      %v662 = vshrl.u32 %v661, 7
      %v663 = vsub.s32 1, %v662
      %v664 = vrot.slane %v655, %v663
      %v667 = vmul.f32 %v653, %v660
      %v668 = vmul.f32 %v654, %v664
      %v669 = vadd.f32 %v610, %v667
      %v670 = vadd.f32 %v611, %v668
      %s671 = scalar_lea.vmem %s389, 64
      %v672 = vld [vmem:[%s671] sm:$0xff]
      %v673 = vld [vmem:[%s671 + $0x8] sm:$0xff]
      %v675 = vlaneseq
      %v676 = vshrl.u32 %v675, 7
      %v677 = vsub.s32 0, %v676
      %v678 = vrot.slane %v649, %v677
      %v679 = vlaneseq
      %v680 = vshrl.u32 %v679, 7
      %v681 = vsub.s32 1, %v680
      %v682 = vrot.slane %v649, %v681
      %v685 = vmul.f32 %v672, %v678
      %v686 = vmul.f32 %v673, %v682
      %v687 = vadd.f32 %v628, %v685
      %v688 = vadd.f32 %v629, %v686
      %s689 = scalar_lea.vmem %s395, 64
      %v690 = vld [vmem:[%s689] sm:$0xff]
      %v691 = vld [vmem:[%s689 + $0x8] sm:$0xff]
      %v693 = vlaneseq
      %v694 = vshrl.u32 %v693, 7
      %v695 = vsub.s32 0, %v694
      %v696 = vrot.slane %v651, %v695
      %v697 = vlaneseq
      %v698 = vshrl.u32 %v697, 7
      %v699 = vsub.s32 1, %v698
      %v700 = vrot.slane %v651, %v699
      %v703 = vmul.f32 %v690, %v696
      %v704 = vmul.f32 %v691, %v700
      %v705 = vadd.f32 %v646, %v703
      %v706 = vadd.f32 %v647, %v704
      %s707 = scalar_lea.vmem %s367, 5
      %v708 = vld [vmem:[%s707] ss:$8 sm:$0x3]
      %s709 = scalar_lea.vmem %s377, 5
      %v710 = vld [vmem:[%s709] ss:$8 sm:$0x3]
      %s711 = scalar_lea.vmem %s383, 80
      %v712 = vld [vmem:[%s711] sm:$0xff]
      %v713 = vld [vmem:[%s711 + $0x8] sm:$0xff]
      %v714 = vadd.f32 %v708, %v710
      %v716 = vlaneseq
      %v717 = vshrl.u32 %v716, 7
      %v718 = vsub.s32 0, %v717
      %v719 = vrot.slane %v714, %v718
      %v720 = vlaneseq
      %v721 = vshrl.u32 %v720, 7
      %v722 = vsub.s32 1, %v721
      %v723 = vrot.slane %v714, %v722
      %v726 = vmul.f32 %v712, %v719
      %v727 = vmul.f32 %v713, %v723
      %v728 = vadd.f32 %v669, %v726
      %v729 = vadd.f32 %v670, %v727
      %s730 = scalar_lea.vmem %s389, 80
      %v731 = vld [vmem:[%s730] sm:$0xff]
      %v732 = vld [vmem:[%s730 + $0x8] sm:$0xff]
      %v734 = vlaneseq
      %v735 = vshrl.u32 %v734, 7
      %v736 = vsub.s32 0, %v735
      %v737 = vrot.slane %v708, %v736
      %v738 = vlaneseq
      %v739 = vshrl.u32 %v738, 7
      %v740 = vsub.s32 1, %v739
      %v741 = vrot.slane %v708, %v740
      %v744 = vmul.f32 %v731, %v737
      %v745 = vmul.f32 %v732, %v741
      %v746 = vadd.f32 %v687, %v744
      %v747 = vadd.f32 %v688, %v745
      %s748 = scalar_lea.vmem %s395, 80
      %v749 = vld [vmem:[%s748] sm:$0xff]
      %v750 = vld [vmem:[%s748 + $0x8] sm:$0xff]
      %v752 = vlaneseq
      %v753 = vshrl.u32 %v752, 7
      %v754 = vsub.s32 0, %v753
      %v755 = vrot.slane %v710, %v754
      %v756 = vlaneseq
      %v757 = vshrl.u32 %v756, 7
      %v758 = vsub.s32 1, %v757
      %v759 = vrot.slane %v710, %v758
      %v762 = vmul.f32 %v749, %v755
      %v763 = vmul.f32 %v750, %v759
      %v764 = vadd.f32 %v705, %v762
      %v765 = vadd.f32 %v706, %v763
      %s766 = scalar_lea.vmem %s367, 6
      %v767 = vld [vmem:[%s766] ss:$8 sm:$0x3]
      %s768 = scalar_lea.vmem %s377, 6
      %v769 = vld [vmem:[%s768] ss:$8 sm:$0x3]
      %s770 = scalar_lea.vmem %s383, 96
      %v771 = vld [vmem:[%s770] sm:$0xff]
      %v772 = vld [vmem:[%s770 + $0x8] sm:$0xff]
      %v773 = vadd.f32 %v767, %v769
      %v775 = vlaneseq
      %v776 = vshrl.u32 %v775, 7
      %v777 = vsub.s32 0, %v776
      %v778 = vrot.slane %v773, %v777
      %v779 = vlaneseq
      %v780 = vshrl.u32 %v779, 7
      %v781 = vsub.s32 1, %v780
      %v782 = vrot.slane %v773, %v781
      %v785 = vmul.f32 %v771, %v778
      %v786 = vmul.f32 %v772, %v782
      %v787 = vadd.f32 %v728, %v785
      %v788 = vadd.f32 %v729, %v786
      %s789 = scalar_lea.vmem %s389, 96
      %v790 = vld [vmem:[%s789] sm:$0xff]
      %v791 = vld [vmem:[%s789 + $0x8] sm:$0xff]
      %v793 = vlaneseq
      %v794 = vshrl.u32 %v793, 7
      %v795 = vsub.s32 0, %v794
      %v796 = vrot.slane %v767, %v795
      %v797 = vlaneseq
      %v798 = vshrl.u32 %v797, 7
      %v799 = vsub.s32 1, %v798
      %v800 = vrot.slane %v767, %v799
      %v803 = vmul.f32 %v790, %v796
      %v804 = vmul.f32 %v791, %v800
      %v805 = vadd.f32 %v746, %v803
      %v806 = vadd.f32 %v747, %v804
      %s807 = scalar_lea.vmem %s395, 96
      %v808 = vld [vmem:[%s807] sm:$0xff]
      %v809 = vld [vmem:[%s807 + $0x8] sm:$0xff]
      %v811 = vlaneseq
      %v812 = vshrl.u32 %v811, 7
      %v813 = vsub.s32 0, %v812
      %v814 = vrot.slane %v769, %v813
      %v815 = vlaneseq
      %v816 = vshrl.u32 %v815, 7
      %v817 = vsub.s32 1, %v816
      %v818 = vrot.slane %v769, %v817
      %v821 = vmul.f32 %v808, %v814
      %v822 = vmul.f32 %v809, %v818
      %v823 = vadd.f32 %v764, %v821
      %v824 = vadd.f32 %v765, %v822
      %s825 = scalar_lea.vmem %s367, 7
      %v826 = vld [vmem:[%s825] ss:$8 sm:$0x3]
      %s827 = scalar_lea.vmem %s377, 7
      %v828 = vld [vmem:[%s827] ss:$8 sm:$0x3]
      %s829 = scalar_lea.vmem %s383, 112
      %v830 = vld [vmem:[%s829] sm:$0xff]
      %v831 = vld [vmem:[%s829 + $0x8] sm:$0xff]
      %v832 = vadd.f32 %v826, %v828
      %v834 = vlaneseq
      %v835 = vshrl.u32 %v834, 7
      %v836 = vsub.s32 0, %v835
      %v837 = vrot.slane %v832, %v836
      %v838 = vlaneseq
      %v839 = vshrl.u32 %v838, 7
      %v840 = vsub.s32 1, %v839
      %v841 = vrot.slane %v832, %v840
      %v844 = vmul.f32 %v830, %v837
      %v845 = vmul.f32 %v831, %v841
      %v846 = vadd.f32 %v787, %v844
      %v847 = vadd.f32 %v788, %v845
      %s848 = scalar_lea.vmem %s389, 112
      %v849 = vld [vmem:[%s848] sm:$0xff]
      %v850 = vld [vmem:[%s848 + $0x8] sm:$0xff]
      %v852 = vlaneseq
      %v853 = vshrl.u32 %v852, 7
      %v854 = vsub.s32 0, %v853
      %v855 = vrot.slane %v826, %v854
      %v856 = vlaneseq
      %v857 = vshrl.u32 %v856, 7
      %v858 = vsub.s32 1, %v857
      %v859 = vrot.slane %v826, %v858
      %v862 = vmul.f32 %v849, %v855
      %v863 = vmul.f32 %v850, %v859
      %v864 = vadd.f32 %v805, %v862
      %v865 = vadd.f32 %v806, %v863
      %s866 = scalar_lea.vmem %s395, 112
      %v867 = vld [vmem:[%s866] sm:$0xff]
      %v868 = vld [vmem:[%s866 + $0x8] sm:$0xff]
      %v870 = vlaneseq
      %v871 = vshrl.u32 %v870, 7
      %v872 = vsub.s32 0, %v871
      %v873 = vrot.slane %v828, %v872
      %v874 = vlaneseq
      %v875 = vshrl.u32 %v874, 7
      %v876 = vsub.s32 1, %v875
      %v877 = vrot.slane %v828, %v876
      %v880 = vmul.f32 %v867, %v873
      %v881 = vmul.f32 %v868, %v877
      %v882 = vadd.f32 %v823, %v880
      %v883 = vadd.f32 %v824, %v881
      %v884 = vsub.f32 %v846, %v882
      %v885 = vsub.f32 %v847, %v883
      %886 = vst [vmem:[%s405] sm:$0xff] %v884
      %887 = vst [vmem:[%s405 + $0x8] sm:$0xff] %v885
      %v888 = vadd.f32 %v846, %v864
      %v889 = vadd.f32 %v847, %v865
      %890 = vst [vmem:[%s415] sm:$0xff] %v888
      %891 = vst [vmem:[%s415 + $0x8] sm:$0xff] %v889
      %s892 = smul.u32 2, %s22
      %p893 = scmp.lt.s32.totalorder %s23, 1
      %s894 = scalar_select %p893, %s23, 1
      %p895 = scmp.lt.s32.totalorder %s892, 1
      %s896 = scalar_select %p895, %s892, 1
      %s897 = smul.addr %s894, 2
      %s898 = sadd.s32 %s896, %s897
      %s899 = smul.addr %s898, 8
      %s900 = scalar_lea.vmem %s5, %s899
      %s901 = smul.u32 2, %s22
      %p902 = scmp.lt.s32.totalorder %s23, 1
      %s903 = scalar_select %p902, %s23, 1
      %p904 = scmp.lt.s32.totalorder %s901, 1
      %s905 = scalar_select %p904, %s901, 1
      %s906 = smul.addr %s903, 2
      %s907 = sadd.s32 %s905, %s906
      %s908 = smul.addr %s907, 8
      %s909 = scalar_lea.vmem %s6, %s908
      // Predicated region
      $region41: #{_lambda_.11} parent=39 // pred_check
        %p910 = pneg %p184
      $region42: #{_lambda_.11} parent=39 // pred_check_branch
        %912 = sbr.rel (%p910) target = $region44
      $region43: #{_lambda_.11} parent=39 // pred_region
        %s913 = smul.u32 2, %s22
      $region44: #{_lambda_.11} parent=39 // pred_fallthru
        _
      // Predicated region
      $region45: #{_lambda_.11} parent=39 // pred_check
        %p914 = pneg %p212
      $region46: #{_lambda_.11} parent=39 // pred_check_branch
        %916 = sbr.rel (%p914) target = $region48
      $region47: #{_lambda_.11} parent=39 // pred_region
        %s917 = smul.u32 2, %s22
      $region48: #{_lambda_.11} parent=39 // pred_fallthru
        _
    $region40: #{_lambda_.11} parent=5 // pred_fallthru
      _
    %p918 = scmp.le.s32.totalorder 2, %s13
    // Predicated region
    $region49: #{_lambda_.11} parent=5 // pred_check
      %p919 = pneg %p918
    $region50: #{_lambda_.11} parent=5 // pred_check_branch
      %921 = sbr.rel (%p919) target = $region52
    $region51: #{_lambda_.11} parent=5 // pred_region
      %s922 = ssub.s32 %s13, 2
      // Predicated region
      $region53: #{_lambda_.11} parent=51 // pred_check
        %p923 = pneg %p190
      $region54: #{_lambda_.11} parent=51 // pred_check_branch
        %925 = sbr.rel (%p923) target = $region56
      $region55: #{_lambda_.11} parent=51 // pred_region
        %s926 = smul.u32 2, %s24
        %p927 = scmp.lt.s32.totalorder %s25, 1
        %s928 = scalar_select %p927, %s25, 1
        %p929 = scmp.lt.s32.totalorder %s926, 1
        %s930 = scalar_select %p929, %s926, 1
        %s931 = smul.addr %s928, 2
        %s932 = sadd.s32 %s930, %s931
        %s933 = smul.addr %s932, 8
        %s934 = scalar_lea.vmem %s5, %s933
      $region56: #{_lambda_.11} parent=51 // pred_fallthru
        _
      // Predicated region
      $region57: #{_lambda_.11} parent=51 // pred_check
        %p935 = pneg %p218
      $region58: #{_lambda_.11} parent=51 // pred_check_branch
        %937 = sbr.rel (%p935) target = $region60
      $region59: #{_lambda_.11} parent=51 // pred_region
        %s938 = smul.u32 2, %s24
        %p939 = scmp.lt.s32.totalorder %s25, 1
        %s940 = scalar_select %p939, %s25, 1
        %p941 = scmp.lt.s32.totalorder %s938, 1
        %s942 = scalar_select %p941, %s938, 1
        %s943 = smul.addr %s940, 2
        %s944 = sadd.s32 %s942, %s943
        %s945 = smul.addr %s944, 8
        %s946 = scalar_lea.vmem %s6, %s945
      $region60: #{_lambda_.11} parent=51 // pred_fallthru
        _
    $region52: #{_lambda_.11} parent=5 // pred_fallthru
      _
  $region6: #{_lambda_.11} parent=0 // loop_footer
    %s17 = sadd.s32 1, %s13
  $region7: #{_lambda_.11} parent=0 // loop_footer_branch
    %12 = sbr.rel target = $region3
  $region8: #{_lambda_.11} parent=0 // loop_exit
    _

// kernel: reverse.8
$region0: #{reverse.8}
  #allocation0 [shape = 's32[1]{0}', space=sflag, size = 0x4, scoped, tag = 'scoped memory for reverse.8']
  %s0 = inlined_call_operand.vmem [shape: f32[2,8,11,11,5], index: 0, kind: input, shape index: {}]
  %s1 = inlined_call_operand.vmem [shape: f32[2,8,11,11,5], index: 1, kind: output, shape index: {}]
  %s2 = scalar_lea.vmem %s0, 64
  %v3 = vld [vmem:[%s2] sm:$0xff]
  %4 = vst [vmem:[%s1] sm:$0xff] %v3
  %s5 = scalar_lea.vmem %s0, 704
  %v6 = vld [vmem:[%s5] sm:$0xff]
  %s7 = scalar_lea.vmem %s1, 640
  %8 = vst [vmem:[%s7] sm:$0xff] %v6
  %s9 = scalar_lea.vmem %s0, 144
  %v10 = vld [vmem:[%s9] sm:$0xff]
  %s11 = scalar_lea.vmem %s1, 80
  %12 = vst [vmem:[%s11] sm:$0xff] %v10
  %s13 = scalar_lea.vmem %s0, 784
  %v14 = vld [vmem:[%s13] sm:$0xff]
  %s15 = scalar_lea.vmem %s1, 720
  %16 = vst [vmem:[%s15] sm:$0xff] %v14
  %s17 = scalar_lea.vmem %s0, 224
  %v18 = vld [vmem:[%s17] sm:$0xff]
  %s19 = scalar_lea.vmem %s1, 160
  %20 = vst [vmem:[%s19] sm:$0xff] %v18
  %s21 = scalar_lea.vmem %s0, 864
  %v22 = vld [vmem:[%s21] sm:$0xff]
  %s23 = scalar_lea.vmem %s1, 800
  %24 = vst [vmem:[%s23] sm:$0xff] %v22
  %s25 = scalar_lea.vmem %s0, 304
  %v26 = vld [vmem:[%s25] sm:$0xff]
  %s27 = scalar_lea.vmem %s1, 240
  %28 = vst [vmem:[%s27] sm:$0xff] %v26
  %s29 = scalar_lea.vmem %s0, 944
  %v30 = vld [vmem:[%s29] sm:$0xff]
  %s31 = scalar_lea.vmem %s1, 880
  %32 = vst [vmem:[%s31] sm:$0xff] %v30
  %s33 = scalar_lea.vmem %s0, 384
  %v34 = vld [vmem:[%s33] sm:$0xff]
  %s35 = scalar_lea.vmem %s1, 320
  %36 = vst [vmem:[%s35] sm:$0xff] %v34
  %s37 = scalar_lea.vmem %s0, 1024
  %v38 = vld [vmem:[%s37] sm:$0xff]
  %s39 = scalar_lea.vmem %s1, 960
  %40 = vst [vmem:[%s39] sm:$0xff] %v38
  %s41 = scalar_lea.vmem %s0, 464
  %v42 = vld [vmem:[%s41] sm:$0xff]
  %s43 = scalar_lea.vmem %s1, 400
  %44 = vst [vmem:[%s43] sm:$0xff] %v42
  %s45 = scalar_lea.vmem %s0, 1104
  %v46 = vld [vmem:[%s45] sm:$0xff]
  %s47 = scalar_lea.vmem %s1, 1040
  %48 = vst [vmem:[%s47] sm:$0xff] %v46
  %s49 = scalar_lea.vmem %s0, 544
  %v50 = vld [vmem:[%s49] sm:$0xff]
  %s51 = scalar_lea.vmem %s1, 480
  %52 = vst [vmem:[%s51] sm:$0xff] %v50
  %s53 = scalar_lea.vmem %s0, 1184
  %v54 = vld [vmem:[%s53] sm:$0xff]
  %s55 = scalar_lea.vmem %s1, 1120
  %56 = vst [vmem:[%s55] sm:$0xff] %v54
  %s57 = scalar_lea.vmem %s0, 624
  %v58 = vld [vmem:[%s57] sm:$0xff]
  %s59 = scalar_lea.vmem %s1, 560
  %60 = vst [vmem:[%s59] sm:$0xff] %v58
  %s61 = scalar_lea.vmem %s0, 1264
  %v62 = vld [vmem:[%s61] sm:$0xff]
  %s63 = scalar_lea.vmem %s1, 1200
  %64 = vst [vmem:[%s63] sm:$0xff] %v62
  %s65 = scalar_lea.vmem %s0, 48
  %v66 = vld [vmem:[%s65] sm:$0xff]
  %s67 = scalar_lea.vmem %s1, 16
  %68 = vst [vmem:[%s67] sm:$0xff] %v66
  %s69 = scalar_lea.vmem %s0, 688
  %v70 = vld [vmem:[%s69] sm:$0xff]
  %s71 = scalar_lea.vmem %s1, 656
  %72 = vst [vmem:[%s71] sm:$0xff] %v70
  %s73 = scalar_lea.vmem %s0, 128
  %v74 = vld [vmem:[%s73] sm:$0xff]
  %s75 = scalar_lea.vmem %s1, 96
  %76 = vst [vmem:[%s75] sm:$0xff] %v74
  %s77 = scalar_lea.vmem %s0, 768
  %v78 = vld [vmem:[%s77] sm:$0xff]
  %s79 = scalar_lea.vmem %s1, 736
  %80 = vst [vmem:[%s79] sm:$0xff] %v78
  %s81 = scalar_lea.vmem %s0, 208
  %v82 = vld [vmem:[%s81] sm:$0xff]
  %s83 = scalar_lea.vmem %s1, 176
  %84 = vst [vmem:[%s83] sm:$0xff] %v82
  %s85 = scalar_lea.vmem %s0, 848
  %v86 = vld [vmem:[%s85] sm:$0xff]
  %s87 = scalar_lea.vmem %s1, 816
  %88 = vst [vmem:[%s87] sm:$0xff] %v86
  %s89 = scalar_lea.vmem %s0, 288
  %v90 = vld [vmem:[%s89] sm:$0xff]
  %s91 = scalar_lea.vmem %s1, 256
  %92 = vst [vmem:[%s91] sm:$0xff] %v90
  %s93 = scalar_lea.vmem %s0, 928
  %v94 = vld [vmem:[%s93] sm:$0xff]
  %s95 = scalar_lea.vmem %s1, 896
  %96 = vst [vmem:[%s95] sm:$0xff] %v94
  %s97 = scalar_lea.vmem %s0, 368
  %v98 = vld [vmem:[%s97] sm:$0xff]
  %s99 = scalar_lea.vmem %s1, 336
  %100 = vst [vmem:[%s99] sm:$0xff] %v98
  %s101 = scalar_lea.vmem %s0, 1008
  %v102 = vld [vmem:[%s101] sm:$0xff]
  %s103 = scalar_lea.vmem %s1, 976
  %104 = vst [vmem:[%s103] sm:$0xff] %v102
  %s105 = scalar_lea.vmem %s0, 448
  %v106 = vld [vmem:[%s105] sm:$0xff]
  %s107 = scalar_lea.vmem %s1, 416
  %108 = vst [vmem:[%s107] sm:$0xff] %v106
  %s109 = scalar_lea.vmem %s0, 1088
  %v110 = vld [vmem:[%s109] sm:$0xff]
  %s111 = scalar_lea.vmem %s1, 1056
  %112 = vst [vmem:[%s111] sm:$0xff] %v110
  %s113 = scalar_lea.vmem %s0, 528
  %v114 = vld [vmem:[%s113] sm:$0xff]
  %s115 = scalar_lea.vmem %s1, 496
  %116 = vst [vmem:[%s115] sm:$0xff] %v114
  %s117 = scalar_lea.vmem %s0, 1168
  %v118 = vld [vmem:[%s117] sm:$0xff]
  %s119 = scalar_lea.vmem %s1, 1136
  %120 = vst [vmem:[%s119] sm:$0xff] %v118
  %s121 = scalar_lea.vmem %s0, 608
  %v122 = vld [vmem:[%s121] sm:$0xff]
  %s123 = scalar_lea.vmem %s1, 576
  %124 = vst [vmem:[%s123] sm:$0xff] %v122
  %s125 = scalar_lea.vmem %s0, 1248
  %v126 = vld [vmem:[%s125] sm:$0xff]
  %s127 = scalar_lea.vmem %s1, 1216
  %128 = vst [vmem:[%s127] sm:$0xff] %v126
  %s129 = scalar_lea.vmem %s0, 32
  %v130 = vld [vmem:[%s129] sm:$0xff]
  %s131 = scalar_lea.vmem %s1, 32
  %132 = vst [vmem:[%s131] sm:$0xff] %v130
  %s133 = scalar_lea.vmem %s0, 672
  %v134 = vld [vmem:[%s133] sm:$0xff]
  %s135 = scalar_lea.vmem %s1, 672
  %136 = vst [vmem:[%s135] sm:$0xff] %v134
  %s137 = scalar_lea.vmem %s0, 112
  %v138 = vld [vmem:[%s137] sm:$0xff]
  %s139 = scalar_lea.vmem %s1, 112
  %140 = vst [vmem:[%s139] sm:$0xff] %v138
  %s141 = scalar_lea.vmem %s0, 752
  %v142 = vld [vmem:[%s141] sm:$0xff]
  %s143 = scalar_lea.vmem %s1, 752
  %144 = vst [vmem:[%s143] sm:$0xff] %v142
  %s145 = scalar_lea.vmem %s0, 192
  %v146 = vld [vmem:[%s145] sm:$0xff]
  %s147 = scalar_lea.vmem %s1, 192
  %148 = vst [vmem:[%s147] sm:$0xff] %v146
  %s149 = scalar_lea.vmem %s0, 832
  %v150 = vld [vmem:[%s149] sm:$0xff]
  %s151 = scalar_lea.vmem %s1, 832
  %152 = vst [vmem:[%s151] sm:$0xff] %v150
  %s153 = scalar_lea.vmem %s0, 272
  %v154 = vld [vmem:[%s153] sm:$0xff]
  %s155 = scalar_lea.vmem %s1, 272
  %156 = vst [vmem:[%s155] sm:$0xff] %v154
  %s157 = scalar_lea.vmem %s0, 912
  %v158 = vld [vmem:[%s157] sm:$0xff]
  %s159 = scalar_lea.vmem %s1, 912
  %160 = vst [vmem:[%s159] sm:$0xff] %v158
  %s161 = scalar_lea.vmem %s0, 352
  %v162 = vld [vmem:[%s161] sm:$0xff]
  %s163 = scalar_lea.vmem %s1, 352
  %164 = vst [vmem:[%s163] sm:$0xff] %v162
  %s165 = scalar_lea.vmem %s0, 992
  %v166 = vld [vmem:[%s165] sm:$0xff]
  %s167 = scalar_lea.vmem %s1, 992
  %168 = vst [vmem:[%s167] sm:$0xff] %v166
  %s169 = scalar_lea.vmem %s0, 432
  %v170 = vld [vmem:[%s169] sm:$0xff]
  %s171 = scalar_lea.vmem %s1, 432
  %172 = vst [vmem:[%s171] sm:$0xff] %v170
  %s173 = scalar_lea.vmem %s0, 1072
  %v174 = vld [vmem:[%s173] sm:$0xff]
  %s175 = scalar_lea.vmem %s1, 1072
  %176 = vst [vmem:[%s175] sm:$0xff] %v174
  %s177 = scalar_lea.vmem %s0, 512
  %v178 = vld [vmem:[%s177] sm:$0xff]
  %s179 = scalar_lea.vmem %s1, 512
  %180 = vst [vmem:[%s179] sm:$0xff] %v178
  %s181 = scalar_lea.vmem %s0, 1152
  %v182 = vld [vmem:[%s181] sm:$0xff]
  %s183 = scalar_lea.vmem %s1, 1152
  %184 = vst [vmem:[%s183] sm:$0xff] %v182
  %s185 = scalar_lea.vmem %s0, 592
  %v186 = vld [vmem:[%s185] sm:$0xff]
  %s187 = scalar_lea.vmem %s1, 592
  %188 = vst [vmem:[%s187] sm:$0xff] %v186
  %s189 = scalar_lea.vmem %s0, 1232
  %v190 = vld [vmem:[%s189] sm:$0xff]
  %s191 = scalar_lea.vmem %s1, 1232
  %192 = vst [vmem:[%s191] sm:$0xff] %v190
  %s193 = scalar_lea.vmem %s0, 16
  %v194 = vld [vmem:[%s193] sm:$0xff]
  %s195 = scalar_lea.vmem %s1, 48
  %196 = vst [vmem:[%s195] sm:$0xff] %v194
  %s197 = scalar_lea.vmem %s0, 656
  %v198 = vld [vmem:[%s197] sm:$0xff]
  %s199 = scalar_lea.vmem %s1, 688
  %200 = vst [vmem:[%s199] sm:$0xff] %v198
  %s201 = scalar_lea.vmem %s0, 96
  %v202 = vld [vmem:[%s201] sm:$0xff]
  %s203 = scalar_lea.vmem %s1, 128
  %204 = vst [vmem:[%s203] sm:$0xff] %v202
  %s205 = scalar_lea.vmem %s0, 736
  %v206 = vld [vmem:[%s205] sm:$0xff]
  %s207 = scalar_lea.vmem %s1, 768
  %208 = vst [vmem:[%s207] sm:$0xff] %v206
  %s209 = scalar_lea.vmem %s0, 176
  %v210 = vld [vmem:[%s209] sm:$0xff]
  %s211 = scalar_lea.vmem %s1, 208
  %212 = vst [vmem:[%s211] sm:$0xff] %v210
  %s213 = scalar_lea.vmem %s0, 816
  %v214 = vld [vmem:[%s213] sm:$0xff]
  %s215 = scalar_lea.vmem %s1, 848
  %216 = vst [vmem:[%s215] sm:$0xff] %v214
  %s217 = scalar_lea.vmem %s0, 256
  %v218 = vld [vmem:[%s217] sm:$0xff]
  %s219 = scalar_lea.vmem %s1, 288
  %220 = vst [vmem:[%s219] sm:$0xff] %v218
  %s221 = scalar_lea.vmem %s0, 896
  %v222 = vld [vmem:[%s221] sm:$0xff]
  %s223 = scalar_lea.vmem %s1, 928
  %224 = vst [vmem:[%s223] sm:$0xff] %v222
  %s225 = scalar_lea.vmem %s0, 336
  %v226 = vld [vmem:[%s225] sm:$0xff]
  %s227 = scalar_lea.vmem %s1, 368
  %228 = vst [vmem:[%s227] sm:$0xff] %v226
  %s229 = scalar_lea.vmem %s0, 976
  %v230 = vld [vmem:[%s229] sm:$0xff]
  %s231 = scalar_lea.vmem %s1, 1008
  %232 = vst [vmem:[%s231] sm:$0xff] %v230
  %s233 = scalar_lea.vmem %s0, 416
  %v234 = vld [vmem:[%s233] sm:$0xff]
  %s235 = scalar_lea.vmem %s1, 448
  %236 = vst [vmem:[%s235] sm:$0xff] %v234
  %s237 = scalar_lea.vmem %s0, 1056
  %v238 = vld [vmem:[%s237] sm:$0xff]
  %s239 = scalar_lea.vmem %s1, 1088
  %240 = vst [vmem:[%s239] sm:$0xff] %v238
  %s241 = scalar_lea.vmem %s0, 496
  %v242 = vld [vmem:[%s241] sm:$0xff]
  %s243 = scalar_lea.vmem %s1, 528
  %244 = vst [vmem:[%s243] sm:$0xff] %v242
  %s245 = scalar_lea.vmem %s0, 1136
  %v246 = vld [vmem:[%s245] sm:$0xff]
  %s247 = scalar_lea.vmem %s1, 1168
  %248 = vst [vmem:[%s247] sm:$0xff] %v246
  %s249 = scalar_lea.vmem %s0, 576
  %v250 = vld [vmem:[%s249] sm:$0xff]
  %s251 = scalar_lea.vmem %s1, 608
  %252 = vst [vmem:[%s251] sm:$0xff] %v250
  %s253 = scalar_lea.vmem %s0, 1216
  %v254 = vld [vmem:[%s253] sm:$0xff]
  %s255 = scalar_lea.vmem %s1, 1248
  %256 = vst [vmem:[%s255] sm:$0xff] %v254
  %v257 = vld [vmem:[%s0] sm:$0xff]
  %s258 = scalar_lea.vmem %s1, 64
  %259 = vst [vmem:[%s258] sm:$0xff] %v257
  %s260 = scalar_lea.vmem %s0, 640
  %v261 = vld [vmem:[%s260] sm:$0xff]
  %s262 = scalar_lea.vmem %s1, 704
  %263 = vst [vmem:[%s262] sm:$0xff] %v261
  %s264 = scalar_lea.vmem %s0, 80
  %v265 = vld [vmem:[%s264] sm:$0xff]
  %s266 = scalar_lea.vmem %s1, 144
  %267 = vst [vmem:[%s266] sm:$0xff] %v265
  %s268 = scalar_lea.vmem %s0, 720
  %v269 = vld [vmem:[%s268] sm:$0xff]
  %s270 = scalar_lea.vmem %s1, 784
  %271 = vst [vmem:[%s270] sm:$0xff] %v269
  %s272 = scalar_lea.vmem %s0, 160
  %v273 = vld [vmem:[%s272] sm:$0xff]
  %s274 = scalar_lea.vmem %s1, 224
  %275 = vst [vmem:[%s274] sm:$0xff] %v273
  %s276 = scalar_lea.vmem %s0, 800
  %v277 = vld [vmem:[%s276] sm:$0xff]
  %s278 = scalar_lea.vmem %s1, 864
  %279 = vst [vmem:[%s278] sm:$0xff] %v277
  %s280 = scalar_lea.vmem %s0, 240
  %v281 = vld [vmem:[%s280] sm:$0xff]
  %s282 = scalar_lea.vmem %s1, 304
  %283 = vst [vmem:[%s282] sm:$0xff] %v281
  %s284 = scalar_lea.vmem %s0, 880
  %v285 = vld [vmem:[%s284] sm:$0xff]
  %s286 = scalar_lea.vmem %s1, 944
  %287 = vst [vmem:[%s286] sm:$0xff] %v285
  %s288 = scalar_lea.vmem %s0, 320
  %v289 = vld [vmem:[%s288] sm:$0xff]
  %s290 = scalar_lea.vmem %s1, 384
  %291 = vst [vmem:[%s290] sm:$0xff] %v289
  %s292 = scalar_lea.vmem %s0, 960
  %v293 = vld [vmem:[%s292] sm:$0xff]
  %s294 = scalar_lea.vmem %s1, 1024
  %295 = vst [vmem:[%s294] sm:$0xff] %v293
  %s296 = scalar_lea.vmem %s0, 400
  %v297 = vld [vmem:[%s296] sm:$0xff]
  %s298 = scalar_lea.vmem %s1, 464
  %299 = vst [vmem:[%s298] sm:$0xff] %v297
  %s300 = scalar_lea.vmem %s0, 1040
  %v301 = vld [vmem:[%s300] sm:$0xff]
  %s302 = scalar_lea.vmem %s1, 1104
  %303 = vst [vmem:[%s302] sm:$0xff] %v301
  %s304 = scalar_lea.vmem %s0, 480
  %v305 = vld [vmem:[%s304] sm:$0xff]
  %s306 = scalar_lea.vmem %s1, 544
  %307 = vst [vmem:[%s306] sm:$0xff] %v305
  %s308 = scalar_lea.vmem %s0, 1120
  %v309 = vld [vmem:[%s308] sm:$0xff]
  %s310 = scalar_lea.vmem %s1, 1184
  %311 = vst [vmem:[%s310] sm:$0xff] %v309
  %s312 = scalar_lea.vmem %s0, 560
  %v313 = vld [vmem:[%s312] sm:$0xff]
  %s314 = scalar_lea.vmem %s1, 624
  %315 = vst [vmem:[%s314] sm:$0xff] %v313
  %s316 = scalar_lea.vmem %s0, 1200
  %v317 = vld [vmem:[%s316] sm:$0xff]
  %s318 = scalar_lea.vmem %s1, 1264
  %319 = vst [vmem:[%s318] sm:$0xff] %v317
  %s320 = scalar_lea.vmem %s0, 72
  %v321 = vld [vmem:[%s320] sm:$0xff]
  %s322 = scalar_lea.vmem %s1, 8
  %323 = vst [vmem:[%s322] sm:$0xff] %v321
  %s324 = scalar_lea.vmem %s0, 712
  %v325 = vld [vmem:[%s324] sm:$0xff]
  %s326 = scalar_lea.vmem %s1, 648
  %327 = vst [vmem:[%s326] sm:$0xff] %v325
  %s328 = scalar_lea.vmem %s0, 152
  %v329 = vld [vmem:[%s328] sm:$0xff]
  %s330 = scalar_lea.vmem %s1, 88
  %331 = vst [vmem:[%s330] sm:$0xff] %v329
  %s332 = scalar_lea.vmem %s0, 792
  %v333 = vld [vmem:[%s332] sm:$0xff]
  %s334 = scalar_lea.vmem %s1, 728
  %335 = vst [vmem:[%s334] sm:$0xff] %v333
  %s336 = scalar_lea.vmem %s0, 232
  %v337 = vld [vmem:[%s336] sm:$0xff]
  %s338 = scalar_lea.vmem %s1, 168
  %339 = vst [vmem:[%s338] sm:$0xff] %v337
  %s340 = scalar_lea.vmem %s0, 872
  %v341 = vld [vmem:[%s340] sm:$0xff]
  %s342 = scalar_lea.vmem %s1, 808
  %343 = vst [vmem:[%s342] sm:$0xff] %v341
  %s344 = scalar_lea.vmem %s0, 312
  %v345 = vld [vmem:[%s344] sm:$0xff]
  %s346 = scalar_lea.vmem %s1, 248
  %347 = vst [vmem:[%s346] sm:$0xff] %v345
  %s348 = scalar_lea.vmem %s0, 952
  %v349 = vld [vmem:[%s348] sm:$0xff]
  %s350 = scalar_lea.vmem %s1, 888
  %351 = vst [vmem:[%s350] sm:$0xff] %v349
  %s352 = scalar_lea.vmem %s0, 392
  %v353 = vld [vmem:[%s352] sm:$0xff]
  %s354 = scalar_lea.vmem %s1, 328
  %355 = vst [vmem:[%s354] sm:$0xff] %v353
  %s356 = scalar_lea.vmem %s0, 1032
  %v357 = vld [vmem:[%s356] sm:$0xff]
  %s358 = scalar_lea.vmem %s1, 968
  %359 = vst [vmem:[%s358] sm:$0xff] %v357
  %s360 = scalar_lea.vmem %s0, 472
  %v361 = vld [vmem:[%s360] sm:$0xff]
  %s362 = scalar_lea.vmem %s1, 408
  %363 = vst [vmem:[%s362] sm:$0xff] %v361
  %s364 = scalar_lea.vmem %s0, 1112
  %v365 = vld [vmem:[%s364] sm:$0xff]
  %s366 = scalar_lea.vmem %s1, 1048
  %367 = vst [vmem:[%s366] sm:$0xff] %v365
  %s368 = scalar_lea.vmem %s0, 552
  %v369 = vld [vmem:[%s368] sm:$0xff]
  %s370 = scalar_lea.vmem %s1, 488
  %371 = vst [vmem:[%s370] sm:$0xff] %v369
  %s372 = scalar_lea.vmem %s0, 1192
  %v373 = vld [vmem:[%s372] sm:$0xff]
  %s374 = scalar_lea.vmem %s1, 1128
  %375 = vst [vmem:[%s374] sm:$0xff] %v373
  %s376 = scalar_lea.vmem %s0, 632
  %v377 = vld [vmem:[%s376] sm:$0xff]
  %s378 = scalar_lea.vmem %s1, 568
  %379 = vst [vmem:[%s378] sm:$0xff] %v377
  %s380 = scalar_lea.vmem %s0, 1272
  %v381 = vld [vmem:[%s380] sm:$0xff]
  %s382 = scalar_lea.vmem %s1, 1208
  %383 = vst [vmem:[%s382] sm:$0xff] %v381
  %s384 = scalar_lea.vmem %s0, 56
  %v385 = vld [vmem:[%s384] sm:$0xff]
  %s386 = scalar_lea.vmem %s1, 24
  %387 = vst [vmem:[%s386] sm:$0xff] %v385
  %s388 = scalar_lea.vmem %s0, 696
  %v389 = vld [vmem:[%s388] sm:$0xff]
  %s390 = scalar_lea.vmem %s1, 664
  %391 = vst [vmem:[%s390] sm:$0xff] %v389
  %s392 = scalar_lea.vmem %s0, 136
  %v393 = vld [vmem:[%s392] sm:$0xff]
  %s394 = scalar_lea.vmem %s1, 104
  %395 = vst [vmem:[%s394] sm:$0xff] %v393
  %s396 = scalar_lea.vmem %s0, 776
  %v397 = vld [vmem:[%s396] sm:$0xff]
  %s398 = scalar_lea.vmem %s1, 744
  %399 = vst [vmem:[%s398] sm:$0xff] %v397
  %s400 = scalar_lea.vmem %s0, 216
  %v401 = vld [vmem:[%s400] sm:$0xff]
  %s402 = scalar_lea.vmem %s1, 184
  %403 = vst [vmem:[%s402] sm:$0xff] %v401
  %s404 = scalar_lea.vmem %s0, 856
  %v405 = vld [vmem:[%s404] sm:$0xff]
  %s406 = scalar_lea.vmem %s1, 824
  %407 = vst [vmem:[%s406] sm:$0xff] %v405
  %s408 = scalar_lea.vmem %s0, 296
  %v409 = vld [vmem:[%s408] sm:$0xff]
  %s410 = scalar_lea.vmem %s1, 264
  %411 = vst [vmem:[%s410] sm:$0xff] %v409
  %s412 = scalar_lea.vmem %s0, 936
  %v413 = vld [vmem:[%s412] sm:$0xff]
  %s414 = scalar_lea.vmem %s1, 904
  %415 = vst [vmem:[%s414] sm:$0xff] %v413
  %s416 = scalar_lea.vmem %s0, 376
  %v417 = vld [vmem:[%s416] sm:$0xff]
  %s418 = scalar_lea.vmem %s1, 344
  %419 = vst [vmem:[%s418] sm:$0xff] %v417
  %s420 = scalar_lea.vmem %s0, 1016
  %v421 = vld [vmem:[%s420] sm:$0xff]
  %s422 = scalar_lea.vmem %s1, 984
  %423 = vst [vmem:[%s422] sm:$0xff] %v421
  %s424 = scalar_lea.vmem %s0, 456
  %v425 = vld [vmem:[%s424] sm:$0xff]
  %s426 = scalar_lea.vmem %s1, 424
  %427 = vst [vmem:[%s426] sm:$0xff] %v425
  %s428 = scalar_lea.vmem %s0, 1096
  %v429 = vld [vmem:[%s428] sm:$0xff]
  %s430 = scalar_lea.vmem %s1, 1064
  %431 = vst [vmem:[%s430] sm:$0xff] %v429
  %s432 = scalar_lea.vmem %s0, 536
  %v433 = vld [vmem:[%s432] sm:$0xff]
  %s434 = scalar_lea.vmem %s1, 504
  %435 = vst [vmem:[%s434] sm:$0xff] %v433
  %s436 = scalar_lea.vmem %s0, 1176
  %v437 = vld [vmem:[%s436] sm:$0xff]
  %s438 = scalar_lea.vmem %s1, 1144
  %439 = vst [vmem:[%s438] sm:$0xff] %v437
  %s440 = scalar_lea.vmem %s0, 616
  %v441 = vld [vmem:[%s440] sm:$0xff]
  %s442 = scalar_lea.vmem %s1, 584
  %443 = vst [vmem:[%s442] sm:$0xff] %v441
  %s444 = scalar_lea.vmem %s0, 1256
  %v445 = vld [vmem:[%s444] sm:$0xff]
  %s446 = scalar_lea.vmem %s1, 1224
  %447 = vst [vmem:[%s446] sm:$0xff] %v445
  %s448 = scalar_lea.vmem %s0, 40
  %v449 = vld [vmem:[%s448] sm:$0xff]
  %s450 = scalar_lea.vmem %s1, 40
  %451 = vst [vmem:[%s450] sm:$0xff] %v449
  %s452 = scalar_lea.vmem %s0, 680
  %v453 = vld [vmem:[%s452] sm:$0xff]
  %s454 = scalar_lea.vmem %s1, 680
  %455 = vst [vmem:[%s454] sm:$0xff] %v453
  %s456 = scalar_lea.vmem %s0, 120
  %v457 = vld [vmem:[%s456] sm:$0xff]
  %s458 = scalar_lea.vmem %s1, 120
  %459 = vst [vmem:[%s458] sm:$0xff] %v457
  %s460 = scalar_lea.vmem %s0, 760
  %v461 = vld [vmem:[%s460] sm:$0xff]
  %s462 = scalar_lea.vmem %s1, 760
  %463 = vst [vmem:[%s462] sm:$0xff] %v461
  %s464 = scalar_lea.vmem %s0, 200
  %v465 = vld [vmem:[%s464] sm:$0xff]
  %s466 = scalar_lea.vmem %s1, 200
  %467 = vst [vmem:[%s466] sm:$0xff] %v465
  %s468 = scalar_lea.vmem %s0, 840
  %v469 = vld [vmem:[%s468] sm:$0xff]
  %s470 = scalar_lea.vmem %s1, 840
  %471 = vst [vmem:[%s470] sm:$0xff] %v469
  %s472 = scalar_lea.vmem %s0, 280
  %v473 = vld [vmem:[%s472] sm:$0xff]
  %s474 = scalar_lea.vmem %s1, 280
  %475 = vst [vmem:[%s474] sm:$0xff] %v473
  %s476 = scalar_lea.vmem %s0, 920
  %v477 = vld [vmem:[%s476] sm:$0xff]
  %s478 = scalar_lea.vmem %s1, 920
  %479 = vst [vmem:[%s478] sm:$0xff] %v477
  %s480 = scalar_lea.vmem %s0, 360
  %v481 = vld [vmem:[%s480] sm:$0xff]
  %s482 = scalar_lea.vmem %s1, 360
  %483 = vst [vmem:[%s482] sm:$0xff] %v481
  %s484 = scalar_lea.vmem %s0, 1000
  %v485 = vld [vmem:[%s484] sm:$0xff]
  %s486 = scalar_lea.vmem %s1, 1000
  %487 = vst [vmem:[%s486] sm:$0xff] %v485
  %s488 = scalar_lea.vmem %s0, 440
  %v489 = vld [vmem:[%s488] sm:$0xff]
  %s490 = scalar_lea.vmem %s1, 440
  %491 = vst [vmem:[%s490] sm:$0xff] %v489
  %s492 = scalar_lea.vmem %s0, 1080
  %v493 = vld [vmem:[%s492] sm:$0xff]
  %s494 = scalar_lea.vmem %s1, 1080
  %495 = vst [vmem:[%s494] sm:$0xff] %v493
  %s496 = scalar_lea.vmem %s0, 520
  %v497 = vld [vmem:[%s496] sm:$0xff]
  %s498 = scalar_lea.vmem %s1, 520
  %499 = vst [vmem:[%s498] sm:$0xff] %v497
  %s500 = scalar_lea.vmem %s0, 1160
  %v501 = vld [vmem:[%s500] sm:$0xff]
  %s502 = scalar_lea.vmem %s1, 1160
  %503 = vst [vmem:[%s502] sm:$0xff] %v501
  %s504 = scalar_lea.vmem %s0, 600
  %v505 = vld [vmem:[%s504] sm:$0xff]
  %s506 = scalar_lea.vmem %s1, 600
  %507 = vst [vmem:[%s506] sm:$0xff] %v505
  %s508 = scalar_lea.vmem %s0, 1240
  %v509 = vld [vmem:[%s508] sm:$0xff]
  %s510 = scalar_lea.vmem %s1, 1240
  %511 = vst [vmem:[%s510] sm:$0xff] %v509
  %s512 = scalar_lea.vmem %s0, 24
  %v513 = vld [vmem:[%s512] sm:$0xff]
  %s514 = scalar_lea.vmem %s1, 56
  %515 = vst [vmem:[%s514] sm:$0xff] %v513
  %s516 = scalar_lea.vmem %s0, 664
  %v517 = vld [vmem:[%s516] sm:$0xff]
  %s518 = scalar_lea.vmem %s1, 696
  %519 = vst [vmem:[%s518] sm:$0xff] %v517
  %s520 = scalar_lea.vmem %s0, 104
  %v521 = vld [vmem:[%s520] sm:$0xff]
  %s522 = scalar_lea.vmem %s1, 136
  %523 = vst [vmem:[%s522] sm:$0xff] %v521
  %s524 = scalar_lea.vmem %s0, 744
  %v525 = vld [vmem:[%s524] sm:$0xff]
  %s526 = scalar_lea.vmem %s1, 776
  %527 = vst [vmem:[%s526] sm:$0xff] %v525
  %s528 = scalar_lea.vmem %s0, 184
  %v529 = vld [vmem:[%s528] sm:$0xff]
  %s530 = scalar_lea.vmem %s1, 216
  %531 = vst [vmem:[%s530] sm:$0xff] %v529
  %s532 = scalar_lea.vmem %s0, 824
  %v533 = vld [vmem:[%s532] sm:$0xff]
  %s534 = scalar_lea.vmem %s1, 856
  %535 = vst [vmem:[%s534] sm:$0xff] %v533
  %s536 = scalar_lea.vmem %s0, 264
  %v537 = vld [vmem:[%s536] sm:$0xff]
  %s538 = scalar_lea.vmem %s1, 296
  %539 = vst [vmem:[%s538] sm:$0xff] %v537
  %s540 = scalar_lea.vmem %s0, 904
  %v541 = vld [vmem:[%s540] sm:$0xff]
  %s542 = scalar_lea.vmem %s1, 936
  %543 = vst [vmem:[%s542] sm:$0xff] %v541
  %s544 = scalar_lea.vmem %s0, 344
  %v545 = vld [vmem:[%s544] sm:$0xff]
  %s546 = scalar_lea.vmem %s1, 376
  %547 = vst [vmem:[%s546] sm:$0xff] %v545
  %s548 = scalar_lea.vmem %s0, 984
  %v549 = vld [vmem:[%s548] sm:$0xff]
  %s550 = scalar_lea.vmem %s1, 1016
  %551 = vst [vmem:[%s550] sm:$0xff] %v549
  %s552 = scalar_lea.vmem %s0, 424
  %v553 = vld [vmem:[%s552] sm:$0xff]
  %s554 = scalar_lea.vmem %s1, 456
  %555 = vst [vmem:[%s554] sm:$0xff] %v553
  %s556 = scalar_lea.vmem %s0, 1064
  %v557 = vld [vmem:[%s556] sm:$0xff]
  %s558 = scalar_lea.vmem %s1, 1096
  %559 = vst [vmem:[%s558] sm:$0xff] %v557
  %s560 = scalar_lea.vmem %s0, 504
  %v561 = vld [vmem:[%s560] sm:$0xff]
  %s562 = scalar_lea.vmem %s1, 536
  %563 = vst [vmem:[%s562] sm:$0xff] %v561
  %s564 = scalar_lea.vmem %s0, 1144
  %v565 = vld [vmem:[%s564] sm:$0xff]
  %s566 = scalar_lea.vmem %s1, 1176
  %567 = vst [vmem:[%s566] sm:$0xff] %v565
  %s568 = scalar_lea.vmem %s0, 584
  %v569 = vld [vmem:[%s568] sm:$0xff]
  %s570 = scalar_lea.vmem %s1, 616
  %571 = vst [vmem:[%s570] sm:$0xff] %v569
  %s572 = scalar_lea.vmem %s0, 1224
  %v573 = vld [vmem:[%s572] sm:$0xff]
  %s574 = scalar_lea.vmem %s1, 1256
  %575 = vst [vmem:[%s574] sm:$0xff] %v573
  %s576 = scalar_lea.vmem %s0, 8
  %v577 = vld [vmem:[%s576] sm:$0xff]
  %s578 = scalar_lea.vmem %s1, 72
  %579 = vst [vmem:[%s578] sm:$0xff] %v577
  %s580 = scalar_lea.vmem %s0, 648
  %v581 = vld [vmem:[%s580] sm:$0xff]
  %s582 = scalar_lea.vmem %s1, 712
  %583 = vst [vmem:[%s582] sm:$0xff] %v581
  %s584 = scalar_lea.vmem %s0, 88
  %v585 = vld [vmem:[%s584] sm:$0xff]
  %s586 = scalar_lea.vmem %s1, 152
  %587 = vst [vmem:[%s586] sm:$0xff] %v585
  %s588 = scalar_lea.vmem %s0, 728
  %v589 = vld [vmem:[%s588] sm:$0xff]
  %s590 = scalar_lea.vmem %s1, 792
  %591 = vst [vmem:[%s590] sm:$0xff] %v589
  %s592 = scalar_lea.vmem %s0, 168
  %v593 = vld [vmem:[%s592] sm:$0xff]
  %s594 = scalar_lea.vmem %s1, 232
  %595 = vst [vmem:[%s594] sm:$0xff] %v593
  %s596 = scalar_lea.vmem %s0, 808
  %v597 = vld [vmem:[%s596] sm:$0xff]
  %s598 = scalar_lea.vmem %s1, 872
  %599 = vst [vmem:[%s598] sm:$0xff] %v597
  %s600 = scalar_lea.vmem %s0, 248
  %v601 = vld [vmem:[%s600] sm:$0xff]
  %s602 = scalar_lea.vmem %s1, 312
  %603 = vst [vmem:[%s602] sm:$0xff] %v601
  %s604 = scalar_lea.vmem %s0, 888
  %v605 = vld [vmem:[%s604] sm:$0xff]
  %s606 = scalar_lea.vmem %s1, 952
  %607 = vst [vmem:[%s606] sm:$0xff] %v605
  %s608 = scalar_lea.vmem %s0, 328
  %v609 = vld [vmem:[%s608] sm:$0xff]
  %s610 = scalar_lea.vmem %s1, 392
  %611 = vst [vmem:[%s610] sm:$0xff] %v609
  %s612 = scalar_lea.vmem %s0, 968
  %v613 = vld [vmem:[%s612] sm:$0xff]
  %s614 = scalar_lea.vmem %s1, 1032
  %615 = vst [vmem:[%s614] sm:$0xff] %v613
  %s616 = scalar_lea.vmem %s0, 408
  %v617 = vld [vmem:[%s616] sm:$0xff]
  %s618 = scalar_lea.vmem %s1, 472
  %619 = vst [vmem:[%s618] sm:$0xff] %v617
  %s620 = scalar_lea.vmem %s0, 1048
  %v621 = vld [vmem:[%s620] sm:$0xff]
  %s622 = scalar_lea.vmem %s1, 1112
  %623 = vst [vmem:[%s622] sm:$0xff] %v621
  %s624 = scalar_lea.vmem %s0, 488
  %v625 = vld [vmem:[%s624] sm:$0xff]
  %s626 = scalar_lea.vmem %s1, 552
  %627 = vst [vmem:[%s626] sm:$0xff] %v625
  %s628 = scalar_lea.vmem %s0, 1128
  %v629 = vld [vmem:[%s628] sm:$0xff]
  %s630 = scalar_lea.vmem %s1, 1192
  %631 = vst [vmem:[%s630] sm:$0xff] %v629
  %s632 = scalar_lea.vmem %s0, 568
  %v633 = vld [vmem:[%s632] sm:$0xff]
  %s634 = scalar_lea.vmem %s1, 632
  %635 = vst [vmem:[%s634] sm:$0xff] %v633
  %s636 = scalar_lea.vmem %s0, 1208
  %v637 = vld [vmem:[%s636] sm:$0xff]
  %s638 = scalar_lea.vmem %s1, 1272
  %639 = vst [vmem:[%s638] sm:$0xff] %v637

// kernel: _lambda_.12
$region0: #{_lambda_.12}
  #allocation0 [shape = 'u32[]', space=smem, size = 0x4, offset = 0x4, fixed_abs, tag = 'smem constant byte address 0x4 - core index']
  #allocation1 [shape = 'u32[144,128]{1,0:T(1,128)}', space=vmem, size = 0x12000, scoped, tag = 'internal scratch']
  %s0 = inlined_call_operand.vmem [shape: f32[2,8,1408], index: 0, kind: input, shape index: {}]
  %s1 = inlined_call_operand.vmem [shape: f32[2,8,1408], index: 1, kind: input, shape index: {}]
  %s2 = inlined_call_operand.vmem [shape: f32[8,8], index: 2, kind: input, shape index: {}]
  %s3 = inlined_call_operand.vmem [shape: f32[2,8,1], index: 3, kind: input, shape index: {}]
  %s4 = inlined_call_operand.vmem [shape: f32[2,8,1408], index: 4, kind: output, shape index: {}]
  %s5 = sld [smem:[#allocation0]]
  $region49: #{_lambda_.12} parent=0
    _
  %s7 = ssub.s32 1, %s5
  %s8 = scalar_select 0, %s7, %s5
  loop: start=0, step=1, limit=4
  $region2: #{_lambda_.12} parent=0 // loop_pre_header
    _
  $region3: #{_lambda_.12} parent=0 // loop_header
    %s10 = sphi 0, %s14
    %p11 = scmp.ge.s32.totalorder %s10, 4
    %s17 = sphi 0, %s29
    %s18 = sphi 0, %s25
    %s19 = sphi 0, %s17
    %s20 = sphi 0, %s18
    %s21 = sphi 0, %s19
    %s22 = sphi 0, %s20
    %s34 = sphi 0, %s36
    %s37 = sphi 0, %s34
    %s38 = sphi 0, %s37
    %s54 = sphi 0, %s38
    %s62 = sphi 0, %s64
    %s65 = sphi 0, %s62
    %s66 = sphi 0, %s65
    %s82 = sphi 0, %s66
    %s86 = sphi 0, %s86
    %s88 = sphi 0, %s86
    %s89 = sphi 0, %s88
    %s103 = sphi 0, %s89
    %s109 = sphi 0, %s111
    %s112 = sphi 0, %s109
    %s113 = sphi 0, %s112
    %s129 = sphi 0, %s113
    %s137 = sphi 0, %s139
    %s140 = sphi 0, %s137
    %s141 = sphi 0, %s140
    %s157 = sphi 0, %s141
  $region4: #{_lambda_.12} parent=0 // loop_header_branch
    %13 = sbr.rel (%p11) target = $region8
  $region5: #{_lambda_.12} parent=0 // loop_body
    %s15 = ssub.s32 %s10, 1
    %s16 = ssub.s32 %s10, 2
    %s23 = sadd.s32 1, %s18
    %p24 = scmp.ge.s32.totalorder %s23, 1
    %s25 = scalar_select %p24, 0, %s23
    %s26 = sadd.s32 1, %s17
    %s27 = scalar_select %p24, %s26, %s17
    %p28 = scmp.ge.s32.totalorder %s27, 2
    %s29 = scalar_select %p28, 0, %s27
    %s30 = ssub.s32 %s17, %s29
    %s31 = ssub.s32 %s18, %s25
    %s32 = sor.u32 %s30, %s31
    %p33 = scmp.eq.s32.totalorder %s32, 0
    %s35 = sadd.s32 %s34, 1
    %s36 = scalar_select %p33, %s34, %s35
    %p39 = pneg %p33
    %p40 = scmp.eq.s32.totalorder %s10, 1
    %p41 = por %p39, %p40
    %p42 = scmp.ne.s32.totalorder %s34, %s37
    %p43 = scmp.eq.s32.totalorder %s10, 0
    %p44 = por %p42, %p43
    %p45 = scmp.ne.s32.totalorder %s34, %s37
    %p46 = scmp.eq.s32.totalorder %s15, 1
    %p47 = por %p45, %p46
    %p48 = scmp.ne.s32.totalorder %s37, %s38
    %p49 = scmp.eq.s32.totalorder %s15, 0
    %p50 = por %p48, %p49
    %p51 = scmp.ne.s32.totalorder %s37, %s38
    %p52 = scmp.eq.s32.totalorder %s16, 1
    %p53 = por %p51, %p52
    %p55 = scmp.ne.s32.totalorder %s38, %s54
    %p56 = scmp.eq.s32.totalorder %s16, 0
    %p57 = por %p55, %p56
    %s58 = ssub.s32 %s17, %s29
    %s59 = ssub.s32 %s18, %s25
    %s60 = sor.u32 %s58, %s59
    %p61 = scmp.eq.s32.totalorder %s60, 0
    %s63 = sadd.s32 %s62, 1
    %s64 = scalar_select %p61, %s62, %s63
    %p67 = pneg %p61
    %p68 = scmp.eq.s32.totalorder %s10, 1
    %p69 = por %p67, %p68
    %p70 = scmp.ne.s32.totalorder %s62, %s65
    %p71 = scmp.eq.s32.totalorder %s10, 0
    %p72 = por %p70, %p71
    %p73 = scmp.ne.s32.totalorder %s62, %s65
    %p74 = scmp.eq.s32.totalorder %s15, 1
    %p75 = por %p73, %p74
    %p76 = scmp.ne.s32.totalorder %s65, %s66
    %p77 = scmp.eq.s32.totalorder %s15, 0
    %p78 = por %p76, %p77
    %p79 = scmp.ne.s32.totalorder %s65, %s66
    %p80 = scmp.eq.s32.totalorder %s16, 1
    %p81 = por %p79, %p80
    %p83 = scmp.ne.s32.totalorder %s66, %s82
    %p84 = scmp.eq.s32.totalorder %s16, 0
    %p85 = por %p83, %p84
    %s87 = sadd.s32 %s86, 1
    %p90 = scmp.eq.s32.totalorder %s10, 1
    %p91 = scmp.ne.s32.totalorder %s86, %s88
    %p92 = scmp.eq.s32.totalorder %s10, 0
    %p93 = por %p91, %p92
    %p94 = scmp.ne.s32.totalorder %s86, %s88
    %p95 = scmp.eq.s32.totalorder %s15, 1
    %p96 = por %p94, %p95
    %p97 = scmp.ne.s32.totalorder %s88, %s89
    %p98 = scmp.eq.s32.totalorder %s15, 0
    %p99 = por %p97, %p98
    %p100 = scmp.ne.s32.totalorder %s88, %s89
    %p101 = scmp.eq.s32.totalorder %s16, 1
    %p102 = por %p100, %p101
    %p104 = scmp.ne.s32.totalorder %s89, %s103
    %p105 = scmp.eq.s32.totalorder %s16, 0
    %p106 = por %p104, %p105
    %s107 = ssub.s32 %s17, %s29
    %p108 = scmp.eq.s32.totalorder %s107, 0
    %s110 = sadd.s32 %s109, 1
    %s111 = scalar_select %p108, %s109, %s110
    %p114 = pneg %p108
    %p115 = scmp.eq.s32.totalorder %s10, 1
    %p116 = por %p114, %p115
    %p117 = scmp.ne.s32.totalorder %s109, %s112
    %p118 = scmp.eq.s32.totalorder %s10, 0
    %p119 = por %p117, %p118
    %p120 = scmp.ne.s32.totalorder %s109, %s112
    %p121 = scmp.eq.s32.totalorder %s15, 1
    %p122 = por %p120, %p121
    %p123 = scmp.ne.s32.totalorder %s112, %s113
    %p124 = scmp.eq.s32.totalorder %s15, 0
    %p125 = por %p123, %p124
    %p126 = scmp.ne.s32.totalorder %s112, %s113
    %p127 = scmp.eq.s32.totalorder %s16, 1
    %p128 = por %p126, %p127
    %p130 = scmp.ne.s32.totalorder %s113, %s129
    %p131 = scmp.eq.s32.totalorder %s16, 0
    %p132 = por %p130, %p131
    %s133 = ssub.s32 %s17, %s29
    %s134 = ssub.s32 %s18, %s25
    %s135 = sor.u32 %s133, %s134
    %p136 = scmp.eq.s32.totalorder %s135, 0
    %s138 = sadd.s32 %s137, 1
    %s139 = scalar_select %p136, %s137, %s138
    %p142 = pneg %p136
    %p143 = scmp.eq.s32.totalorder %s10, 1
    %p144 = por %p142, %p143
    %p145 = scmp.ne.s32.totalorder %s137, %s140
    %p146 = scmp.eq.s32.totalorder %s10, 0
    %p147 = por %p145, %p146
    %p148 = scmp.ne.s32.totalorder %s137, %s140
    %p149 = scmp.eq.s32.totalorder %s15, 1
    %p150 = por %p148, %p149
    %p151 = scmp.ne.s32.totalorder %s140, %s141
    %p152 = scmp.eq.s32.totalorder %s15, 0
    %p153 = por %p151, %p152
    %p154 = scmp.ne.s32.totalorder %s140, %s141
    %p155 = scmp.eq.s32.totalorder %s16, 1
    %p156 = por %p154, %p155
    %p158 = scmp.ne.s32.totalorder %s141, %s157
    %p159 = scmp.eq.s32.totalorder %s16, 0
    %p160 = por %p158, %p159
    %p161 = scmp.le.s32.totalorder 1, %s10
    %p162 = scmp.lt.s32.totalorder %s10, 3
    %p163 = pnand %p161, %p162
    %p164 = pneg %p163
    // Predicated region
    $region9: #{_lambda_.12} parent=5 // pred_check
      _
    $region10: #{_lambda_.12} parent=5 // pred_check_branch
      %166 = sbr.rel (%p163) target = $region12
    $region11: #{_lambda_.12} parent=5 // pred_region
      %s167 = ssub.s32 %s10, 1
      // Predicated region
      $region13: #{_lambda_.12} parent=11 // pred_check
        %p168 = pneg %p99
      $region14: #{_lambda_.12} parent=11 // pred_check_branch
        %170 = sbr.rel (%p168) target = $region16
      $region15: #{_lambda_.12} parent=11 // pred_region
        _
      $region16: #{_lambda_.12} parent=11 // pred_fallthru
        _
    $region12: #{_lambda_.12} parent=5 // pred_fallthru
      _
    %p171 = scmp.lt.s32.totalorder %s10, 2
    // Predicated region
    $region17: #{_lambda_.12} parent=5 // pred_check
      %p172 = pneg %p171
    $region18: #{_lambda_.12} parent=5 // pred_check_branch
      %174 = sbr.rel (%p172) target = $region20
    $region19: #{_lambda_.12} parent=5 // pred_region
      // Predicated region
      $region21: #{_lambda_.12} parent=19 // pred_check
        %p175 = pneg %p44
      $region22: #{_lambda_.12} parent=19 // pred_check_branch
        %177 = sbr.rel (%p175) target = $region24
      $region23: #{_lambda_.12} parent=19 // pred_region
        %s178 = smul.u32 11, %s18
        %p179 = scmp.lt.s32.totalorder %s17, 1
        %s180 = scalar_select %p179, %s17, 1
        %p181 = scmp.lt.s32.totalorder %s178, 10
        %s182 = scalar_select %p181, %s178, 10
        %s183 = smul.addr %s180, 11
        %s184 = sadd.s32 %s182, %s183
        %s185 = smul.addr %s184, 8
        %s186 = scalar_lea.vmem %s0, %s185
        %s187 = smul.u32 11, %s18
      $region24: #{_lambda_.12} parent=19 // pred_fallthru
        _
      // Predicated region
      $region25: #{_lambda_.12} parent=19 // pred_check
        %p188 = pneg %p72
      $region26: #{_lambda_.12} parent=19 // pred_check_branch
        %190 = sbr.rel (%p188) target = $region28
      $region27: #{_lambda_.12} parent=19 // pred_region
        %s191 = smul.u32 11, %s18
        %p192 = scmp.lt.s32.totalorder %s17, 1
        %s193 = scalar_select %p192, %s17, 1
        %p194 = scmp.lt.s32.totalorder %s191, 10
        %s195 = scalar_select %p194, %s191, 10
        %s196 = smul.addr %s193, 11
        %s197 = sadd.s32 %s195, %s196
        %s198 = smul.addr %s197, 8
        %s199 = scalar_lea.vmem %s1, %s198
        %s200 = smul.u32 11, %s18
      $region28: #{_lambda_.12} parent=19 // pred_fallthru
        _
      // Predicated region
      $region29: #{_lambda_.12} parent=19 // pred_check
        %p201 = pneg %p119
      $region30: #{_lambda_.12} parent=19 // pred_check_branch
        %203 = sbr.rel (%p201) target = $region32
      $region31: #{_lambda_.12} parent=19 // pred_region
        %p204 = scmp.lt.s32.totalorder %s17, 1
        %s205 = scalar_select %p204, %s17, 1
        %s206 = smul.addr %s205, 8
        %s207 = scalar_lea.vmem %s3, %s206
      $region32: #{_lambda_.12} parent=19 // pred_fallthru
        _
    $region20: #{_lambda_.12} parent=5 // pred_fallthru
      _
    %p208 = scmp.le.s32.totalorder 1, %s10
    %p209 = scmp.lt.s32.totalorder %s10, 3
    %p210 = pnand %p208, %p209
    %p211 = pneg %p210
    // Predicated region
    $region33: #{_lambda_.12} parent=5 // pred_check
      _
    $region34: #{_lambda_.12} parent=5 // pred_check_branch
      %213 = sbr.rel (%p210) target = $region36
    $region35: #{_lambda_.12} parent=5 // pred_region
      %s214 = ssub.s32 %s10, 1
      %s215 = smul.u32 11, %s20
      %p216 = scmp.lt.s32.totalorder %s19, 1
      %s217 = scalar_select %p216, %s19, 1
      %p218 = scmp.lt.s32.totalorder %s215, 10
      %s219 = scalar_select %p218, %s215, 10
      %s220 = smul.addr %s217, 11
      %s221 = sadd.s32 %s219, %s220
      %s222 = smul.addr %s221, 8
      %s223 = scalar_lea.vmem %s0, %s222
      %p224 = pneg %p50
      %p225 = pneg %p47
      %s226 = smul.u32 11, %s20
      %p227 = scmp.lt.s32.totalorder %s19, 1
      %s228 = scalar_select %p227, %s19, 1
      %p229 = scmp.lt.s32.totalorder %s226, 10
      %s230 = scalar_select %p229, %s226, 10
      %s231 = smul.addr %s228, 11
      %s232 = sadd.s32 %s230, %s231
      %s233 = smul.addr %s232, 8
      %s234 = scalar_lea.vmem %s1, %s233
      %p235 = pneg %p78
      %p236 = pneg %p75
      %p237 = pneg %p99
      %p238 = pneg %p96
      %p239 = scmp.lt.s32.totalorder %s19, 1
      %s240 = scalar_select %p239, %s19, 1
      %s241 = smul.addr %s240, 8
      %s242 = scalar_lea.vmem %s3, %s241
      %p243 = pneg %p125
      %p244 = pneg %p122
      %p245 = pneg %p153
      %p246 = pneg %p150
      %s247 = smul.u32 11, %s20
      %p248 = scmp.lt.s32.totalorder %s19, 1
      %s249 = scalar_select %p248, %s19, 1
      %p250 = scmp.lt.s32.totalorder %s247, 10
      %s251 = scalar_select %p250, %s247, 10
      %s252 = smul.addr %s249, 11
      %s253 = sadd.s32 %s251, %s252
      %s254 = smul.addr %s253, 8
      %s255 = scalar_lea.vmem %s4, %s254
      %s256 = smul.u32 11, %s20
      %p257 = scmp.lt.s32.totalorder %s19, 1
      %s258 = scalar_select %p257, %s19, 1
      %p259 = scmp.lt.s32.totalorder %s256, 10
      %s260 = scalar_select %p259, %s256, 10
      %s261 = smul.addr %s258, 11
      %s262 = sadd.s32 %s260, %s261
      %s263 = smul.addr %s262, 8
      %s264 = scalar_lea.vmem %s0, %s263
      %s265 = smul.u32 11, %s20
      %s266 = smul.u32 11, %s20
      %p267 = scmp.lt.s32.totalorder %s19, 1
      %s268 = scalar_select %p267, %s19, 1
      %p269 = scmp.lt.s32.totalorder %s266, 10
      %s270 = scalar_select %p269, %s266, 10
      %s271 = smul.addr %s268, 11
      %s272 = sadd.s32 %s270, %s271
      %s273 = smul.addr %s272, 8
      %s274 = scalar_lea.vmem %s1, %s273
      %s275 = smul.u32 11, %s20
      %p276 = scmp.lt.s32.totalorder %s19, 1
      %s277 = scalar_select %p276, %s19, 1
      %s278 = smul.addr %s277, 8
      %s279 = scalar_lea.vmem %s3, %s278
      %s280 = smul.u32 11, %s20
      %p281 = scmp.lt.s32.totalorder %s19, 1
      %s282 = scalar_select %p281, %s19, 1
      %p283 = scmp.lt.s32.totalorder %s280, 10
      %s284 = scalar_select %p283, %s280, 10
      %s285 = smul.addr %s282, 11
      %s286 = sadd.s32 %s284, %s285
      %s287 = smul.addr %s286, 8
      %s288 = scalar_lea.vmem %s4, %s287
      %s289 = smul.u32 11, %s20
      %v290 = vld [vmem:[%s264] sm:$0xff]
      %v291 = vld [vmem:[%s264 + $0x8] sm:$0xff]
      %v292 = vld [vmem:[%s264 + $0x10] sm:$0xff]
      %v293 = vld [vmem:[%s264 + $0x18] sm:$0xff]
      %v294 = vld [vmem:[%s264 + $0x20] sm:$0xff]
      %v295 = vld [vmem:[%s264 + $0x28] sm:$0xff]
      %v296 = vld [vmem:[%s264 + $0x30] sm:$0xff]
      %v297 = vld [vmem:[%s264 + $0x38] sm:$0xff]
      %v298 = vld [vmem:[%s264 + $0x40] sm:$0xff]
      %v299 = vld [vmem:[%s264 + $0x48] sm:$0xff]
      %v300 = vld [vmem:[%s264 + $0x50] sm:$0xff]
      %v301 = vld [vmem:[%s2] sm:$0xff]
      %v302 = vld [vmem:[%s279] sm:$0xff]
      %304 = vset.pattern.permute.xlu0 0
      %305 = vperm.xlu0 %304, %v302
      %v306 = vpop.permute.xlu0 %305
      %vm308 = vcmask 64512
      %v310 = vsel %vm308, %v301, 0
      %312 = vmatprep.subr.mxu0 0.0
      %313 = vmatpush1.msra.mxu0 0.0
      %314 = vmatprep.subr.mxu0 0.0
      %315 = vmatpush1.msra.mxu0 0.0
      %316 = vmatprep.subr.mxu0 0.0
      %317 = vmatpush1.msra.mxu0 0.0
      %318 = vmatprep.subr.mxu0 0.0
      %319 = vmatpush1.msra.mxu0 0.0
      %320 = vmatprep.subr.mxu0 0.0
      %321 = vmatpush1.msra.mxu0 0.0
      %322 = vmatprep.subr.mxu0 0.0
      %323 = vmatpush1.msra.mxu0 0.0
      %324 = vmatprep.subr.mxu0 0.0
      %325 = vmatpush1.msra.mxu0 0.0
      %326 = vmatprep.subr.mxu0 0.0
      %327 = vmatpush1.msra.mxu0 0.0
      %328 = vmatprep.subr.mxu0 0.0
      %329 = vmatpush1.msra.mxu0 0.0
      %330 = vmatprep.subr.mxu0 0.0
      %331 = vmatpush1.msra.mxu0 0.0
      %332 = vmatprep.subr.mxu0 0.0
      %333 = vmatpush1.msra.mxu0 0.0
      %334 = vmatprep.subr.mxu0 0.0
      %335 = vmatpush1.msra.mxu0 0.0
      %336 = vmatprep.subr.mxu0 0.0
      %337 = vmatpush1.msra.mxu0 0.0
      %338 = vmatprep.subr.mxu0 0.0
      %339 = vmatpush1.msra.mxu0 0.0
      %340 = vmatprep.subr.mxu0 0.0
      %341 = vmatpush1.msra.mxu0 0.0
      %342 = vmatprep.subr.mxu0 %v291
      %343 = vmatpush1.msra.mxu0 %v290
      %344 = vmatprep.subr.mxu0 0.0
      %345 = vmatpush2.msra.mxu0 0.0
      %346 = vmatprep.subr.mxu0 0.0
      %347 = vmatpush2.msra.mxu0 0.0
      %348 = vmatprep.subr.mxu0 0.0
      %349 = vmatpush2.msra.mxu0 0.0
      %350 = vmatprep.subr.mxu0 0.0
      %351 = vmatpush2.msra.mxu0 0.0
      %352 = vmatprep.subr.mxu0 0.0
      %353 = vmatpush2.msra.mxu0 0.0
      %354 = vmatprep.subr.mxu0 0.0
      %355 = vmatpush2.msra.mxu0 0.0
      %356 = vmatprep.subr.mxu0 0.0
      %357 = vmatpush2.msra.mxu0 0.0
      %358 = vmatprep.subr.mxu0 0.0
      %359 = vmatpush2.msra.mxu0 0.0
      %360 = vmatprep.subr.mxu0 0.0
      %361 = vmatpush2.msra.mxu0 0.0
      %362 = vmatprep.subr.mxu0 0.0
      %363 = vmatpush2.msra.mxu0 0.0
      %364 = vmatprep.subr.mxu0 0.0
      %365 = vmatpush2.msra.mxu0 0.0
      %366 = vmatprep.subr.mxu0 0.0
      %367 = vmatpush2.msra.mxu0 0.0
      %368 = vmatprep.subr.mxu0 0.0
      %369 = vmatpush2.msra.mxu0 0.0
      %370 = vmatprep.subr.mxu0 0.0
      %371 = vmatpush2.msra.mxu0 0.0
      %372 = vmatprep.subr.mxu0 0.0
      %373 = vmatpush2.msra.mxu0 0.0
      %374 = vmatprep.subr.mxu0 0.0
      %375 = vmatpush2.msra.mxu0 0.0
      %376 = vmatprep.mubr.f32.mxu0 0.0
      %377 = vmatmul.mubr.f32.gmra.mxu0 %v310
      %v378 = vpop.f32.mrf.mxu0
      %v379 = vadd.f32 %v306, %v378
      %v380 = vpop.f32.mrf.mxu0
      %v381 = vadd.f32 %v306, %v380
      %382 = vdwg.mxu0
      %383 = vmatprep.subr.mxu0 0.0
      %384 = vmatpush1.msra.mxu0 0.0
      %385 = vmatprep.subr.mxu0 0.0
      %386 = vmatpush1.msra.mxu0 0.0
      %387 = vmatprep.subr.mxu0 0.0
      %388 = vmatpush1.msra.mxu0 0.0
      %389 = vmatprep.subr.mxu0 0.0
      %390 = vmatpush1.msra.mxu0 0.0
      %391 = vmatprep.subr.mxu0 0.0
      %392 = vmatpush1.msra.mxu0 0.0
      %393 = vmatprep.subr.mxu0 0.0
      %394 = vmatpush1.msra.mxu0 0.0
      %395 = vmatprep.subr.mxu0 0.0
      %396 = vmatpush1.msra.mxu0 0.0
      %397 = vmatprep.subr.mxu0 0.0
      %398 = vmatpush1.msra.mxu0 0.0
      %399 = vmatprep.subr.mxu0 0.0
      %400 = vmatpush1.msra.mxu0 0.0
      %401 = vmatprep.subr.mxu0 0.0
      %402 = vmatpush1.msra.mxu0 0.0
      %403 = vmatprep.subr.mxu0 0.0
      %404 = vmatpush1.msra.mxu0 0.0
      %405 = vmatprep.subr.mxu0 0.0
      %406 = vmatpush1.msra.mxu0 0.0
      %407 = vmatprep.subr.mxu0 0.0
      %408 = vmatpush1.msra.mxu0 0.0
      %409 = vmatprep.subr.mxu0 0.0
      %410 = vmatpush1.msra.mxu0 0.0
      %411 = vmatprep.subr.mxu0 0.0
      %412 = vmatpush1.msra.mxu0 0.0
      %413 = vmatprep.subr.mxu0 %v293
      %414 = vmatpush1.msra.mxu0 %v292
      %415 = vmatprep.subr.mxu0 0.0
      %416 = vmatpush2.msra.mxu0 0.0
      %417 = vmatprep.subr.mxu0 0.0
      %418 = vmatpush2.msra.mxu0 0.0
      %419 = vmatprep.subr.mxu0 0.0
      %420 = vmatpush2.msra.mxu0 0.0
      %421 = vmatprep.subr.mxu0 0.0
      %422 = vmatpush2.msra.mxu0 0.0
      %423 = vmatprep.subr.mxu0 0.0
      %424 = vmatpush2.msra.mxu0 0.0
      %425 = vmatprep.subr.mxu0 0.0
      %426 = vmatpush2.msra.mxu0 0.0
      %427 = vmatprep.subr.mxu0 0.0
      %428 = vmatpush2.msra.mxu0 0.0
      %429 = vmatprep.subr.mxu0 0.0
      %430 = vmatpush2.msra.mxu0 0.0
      %431 = vmatprep.subr.mxu0 0.0
      %432 = vmatpush2.msra.mxu0 0.0
      %433 = vmatprep.subr.mxu0 0.0
      %434 = vmatpush2.msra.mxu0 0.0
      %435 = vmatprep.subr.mxu0 0.0
      %436 = vmatpush2.msra.mxu0 0.0
      %437 = vmatprep.subr.mxu0 0.0
      %438 = vmatpush2.msra.mxu0 0.0
      %439 = vmatprep.subr.mxu0 0.0
      %440 = vmatpush2.msra.mxu0 0.0
      %441 = vmatprep.subr.mxu0 0.0
      %442 = vmatpush2.msra.mxu0 0.0
      %443 = vmatprep.subr.mxu0 0.0
      %444 = vmatpush2.msra.mxu0 0.0
      %445 = vmatprep.subr.mxu0 0.0
      %446 = vmatpush2.msra.mxu0 0.0
      %447 = vmatprep.mubr.f32.mxu0 0.0
      %448 = vmatmul.mubr.f32.gmra.mxu0 %v310
      %v449 = vpop.f32.mrf.mxu0
      %v450 = vadd.f32 %v306, %v449
      %v451 = vpop.f32.mrf.mxu0
      %v452 = vadd.f32 %v306, %v451
      %453 = vdwg.mxu0
      %454 = vmatprep.subr.mxu0 0.0
      %455 = vmatpush1.msra.mxu0 0.0
      %456 = vmatprep.subr.mxu0 0.0
      %457 = vmatpush1.msra.mxu0 0.0
      %458 = vmatprep.subr.mxu0 0.0
      %459 = vmatpush1.msra.mxu0 0.0
      %460 = vmatprep.subr.mxu0 0.0
      %461 = vmatpush1.msra.mxu0 0.0
      %462 = vmatprep.subr.mxu0 0.0
      %463 = vmatpush1.msra.mxu0 0.0
      %464 = vmatprep.subr.mxu0 0.0
      %465 = vmatpush1.msra.mxu0 0.0
      %466 = vmatprep.subr.mxu0 0.0
      %467 = vmatpush1.msra.mxu0 0.0
      %468 = vmatprep.subr.mxu0 0.0
      %469 = vmatpush1.msra.mxu0 0.0
      %470 = vmatprep.subr.mxu0 0.0
      %471 = vmatpush1.msra.mxu0 0.0
      %472 = vmatprep.subr.mxu0 0.0
      %473 = vmatpush1.msra.mxu0 0.0
      %474 = vmatprep.subr.mxu0 0.0
      %475 = vmatpush1.msra.mxu0 0.0
      %476 = vmatprep.subr.mxu0 0.0
      %477 = vmatpush1.msra.mxu0 0.0
      %478 = vmatprep.subr.mxu0 0.0
      %479 = vmatpush1.msra.mxu0 0.0
      %480 = vmatprep.subr.mxu0 0.0
      %481 = vmatpush1.msra.mxu0 0.0
      %482 = vmatprep.subr.mxu0 0.0
      %483 = vmatpush1.msra.mxu0 0.0
      %484 = vmatprep.subr.mxu0 %v295
      %485 = vmatpush1.msra.mxu0 %v294
      %486 = vmatprep.subr.mxu0 0.0
      %487 = vmatpush2.msra.mxu0 0.0
      %488 = vmatprep.subr.mxu0 0.0
      %489 = vmatpush2.msra.mxu0 0.0
      %490 = vmatprep.subr.mxu0 0.0
      %491 = vmatpush2.msra.mxu0 0.0
      %492 = vmatprep.subr.mxu0 0.0
      %493 = vmatpush2.msra.mxu0 0.0
      %494 = vmatprep.subr.mxu0 0.0
      %495 = vmatpush2.msra.mxu0 0.0
      %496 = vmatprep.subr.mxu0 0.0
      %497 = vmatpush2.msra.mxu0 0.0
      %498 = vmatprep.subr.mxu0 0.0
      %499 = vmatpush2.msra.mxu0 0.0
      %500 = vmatprep.subr.mxu0 0.0
      %501 = vmatpush2.msra.mxu0 0.0
      %502 = vmatprep.subr.mxu0 0.0
      %503 = vmatpush2.msra.mxu0 0.0
      %504 = vmatprep.subr.mxu0 0.0
      %505 = vmatpush2.msra.mxu0 0.0
      %506 = vmatprep.subr.mxu0 0.0
      %507 = vmatpush2.msra.mxu0 0.0
      %508 = vmatprep.subr.mxu0 0.0
      %509 = vmatpush2.msra.mxu0 0.0
      %510 = vmatprep.subr.mxu0 0.0
      %511 = vmatpush2.msra.mxu0 0.0
      %512 = vmatprep.subr.mxu0 0.0
      %513 = vmatpush2.msra.mxu0 0.0
      %514 = vmatprep.subr.mxu0 0.0
      %515 = vmatpush2.msra.mxu0 0.0
      %516 = vmatprep.subr.mxu0 0.0
      %517 = vmatpush2.msra.mxu0 0.0
      %518 = vmatprep.mubr.f32.mxu0 0.0
      %519 = vmatmul.mubr.f32.gmra.mxu0 %v310
      %v520 = vpop.f32.mrf.mxu0
      %v521 = vadd.f32 %v306, %v520
      %v522 = vpop.f32.mrf.mxu0
      %v523 = vadd.f32 %v306, %v522
      %524 = vdwg.mxu0
      %525 = vmatprep.subr.mxu0 0.0
      %526 = vmatpush1.msra.mxu0 0.0
      %527 = vmatprep.subr.mxu0 0.0
      %528 = vmatpush1.msra.mxu0 0.0
      %529 = vmatprep.subr.mxu0 0.0
      %530 = vmatpush1.msra.mxu0 0.0
      %531 = vmatprep.subr.mxu0 0.0
      %532 = vmatpush1.msra.mxu0 0.0
      %533 = vmatprep.subr.mxu0 0.0
      %534 = vmatpush1.msra.mxu0 0.0
      %535 = vmatprep.subr.mxu0 0.0
      %536 = vmatpush1.msra.mxu0 0.0
      %537 = vmatprep.subr.mxu0 0.0
      %538 = vmatpush1.msra.mxu0 0.0
      %539 = vmatprep.subr.mxu0 0.0
      %540 = vmatpush1.msra.mxu0 0.0
      %541 = vmatprep.subr.mxu0 0.0
      %542 = vmatpush1.msra.mxu0 0.0
      %543 = vmatprep.subr.mxu0 0.0
      %544 = vmatpush1.msra.mxu0 0.0
      %545 = vmatprep.subr.mxu0 0.0
      %546 = vmatpush1.msra.mxu0 0.0
      %547 = vmatprep.subr.mxu0 0.0
      %548 = vmatpush1.msra.mxu0 0.0
      %549 = vmatprep.subr.mxu0 0.0
      %550 = vmatpush1.msra.mxu0 0.0
      %551 = vmatprep.subr.mxu0 0.0
      %552 = vmatpush1.msra.mxu0 0.0
      %553 = vmatprep.subr.mxu0 0.0
      %554 = vmatpush1.msra.mxu0 0.0
      %555 = vmatprep.subr.mxu0 %v297
      %556 = vmatpush1.msra.mxu0 %v296
      %557 = vmatprep.subr.mxu0 0.0
      %558 = vmatpush2.msra.mxu0 0.0
      %559 = vmatprep.subr.mxu0 0.0
      %560 = vmatpush2.msra.mxu0 0.0
      %561 = vmatprep.subr.mxu0 0.0
      %562 = vmatpush2.msra.mxu0 0.0
      %563 = vmatprep.subr.mxu0 0.0
      %564 = vmatpush2.msra.mxu0 0.0
      %565 = vmatprep.subr.mxu0 0.0
      %566 = vmatpush2.msra.mxu0 0.0
      %567 = vmatprep.subr.mxu0 0.0
      %568 = vmatpush2.msra.mxu0 0.0
      %569 = vmatprep.subr.mxu0 0.0
      %570 = vmatpush2.msra.mxu0 0.0
      %571 = vmatprep.subr.mxu0 0.0
      %572 = vmatpush2.msra.mxu0 0.0
      %573 = vmatprep.subr.mxu0 0.0
      %574 = vmatpush2.msra.mxu0 0.0
      %575 = vmatprep.subr.mxu0 0.0
      %576 = vmatpush2.msra.mxu0 0.0
      %577 = vmatprep.subr.mxu0 0.0
      %578 = vmatpush2.msra.mxu0 0.0
      %579 = vmatprep.subr.mxu0 0.0
      %580 = vmatpush2.msra.mxu0 0.0
      %581 = vmatprep.subr.mxu0 0.0
      %582 = vmatpush2.msra.mxu0 0.0
      %583 = vmatprep.subr.mxu0 0.0
      %584 = vmatpush2.msra.mxu0 0.0
      %585 = vmatprep.subr.mxu0 0.0
      %586 = vmatpush2.msra.mxu0 0.0
      %587 = vmatprep.subr.mxu0 0.0
      %588 = vmatpush2.msra.mxu0 0.0
      %589 = vmatprep.mubr.f32.mxu0 0.0
      %590 = vmatmul.mubr.f32.gmra.mxu0 %v310
      %v591 = vpop.f32.mrf.mxu0
      %v592 = vadd.f32 %v306, %v591
      %v593 = vpop.f32.mrf.mxu0
      %v594 = vadd.f32 %v306, %v593
      %595 = vdwg.mxu0
      %596 = vmatprep.subr.mxu0 0.0
      %597 = vmatpush1.msra.mxu0 0.0
      %598 = vmatprep.subr.mxu0 0.0
      %599 = vmatpush1.msra.mxu0 0.0
      %600 = vmatprep.subr.mxu0 0.0
      %601 = vmatpush1.msra.mxu0 0.0
      %602 = vmatprep.subr.mxu0 0.0
      %603 = vmatpush1.msra.mxu0 0.0
      %604 = vmatprep.subr.mxu0 0.0
      %605 = vmatpush1.msra.mxu0 0.0
      %606 = vmatprep.subr.mxu0 0.0
      %607 = vmatpush1.msra.mxu0 0.0
      %608 = vmatprep.subr.mxu0 0.0
      %609 = vmatpush1.msra.mxu0 0.0
      %610 = vmatprep.subr.mxu0 0.0
      %611 = vmatpush1.msra.mxu0 0.0
      %612 = vmatprep.subr.mxu0 0.0
      %613 = vmatpush1.msra.mxu0 0.0
      %614 = vmatprep.subr.mxu0 0.0
      %615 = vmatpush1.msra.mxu0 0.0
      %616 = vmatprep.subr.mxu0 0.0
      %617 = vmatpush1.msra.mxu0 0.0
      %618 = vmatprep.subr.mxu0 0.0
      %619 = vmatpush1.msra.mxu0 0.0
      %620 = vmatprep.subr.mxu0 0.0
      %621 = vmatpush1.msra.mxu0 0.0
      %622 = vmatprep.subr.mxu0 0.0
      %623 = vmatpush1.msra.mxu0 0.0
      %624 = vmatprep.subr.mxu0 0.0
      %625 = vmatpush1.msra.mxu0 0.0
      %626 = vmatprep.subr.mxu0 %v299
      %627 = vmatpush1.msra.mxu0 %v298
      %628 = vmatprep.subr.mxu0 0.0
      %629 = vmatpush2.msra.mxu0 0.0
      %630 = vmatprep.subr.mxu0 0.0
      %631 = vmatpush2.msra.mxu0 0.0
      %632 = vmatprep.subr.mxu0 0.0
      %633 = vmatpush2.msra.mxu0 0.0
      %634 = vmatprep.subr.mxu0 0.0
      %635 = vmatpush2.msra.mxu0 0.0
      %636 = vmatprep.subr.mxu0 0.0
      %637 = vmatpush2.msra.mxu0 0.0
      %638 = vmatprep.subr.mxu0 0.0
      %639 = vmatpush2.msra.mxu0 0.0
      %640 = vmatprep.subr.mxu0 0.0
      %641 = vmatpush2.msra.mxu0 0.0
      %642 = vmatprep.subr.mxu0 0.0
      %643 = vmatpush2.msra.mxu0 0.0
      %644 = vmatprep.subr.mxu0 0.0
      %645 = vmatpush2.msra.mxu0 0.0
      %646 = vmatprep.subr.mxu0 0.0
      %647 = vmatpush2.msra.mxu0 0.0
      %648 = vmatprep.subr.mxu0 0.0
      %649 = vmatpush2.msra.mxu0 0.0
      %650 = vmatprep.subr.mxu0 0.0
      %651 = vmatpush2.msra.mxu0 0.0
      %652 = vmatprep.subr.mxu0 0.0
      %653 = vmatpush2.msra.mxu0 0.0
      %654 = vmatprep.subr.mxu0 0.0
      %655 = vmatpush2.msra.mxu0 0.0
      %656 = vmatprep.subr.mxu0 0.0
      %657 = vmatpush2.msra.mxu0 0.0
      %658 = vmatprep.subr.mxu0 0.0
      %659 = vmatpush2.msra.mxu0 0.0
      %660 = vmatprep.mubr.f32.mxu0 0.0
      %661 = vmatmul.mubr.f32.gmra.mxu0 %v310
      %v662 = vpop.f32.mrf.mxu0
      %v663 = vadd.f32 %v306, %v662
      %v664 = vpop.f32.mrf.mxu0
      %v665 = vadd.f32 %v306, %v664
      %666 = vdwg.mxu0
      %667 = vmatprep.subr.mxu0 0.0
      %668 = vmatpush1.msra.mxu0 0.0
      %669 = vmatprep.subr.mxu0 0.0
      %670 = vmatpush1.msra.mxu0 0.0
      %671 = vmatprep.subr.mxu0 0.0
      %672 = vmatpush1.msra.mxu0 0.0
      %673 = vmatprep.subr.mxu0 0.0
      %674 = vmatpush1.msra.mxu0 0.0
      %675 = vmatprep.subr.mxu0 0.0
      %676 = vmatpush1.msra.mxu0 0.0
      %677 = vmatprep.subr.mxu0 0.0
      %678 = vmatpush1.msra.mxu0 0.0
      %679 = vmatprep.subr.mxu0 0.0
      %680 = vmatpush1.msra.mxu0 0.0
      %681 = vmatprep.subr.mxu0 0.0
      %682 = vmatpush1.msra.mxu0 0.0
      %683 = vmatprep.subr.mxu0 0.0
      %684 = vmatpush1.msra.mxu0 0.0
      %685 = vmatprep.subr.mxu0 0.0
      %686 = vmatpush1.msra.mxu0 0.0
      %687 = vmatprep.subr.mxu0 0.0
      %688 = vmatpush1.msra.mxu0 0.0
      %689 = vmatprep.subr.mxu0 0.0
      %690 = vmatpush1.msra.mxu0 0.0
      %691 = vmatprep.subr.mxu0 0.0
      %692 = vmatpush1.msra.mxu0 0.0
      %693 = vmatprep.subr.mxu0 0.0
      %694 = vmatpush1.msra.mxu0 0.0
      %695 = vmatprep.subr.mxu0 0.0
      %696 = vmatpush1.msra.mxu0 0.0
      %697 = vmatprep.subr.mxu0 0.0
      %698 = vmatpush1.msra.mxu0 %v300
      %699 = vmatprep.subr.mxu0 0.0
      %700 = vmatpush2.msra.mxu0 0.0
      %701 = vmatprep.subr.mxu0 0.0
      %702 = vmatpush2.msra.mxu0 0.0
      %703 = vmatprep.subr.mxu0 0.0
      %704 = vmatpush2.msra.mxu0 0.0
      %705 = vmatprep.subr.mxu0 0.0
      %706 = vmatpush2.msra.mxu0 0.0
      %707 = vmatprep.subr.mxu0 0.0
      %708 = vmatpush2.msra.mxu0 0.0
      %709 = vmatprep.subr.mxu0 0.0
      %710 = vmatpush2.msra.mxu0 0.0
      %711 = vmatprep.subr.mxu0 0.0
      %712 = vmatpush2.msra.mxu0 0.0
      %713 = vmatprep.subr.mxu0 0.0
      %714 = vmatpush2.msra.mxu0 0.0
      %715 = vmatprep.subr.mxu0 0.0
      %716 = vmatpush2.msra.mxu0 0.0
      %717 = vmatprep.subr.mxu0 0.0
      %718 = vmatpush2.msra.mxu0 0.0
      %719 = vmatprep.subr.mxu0 0.0
      %720 = vmatpush2.msra.mxu0 0.0
      %721 = vmatprep.subr.mxu0 0.0
      %722 = vmatpush2.msra.mxu0 0.0
      %723 = vmatprep.subr.mxu0 0.0
      %724 = vmatpush2.msra.mxu0 0.0
      %725 = vmatprep.subr.mxu0 0.0
      %726 = vmatpush2.msra.mxu0 0.0
      %727 = vmatprep.subr.mxu0 0.0
      %728 = vmatpush2.msra.mxu0 0.0
      %729 = vmatprep.subr.mxu0 0.0
      %730 = vmatpush2.msra.mxu0 0.0
      %731 = vmatprep.mubr.f32.mxu0 0.0
      %732 = vmatmul.mubr.f32.gmra.mxu0 %v310
      %v733 = vpop.f32.mrf.mxu0
      %v734 = vadd.f32 %v306, %v733
      %v735 = vpop.f32.mrf.mxu0
      %736 = vdwg.mxu0
      %v737 = vld [vmem:[%s274] sm:$0xff]
      %v738 = vld [vmem:[%s274 + $0x8] sm:$0xff]
      %v739 = vld [vmem:[%s274 + $0x10] sm:$0xff]
      %v740 = vld [vmem:[%s274 + $0x18] sm:$0xff]
      %v741 = vld [vmem:[%s274 + $0x20] sm:$0xff]
      %v742 = vld [vmem:[%s274 + $0x28] sm:$0xff]
      %v743 = vld [vmem:[%s274 + $0x30] sm:$0xff]
      %v744 = vld [vmem:[%s274 + $0x38] sm:$0xff]
      %v745 = vld [vmem:[%s274 + $0x40] sm:$0xff]
      %v746 = vld [vmem:[%s274 + $0x48] sm:$0xff]
      %v747 = vld [vmem:[%s274 + $0x50] sm:$0xff]
      %v748 = vadd.f32 %v737, %v379
      %v749 = vadd.f32 %v738, %v381
      %v750 = vadd.f32 %v739, %v450
      %v751 = vadd.f32 %v740, %v452
      %v752 = vadd.f32 %v741, %v521
      %v753 = vadd.f32 %v742, %v523
      %v754 = vadd.f32 %v743, %v592
      %v755 = vadd.f32 %v744, %v594
      %v756 = vadd.f32 %v745, %v663
      %v757 = vadd.f32 %v746, %v665
      %v758 = vadd.f32 %v747, %v734
      %v759 = vmul.f32 %v748, 0.5
      %v760 = vmul.f32 %v749, 0.5
      %v761 = vmul.f32 %v750, 0.5
      %v762 = vmul.f32 %v751, 0.5
      %v763 = vmul.f32 %v752, 0.5
      %v764 = vmul.f32 %v753, 0.5
      %v765 = vmul.f32 %v754, 0.5
      %v766 = vmul.f32 %v755, 0.5
      %v767 = vmul.f32 %v756, 0.5
      %v768 = vmul.f32 %v757, 0.5
      %v769 = vmul.f32 %v758, 0.5
      %v770 = vrcp.pop 1.4142135
      %v771 = vmul.f32 %v748, %v770
      %v772 = vmul.f32 %v749, %v770
      %v773 = vmul.f32 %v750, %v770
      %v774 = vmul.f32 %v751, %v770
      %v775 = vmul.f32 %v752, %v770
      %v776 = vmul.f32 %v753, %v770
      %v777 = vmul.f32 %v754, %v770
      %v778 = vmul.f32 %v755, %v770
      %v779 = vmul.f32 %v756, %v770
      %v780 = vmul.f32 %v757, %v770
      %v781 = vmul.f32 %v758, %v770
      %v782 = verf.f32.pop %v771
      %v783 = verf.f32.pop %v772
      %v784 = verf.f32.pop %v773
      %v785 = verf.f32.pop %v774
      %v786 = verf.f32.pop %v775
      %v787 = verf.f32.pop %v776
      %v788 = verf.f32.pop %v777
      %v789 = verf.f32.pop %v778
      %v790 = verf.f32.pop %v779
      %v791 = verf.f32.pop %v780
      %v792 = verf.f32.pop %v781
      %v793 = vadd.f32 %v782, 1.0
      %v794 = vadd.f32 %v783, 1.0
      %v795 = vadd.f32 %v784, 1.0
      %v796 = vadd.f32 %v785, 1.0
      %v797 = vadd.f32 %v786, 1.0
      %v798 = vadd.f32 %v787, 1.0
      %v799 = vadd.f32 %v788, 1.0
      %v800 = vadd.f32 %v789, 1.0
      %v801 = vadd.f32 %v790, 1.0
      %v802 = vadd.f32 %v791, 1.0
      %v803 = vadd.f32 %v792, 1.0
      %v804 = vmul.f32 %v759, %v793
      %v805 = vmul.f32 %v760, %v794
      %v806 = vmul.f32 %v761, %v795
      %v807 = vmul.f32 %v762, %v796
      %v808 = vmul.f32 %v763, %v797
      %v809 = vmul.f32 %v764, %v798
      %v810 = vmul.f32 %v765, %v799
      %v811 = vmul.f32 %v766, %v800
      %v812 = vmul.f32 %v767, %v801
      %v813 = vmul.f32 %v768, %v802
      %v814 = vmul.f32 %v769, %v803
      %815 = vst [vmem:[%s288] sm:$0xff] %v804
      %816 = vst [vmem:[%s288 + $0x8] sm:$0xff] %v805
      %817 = vst [vmem:[%s288 + $0x10] sm:$0xff] %v806
      %818 = vst [vmem:[%s288 + $0x18] sm:$0xff] %v807
      %819 = vst [vmem:[%s288 + $0x20] sm:$0xff] %v808
      %820 = vst [vmem:[%s288 + $0x28] sm:$0xff] %v809
      %821 = vst [vmem:[%s288 + $0x30] sm:$0xff] %v810
      %822 = vst [vmem:[%s288 + $0x38] sm:$0xff] %v811
      %823 = vst [vmem:[%s288 + $0x40] sm:$0xff] %v812
      %824 = vst [vmem:[%s288 + $0x48] sm:$0xff] %v813
      %825 = vst [vmem:[%s288 + $0x50] sm:$0xff] %v814
      %s826 = smul.u32 11, %s20
      %p827 = scmp.lt.s32.totalorder %s19, 1
      %s828 = scalar_select %p827, %s19, 1
      %p829 = scmp.lt.s32.totalorder %s826, 10
      %s830 = scalar_select %p829, %s826, 10
      %s831 = smul.addr %s828, 11
      %s832 = sadd.s32 %s830, %s831
      %s833 = smul.addr %s832, 8
      %s834 = scalar_lea.vmem %s4, %s833
      // Predicated region
      $region37: #{_lambda_.12} parent=35 // pred_check
        %p835 = pneg %p150
      $region38: #{_lambda_.12} parent=35 // pred_check_branch
        %837 = sbr.rel (%p835) target = $region40
      $region39: #{_lambda_.12} parent=35 // pred_region
        %s838 = smul.u32 11, %s20
      $region40: #{_lambda_.12} parent=35 // pred_fallthru
        _
    $region36: #{_lambda_.12} parent=5 // pred_fallthru
      _
    %p839 = scmp.le.s32.totalorder 2, %s10
    // Predicated region
    $region41: #{_lambda_.12} parent=5 // pred_check
      %p840 = pneg %p839
    $region42: #{_lambda_.12} parent=5 // pred_check_branch
      %842 = sbr.rel (%p840) target = $region44
    $region43: #{_lambda_.12} parent=5 // pred_region
      %s843 = ssub.s32 %s10, 2
      // Predicated region
      $region45: #{_lambda_.12} parent=43 // pred_check
        %p844 = pneg %p156
      $region46: #{_lambda_.12} parent=43 // pred_check_branch
        %846 = sbr.rel (%p844) target = $region48
      $region47: #{_lambda_.12} parent=43 // pred_region
        %s847 = smul.u32 11, %s22
        %p848 = scmp.lt.s32.totalorder %s21, 1
        %s849 = scalar_select %p848, %s21, 1
        %p850 = scmp.lt.s32.totalorder %s847, 10
        %s851 = scalar_select %p850, %s847, 10
        %s852 = smul.addr %s849, 11
        %s853 = sadd.s32 %s851, %s852
        %s854 = smul.addr %s853, 8
        %s855 = scalar_lea.vmem %s4, %s854
      $region48: #{_lambda_.12} parent=43 // pred_fallthru
        _
    $region44: #{_lambda_.12} parent=5 // pred_fallthru
      _
  $region6: #{_lambda_.12} parent=0 // loop_footer
    %s14 = sadd.s32 1, %s10
  $region7: #{_lambda_.12} parent=0 // loop_footer_branch
    %9 = sbr.rel target = $region3
  $region8: #{_lambda_.12} parent=0 // loop_exit
    _

// kernel: _lambda_.19
$region0: #{_lambda_.19}
  #allocation0 [shape = 'u32[]', space=smem, size = 0x4, offset = 0x4, fixed_abs, tag = 'smem constant byte address 0x4 - core index']
  #allocation1 [shape = 'u32[144,128]{1,0:T(1,128)}', space=vmem, size = 0x12000, scoped, tag = 'internal scratch']
  #allocation2 [shape = 'f32[1,1]{1,0:T(1,128)S(1)}', space=vmem, size = 0x200, scoped, tag = 'scoped memory for _lambda_.19']
  %s0 = inlined_call_operand.vmem [shape: f32[2,8,512], index: 0, kind: input, shape index: {}]
  %s1 = inlined_call_operand.vmem [shape: f32[1,8], index: 1, kind: input, shape index: {}]
  %s2 = inlined_call_operand.<no memory space> [shape: f32[1,1], index: 2, kind: input, shape index: {}]
  %s3 = inlined_call_operand.vmem [shape: f32[2,1,512], index: 3, kind: output, shape index: {}]
  %s4 = sld [smem:[#allocation0]]
  $region45: #{_lambda_.19} parent=0
    _
  %s6 = ssub.s32 1, %s4
  %s7 = scalar_select 0, %s6, %s4
  %v8 = vstv %s2
  %9 = vst [vmem:[#allocation2] sm:$0x1] %v8
  loop: start=0, step=1, limit=4
  $region2: #{_lambda_.19} parent=0 // loop_pre_header
    _
  $region3: #{_lambda_.19} parent=0 // loop_header
    %s11 = sphi 0, %s15
    %p12 = scmp.ge.s32.totalorder %s11, 4
    %s18 = sphi 0, %s30
    %s19 = sphi 0, %s26
    %s20 = sphi 0, %s18
    %s21 = sphi 0, %s19
    %s22 = sphi 0, %s20
    %s23 = sphi 0, %s21
    %s35 = sphi 0, %s37
    %s38 = sphi 0, %s35
    %s39 = sphi 0, %s38
    %s55 = sphi 0, %s39
    %s59 = sphi 0, %s59
    %s61 = sphi 0, %s59
    %s62 = sphi 0, %s61
    %s76 = sphi 0, %s62
    %s80 = sphi 0, %s80
    %s82 = sphi 0, %s80
    %s83 = sphi 0, %s82
    %s97 = sphi 0, %s83
    %s105 = sphi 0, %s107
    %s108 = sphi 0, %s105
    %s109 = sphi 0, %s108
    %s125 = sphi 0, %s109
  $region4: #{_lambda_.19} parent=0 // loop_header_branch
    %14 = sbr.rel (%p12) target = $region8
  $region5: #{_lambda_.19} parent=0 // loop_body
    %s16 = ssub.s32 %s11, 1
    %s17 = ssub.s32 %s11, 2
    %s24 = sadd.s32 1, %s19
    %p25 = scmp.ge.s32.totalorder %s24, 1
    %s26 = scalar_select %p25, 0, %s24
    %s27 = sadd.s32 1, %s18
    %s28 = scalar_select %p25, %s27, %s18
    %p29 = scmp.ge.s32.totalorder %s28, 2
    %s30 = scalar_select %p29, 0, %s28
    %s31 = ssub.s32 %s18, %s30
    %s32 = ssub.s32 %s19, %s26
    %s33 = sor.u32 %s31, %s32
    %p34 = scmp.eq.s32.totalorder %s33, 0
    %s36 = sadd.s32 %s35, 1
    %s37 = scalar_select %p34, %s35, %s36
    %p40 = pneg %p34
    %p41 = scmp.eq.s32.totalorder %s11, 1
    %p42 = por %p40, %p41
    %p43 = scmp.ne.s32.totalorder %s35, %s38
    %p44 = scmp.eq.s32.totalorder %s11, 0
    %p45 = por %p43, %p44
    %p46 = scmp.ne.s32.totalorder %s35, %s38
    %p47 = scmp.eq.s32.totalorder %s16, 1
    %p48 = por %p46, %p47
    %p49 = scmp.ne.s32.totalorder %s38, %s39
    %p50 = scmp.eq.s32.totalorder %s16, 0
    %p51 = por %p49, %p50
    %p52 = scmp.ne.s32.totalorder %s38, %s39
    %p53 = scmp.eq.s32.totalorder %s17, 1
    %p54 = por %p52, %p53
    %p56 = scmp.ne.s32.totalorder %s39, %s55
    %p57 = scmp.eq.s32.totalorder %s17, 0
    %p58 = por %p56, %p57
    %s60 = sadd.s32 %s59, 1
    %p63 = scmp.eq.s32.totalorder %s11, 1
    %p64 = scmp.ne.s32.totalorder %s59, %s61
    %p65 = scmp.eq.s32.totalorder %s11, 0
    %p66 = por %p64, %p65
    %p67 = scmp.ne.s32.totalorder %s59, %s61
    %p68 = scmp.eq.s32.totalorder %s16, 1
    %p69 = por %p67, %p68
    %p70 = scmp.ne.s32.totalorder %s61, %s62
    %p71 = scmp.eq.s32.totalorder %s16, 0
    %p72 = por %p70, %p71
    %p73 = scmp.ne.s32.totalorder %s61, %s62
    %p74 = scmp.eq.s32.totalorder %s17, 1
    %p75 = por %p73, %p74
    %p77 = scmp.ne.s32.totalorder %s62, %s76
    %p78 = scmp.eq.s32.totalorder %s17, 0
    %p79 = por %p77, %p78
    %s81 = sadd.s32 %s80, 1
    %p84 = scmp.eq.s32.totalorder %s11, 1
    %p85 = scmp.ne.s32.totalorder %s80, %s82
    %p86 = scmp.eq.s32.totalorder %s11, 0
    %p87 = por %p85, %p86
    %p88 = scmp.ne.s32.totalorder %s80, %s82
    %p89 = scmp.eq.s32.totalorder %s16, 1
    %p90 = por %p88, %p89
    %p91 = scmp.ne.s32.totalorder %s82, %s83
    %p92 = scmp.eq.s32.totalorder %s16, 0
    %p93 = por %p91, %p92
    %p94 = scmp.ne.s32.totalorder %s82, %s83
    %p95 = scmp.eq.s32.totalorder %s17, 1
    %p96 = por %p94, %p95
    %p98 = scmp.ne.s32.totalorder %s83, %s97
    %p99 = scmp.eq.s32.totalorder %s17, 0
    %p100 = por %p98, %p99
    %s101 = ssub.s32 %s18, %s30
    %s102 = ssub.s32 %s19, %s26
    %s103 = sor.u32 %s101, %s102
    %p104 = scmp.eq.s32.totalorder %s103, 0
    %s106 = sadd.s32 %s105, 1
    %s107 = scalar_select %p104, %s105, %s106
    %p110 = pneg %p104
    %p111 = scmp.eq.s32.totalorder %s11, 1
    %p112 = por %p110, %p111
    %p113 = scmp.ne.s32.totalorder %s105, %s108
    %p114 = scmp.eq.s32.totalorder %s11, 0
    %p115 = por %p113, %p114
    %p116 = scmp.ne.s32.totalorder %s105, %s108
    %p117 = scmp.eq.s32.totalorder %s16, 1
    %p118 = por %p116, %p117
    %p119 = scmp.ne.s32.totalorder %s108, %s109
    %p120 = scmp.eq.s32.totalorder %s16, 0
    %p121 = por %p119, %p120
    %p122 = scmp.ne.s32.totalorder %s108, %s109
    %p123 = scmp.eq.s32.totalorder %s17, 1
    %p124 = por %p122, %p123
    %p126 = scmp.ne.s32.totalorder %s109, %s125
    %p127 = scmp.eq.s32.totalorder %s17, 0
    %p128 = por %p126, %p127
    %p129 = scmp.le.s32.totalorder 1, %s11
    %p130 = scmp.lt.s32.totalorder %s11, 3
    %p131 = pnand %p129, %p130
    %p132 = pneg %p131
    // Predicated region
    $region9: #{_lambda_.19} parent=5 // pred_check
      _
    $region10: #{_lambda_.19} parent=5 // pred_check_branch
      %134 = sbr.rel (%p131) target = $region12
    $region11: #{_lambda_.19} parent=5 // pred_region
      %s135 = ssub.s32 %s11, 1
      // Predicated region
      $region13: #{_lambda_.19} parent=11 // pred_check
        %p136 = pneg %p72
      $region14: #{_lambda_.19} parent=11 // pred_check_branch
        %138 = sbr.rel (%p136) target = $region16
      $region15: #{_lambda_.19} parent=11 // pred_region
        _
      $region16: #{_lambda_.19} parent=11 // pred_fallthru
        _
      // Predicated region
      $region17: #{_lambda_.19} parent=11 // pred_check
        %p139 = pneg %p93
      $region18: #{_lambda_.19} parent=11 // pred_check_branch
        %141 = sbr.rel (%p139) target = $region20
      $region19: #{_lambda_.19} parent=11 // pred_region
        _
      $region20: #{_lambda_.19} parent=11 // pred_fallthru
        _
    $region12: #{_lambda_.19} parent=5 // pred_fallthru
      _
    %p142 = scmp.lt.s32.totalorder %s11, 2
    // Predicated region
    $region21: #{_lambda_.19} parent=5 // pred_check
      %p143 = pneg %p142
    $region22: #{_lambda_.19} parent=5 // pred_check_branch
      %145 = sbr.rel (%p143) target = $region24
    $region23: #{_lambda_.19} parent=5 // pred_region
      // Predicated region
      $region25: #{_lambda_.19} parent=23 // pred_check
        %p146 = pneg %p45
      $region26: #{_lambda_.19} parent=23 // pred_check_branch
        %148 = sbr.rel (%p146) target = $region28
      $region27: #{_lambda_.19} parent=23 // pred_region
        %s149 = smul.u32 4, %s19
        %p150 = scmp.lt.s32.totalorder %s18, 1
        %s151 = scalar_select %p150, %s18, 1
        %p152 = scmp.lt.s32.totalorder %s149, 3
        %s153 = scalar_select %p152, %s149, 3
        %s154 = smul.addr %s151, 4
        %s155 = sadd.s32 %s153, %s154
        %s156 = smul.addr %s155, 8
        %s157 = scalar_lea.vmem %s0, %s156
        %s158 = smul.u32 4, %s19
      $region28: #{_lambda_.19} parent=23 // pred_fallthru
        _
    $region24: #{_lambda_.19} parent=5 // pred_fallthru
      _
    %p159 = scmp.le.s32.totalorder 1, %s11
    %p160 = scmp.lt.s32.totalorder %s11, 3
    %p161 = pnand %p159, %p160
    %p162 = pneg %p161
    // Predicated region
    $region29: #{_lambda_.19} parent=5 // pred_check
      _
    $region30: #{_lambda_.19} parent=5 // pred_check_branch
      %164 = sbr.rel (%p161) target = $region32
    $region31: #{_lambda_.19} parent=5 // pred_region
      %s165 = ssub.s32 %s11, 1
      %s166 = smul.u32 4, %s21
      %p167 = scmp.lt.s32.totalorder %s20, 1
      %s168 = scalar_select %p167, %s20, 1
      %p169 = scmp.lt.s32.totalorder %s166, 3
      %s170 = scalar_select %p169, %s166, 3
      %s171 = smul.addr %s168, 4
      %s172 = sadd.s32 %s170, %s171
      %s173 = smul.addr %s172, 8
      %s174 = scalar_lea.vmem %s0, %s173
      %p175 = pneg %p51
      %p176 = pneg %p48
      %p177 = pneg %p72
      %p178 = pneg %p69
      %p179 = pneg %p93
      %p180 = pneg %p90
      %p181 = pneg %p121
      %p182 = pneg %p118
      %s183 = smul.u32 4, %s21
      %p184 = scmp.lt.s32.totalorder %s20, 1
      %s185 = scalar_select %p184, %s20, 1
      %p186 = scmp.lt.s32.totalorder %s183, 3
      %s187 = scalar_select %p186, %s183, 3
      %s188 = smul.addr %s185, 4
      %s189 = sadd.s32 %s187, %s188
      %s190 = scalar_lea.vmem %s3, %s189
      %s191 = smul.u32 4, %s21
      %p192 = scmp.lt.s32.totalorder %s20, 1
      %s193 = scalar_select %p192, %s20, 1
      %p194 = scmp.lt.s32.totalorder %s191, 3
      %s195 = scalar_select %p194, %s191, 3
      %s196 = smul.addr %s193, 4
      %s197 = sadd.s32 %s195, %s196
      %s198 = smul.addr %s197, 8
      %s199 = scalar_lea.vmem %s0, %s198
      %s200 = smul.u32 4, %s21
      %s201 = smul.u32 4, %s21
      %p202 = scmp.lt.s32.totalorder %s20, 1
      %s203 = scalar_select %p202, %s20, 1
      %p204 = scmp.lt.s32.totalorder %s201, 3
      %s205 = scalar_select %p204, %s201, 3
      %s206 = smul.addr %s203, 4
      %s207 = sadd.s32 %s205, %s206
      %s208 = scalar_lea.vmem %s3, %s207
      %s209 = smul.u32 4, %s21
      %v210 = vld [vmem:[%s199] sm:$0xff]
      %v211 = vld [vmem:[%s199 + $0x8] sm:$0xff]
      %v212 = vld [vmem:[%s199 + $0x10] sm:$0xff]
      %v213 = vld [vmem:[%s199 + $0x18] sm:$0xff]
      %v214 = vld [vmem:[%s1] sm:$0x1]
      %v215 = vld [vmem:[#allocation2] sm:$0x1]
      %217 = vset.pattern.permute.xlu0 0
      %218 = vperm.xlu0 %217, %v215
      %v219 = vpop.permute.xlu0 %218
      %v221 = vlaneseq
      %v222 = vshrl.u32 %v221, 7
      %v223 = vsub.s32 0, %v222
      %v224 = vrot.slane %v219, %v223
      %vm225 = vcmask 64512
      %v227 = vsel %vm225, %v214, 0
      %229 = vmatprep.subr.mxu0 0.0
      %230 = vmatpush1.msra.mxu0 0.0
      %231 = vmatprep.subr.mxu0 0.0
      %232 = vmatpush1.msra.mxu0 0.0
      %233 = vmatprep.subr.mxu0 0.0
      %234 = vmatpush1.msra.mxu0 0.0
      %235 = vmatprep.subr.mxu0 0.0
      %236 = vmatpush1.msra.mxu0 0.0
      %237 = vmatprep.subr.mxu0 0.0
      %238 = vmatpush1.msra.mxu0 0.0
      %239 = vmatprep.subr.mxu0 0.0
      %240 = vmatpush1.msra.mxu0 0.0
      %241 = vmatprep.subr.mxu0 0.0
      %242 = vmatpush1.msra.mxu0 0.0
      %243 = vmatprep.subr.mxu0 0.0
      %244 = vmatpush1.msra.mxu0 0.0
      %245 = vmatprep.subr.mxu0 0.0
      %246 = vmatpush1.msra.mxu0 0.0
      %247 = vmatprep.subr.mxu0 0.0
      %248 = vmatpush1.msra.mxu0 0.0
      %249 = vmatprep.subr.mxu0 0.0
      %250 = vmatpush1.msra.mxu0 0.0
      %251 = vmatprep.subr.mxu0 0.0
      %252 = vmatpush1.msra.mxu0 0.0
      %253 = vmatprep.subr.mxu0 0.0
      %254 = vmatpush1.msra.mxu0 0.0
      %255 = vmatprep.subr.mxu0 0.0
      %256 = vmatpush1.msra.mxu0 0.0
      %257 = vmatprep.subr.mxu0 0.0
      %258 = vmatpush1.msra.mxu0 0.0
      %259 = vmatprep.subr.mxu0 %v211
      %260 = vmatpush1.msra.mxu0 %v210
      %261 = vmatprep.subr.mxu0 0.0
      %262 = vmatpush2.msra.mxu0 0.0
      %263 = vmatprep.subr.mxu0 0.0
      %264 = vmatpush2.msra.mxu0 0.0
      %265 = vmatprep.subr.mxu0 0.0
      %266 = vmatpush2.msra.mxu0 0.0
      %267 = vmatprep.subr.mxu0 0.0
      %268 = vmatpush2.msra.mxu0 0.0
      %269 = vmatprep.subr.mxu0 0.0
      %270 = vmatpush2.msra.mxu0 0.0
      %271 = vmatprep.subr.mxu0 0.0
      %272 = vmatpush2.msra.mxu0 0.0
      %273 = vmatprep.subr.mxu0 0.0
      %274 = vmatpush2.msra.mxu0 0.0
      %275 = vmatprep.subr.mxu0 0.0
      %276 = vmatpush2.msra.mxu0 0.0
      %277 = vmatprep.subr.mxu0 0.0
      %278 = vmatpush2.msra.mxu0 0.0
      %279 = vmatprep.subr.mxu0 0.0
      %280 = vmatpush2.msra.mxu0 0.0
      %281 = vmatprep.subr.mxu0 0.0
      %282 = vmatpush2.msra.mxu0 0.0
      %283 = vmatprep.subr.mxu0 0.0
      %284 = vmatpush2.msra.mxu0 0.0
      %285 = vmatprep.subr.mxu0 0.0
      %286 = vmatpush2.msra.mxu0 0.0
      %287 = vmatprep.subr.mxu0 0.0
      %288 = vmatpush2.msra.mxu0 0.0
      %289 = vmatprep.subr.mxu0 0.0
      %290 = vmatpush2.msra.mxu0 0.0
      %291 = vmatprep.subr.mxu0 0.0
      %292 = vmatpush2.msra.mxu0 0.0
      %293 = vmatprep.mubr.f32.mxu0 0.0
      %294 = vmatmul.mubr.f32.gmra.mxu0 %v227
      %v295 = vpop.f32.mrf.mxu0
      %v296 = vadd.f32 %v224, %v295
      %v297 = vpop.f32.mrf.mxu0
      %v298 = vadd.f32 %v224, %v297
      %299 = vdwg.mxu0
      %300 = vmatprep.subr.mxu0 0.0
      %301 = vmatpush1.msra.mxu0 0.0
      %302 = vmatprep.subr.mxu0 0.0
      %303 = vmatpush1.msra.mxu0 0.0
      %304 = vmatprep.subr.mxu0 0.0
      %305 = vmatpush1.msra.mxu0 0.0
      %306 = vmatprep.subr.mxu0 0.0
      %307 = vmatpush1.msra.mxu0 0.0
      %308 = vmatprep.subr.mxu0 0.0
      %309 = vmatpush1.msra.mxu0 0.0
      %310 = vmatprep.subr.mxu0 0.0
      %311 = vmatpush1.msra.mxu0 0.0
      %312 = vmatprep.subr.mxu0 0.0
      %313 = vmatpush1.msra.mxu0 0.0
      %314 = vmatprep.subr.mxu0 0.0
      %315 = vmatpush1.msra.mxu0 0.0
      %316 = vmatprep.subr.mxu0 0.0
      %317 = vmatpush1.msra.mxu0 0.0
      %318 = vmatprep.subr.mxu0 0.0
      %319 = vmatpush1.msra.mxu0 0.0
      %320 = vmatprep.subr.mxu0 0.0
      %321 = vmatpush1.msra.mxu0 0.0
      %322 = vmatprep.subr.mxu0 0.0
      %323 = vmatpush1.msra.mxu0 0.0
      %324 = vmatprep.subr.mxu0 0.0
      %325 = vmatpush1.msra.mxu0 0.0
      %326 = vmatprep.subr.mxu0 0.0
      %327 = vmatpush1.msra.mxu0 0.0
      %328 = vmatprep.subr.mxu0 0.0
      %329 = vmatpush1.msra.mxu0 0.0
      %330 = vmatprep.subr.mxu0 %v213
      %331 = vmatpush1.msra.mxu0 %v212
      %332 = vmatprep.subr.mxu0 0.0
      %333 = vmatpush2.msra.mxu0 0.0
      %334 = vmatprep.subr.mxu0 0.0
      %335 = vmatpush2.msra.mxu0 0.0
      %336 = vmatprep.subr.mxu0 0.0
      %337 = vmatpush2.msra.mxu0 0.0
      %338 = vmatprep.subr.mxu0 0.0
      %339 = vmatpush2.msra.mxu0 0.0
      %340 = vmatprep.subr.mxu0 0.0
      %341 = vmatpush2.msra.mxu0 0.0
      %342 = vmatprep.subr.mxu0 0.0
      %343 = vmatpush2.msra.mxu0 0.0
      %344 = vmatprep.subr.mxu0 0.0
      %345 = vmatpush2.msra.mxu0 0.0
      %346 = vmatprep.subr.mxu0 0.0
      %347 = vmatpush2.msra.mxu0 0.0
      %348 = vmatprep.subr.mxu0 0.0
      %349 = vmatpush2.msra.mxu0 0.0
      %350 = vmatprep.subr.mxu0 0.0
      %351 = vmatpush2.msra.mxu0 0.0
      %352 = vmatprep.subr.mxu0 0.0
      %353 = vmatpush2.msra.mxu0 0.0
      %354 = vmatprep.subr.mxu0 0.0
      %355 = vmatpush2.msra.mxu0 0.0
      %356 = vmatprep.subr.mxu0 0.0
      %357 = vmatpush2.msra.mxu0 0.0
      %358 = vmatprep.subr.mxu0 0.0
      %359 = vmatpush2.msra.mxu0 0.0
      %360 = vmatprep.subr.mxu0 0.0
      %361 = vmatpush2.msra.mxu0 0.0
      %362 = vmatprep.subr.mxu0 0.0
      %363 = vmatpush2.msra.mxu0 0.0
      %364 = vmatprep.mubr.f32.mxu0 0.0
      %365 = vmatmul.mubr.f32.gmra.mxu0 %v227
      %v366 = vpop.f32.mrf.mxu0
      %v367 = vadd.f32 %v224, %v366
      %v368 = vpop.f32.mrf.mxu0
      %v369 = vadd.f32 %v224, %v368
      %370 = vdwg.mxu0
      %v375 = vcombine.low %v296, %v298
      %v376 = vcombine.low %v367, %v369
      %v378 = vunpack.c.l.s4 1966171168
      %v379 = vunpack.c.0.s8 %v378
      %v380 = vlaneseq
      %v381 = vshrl.u32 %v380, 7
      %v382 = vsub.s32 %v379, %v381
      %v383 = vrot.slane %v375, %v382
      %v385 = vunpack.c.l.s4 1966171168
      %v386 = vunpack.c.0.s8 %v385
      %v387 = vlaneseq
      %v388 = vshrl.u32 %v387, 7
      %v389 = vsub.s32 %v386, %v388
      %v390 = vrot.slane %v376, %v389
      %v391 = vcombine.low %v383, %v390
      %v393 = vunpack.c.l.s4 1966171168
      %v394 = vunpack.c.0.s8 %v393
      %v395 = vlaneseq
      %v396 = vshrl.u32 %v395, 7
      %v397 = vsub.s32 %v394, %v396
      %v398 = vrot.slane %v391, %v397
      %v400 = vlaneseq
      %vm401 = vcmp.ge.s32.totalorder %v400, 0
      %vm402 = vcmp.lt.s32.totalorder %v400, 512
      %vm403 = vmand %vm401, %vm402
      %404 = vst.msk [vmem:[%s208] sm:$0xf] %vm403, %v398
      %s405 = smul.u32 4, %s21
      %p406 = scmp.lt.s32.totalorder %s20, 1
      %s407 = scalar_select %p406, %s20, 1
      %p408 = scmp.lt.s32.totalorder %s405, 3
      %s409 = scalar_select %p408, %s405, 3
      %s410 = smul.addr %s407, 4
      %s411 = sadd.s32 %s409, %s410
      %s412 = scalar_lea.vmem %s3, %s411
      // Predicated region
      $region33: #{_lambda_.19} parent=31 // pred_check
        %p413 = pneg %p118
      $region34: #{_lambda_.19} parent=31 // pred_check_branch
        %415 = sbr.rel (%p413) target = $region36
      $region35: #{_lambda_.19} parent=31 // pred_region
        %s416 = smul.u32 4, %s21
      $region36: #{_lambda_.19} parent=31 // pred_fallthru
        _
    $region32: #{_lambda_.19} parent=5 // pred_fallthru
      _
    %p417 = scmp.le.s32.totalorder 2, %s11
    // Predicated region
    $region37: #{_lambda_.19} parent=5 // pred_check
      %p418 = pneg %p417
    $region38: #{_lambda_.19} parent=5 // pred_check_branch
      %420 = sbr.rel (%p418) target = $region40
    $region39: #{_lambda_.19} parent=5 // pred_region
      %s421 = ssub.s32 %s11, 2
      // Predicated region
      $region41: #{_lambda_.19} parent=39 // pred_check
        %p422 = pneg %p124
      $region42: #{_lambda_.19} parent=39 // pred_check_branch
        %424 = sbr.rel (%p422) target = $region44
      $region43: #{_lambda_.19} parent=39 // pred_region
        %s425 = smul.u32 4, %s23
        %p426 = scmp.lt.s32.totalorder %s22, 1
        %s427 = scalar_select %p426, %s22, 1
        %p428 = scmp.lt.s32.totalorder %s425, 3
        %s429 = scalar_select %p428, %s425, 3
        %s430 = smul.addr %s427, 4
        %s431 = sadd.s32 %s429, %s430
        %s432 = scalar_lea.vmem %s3, %s431
      $region44: #{_lambda_.19} parent=39 // pred_fallthru
        _
    $region40: #{_lambda_.19} parent=5 // pred_fallthru
      _
  $region6: #{_lambda_.19} parent=0 // loop_footer
    %s15 = sadd.s32 1, %s11
  $region7: #{_lambda_.19} parent=0 // loop_footer_branch
    %10 = sbr.rel target = $region3
  $region8: #{_lambda_.19} parent=0 // loop_exit
    _

</llo_original>
